<compile_context>
chip_gen: v7x
topology: tpu7x:2x2x1
jax: 0.10.0
libtpu: 0.0.40
codegen_flags: <defaults>
</compile_context>

<pallas_src>
import functools

import jax
import jax.numpy as jnp
from jax import lax
from jax.experimental import pallas as pl
from jax.experimental.pallas import tpu as pltpu

LANE = 128
SUBLANE = 8


# --------------------------------------------------------------------------- #
# Kernel
# --------------------------------------------------------------------------- #
def _cross_attn_kernel(*refs, num_heads, head_dim, with_mask,
                       batch_block, seq_q, seq_kv):
    if with_mask:
        (q_ref, kv_ref, bias_ref,
         wq_ref, wk_ref, wv_ref, wo_ref, bo_ref, out_ref, ctx_ref) = refs
    else:
        (q_ref, kv_ref,
         wq_ref, wk_ref, wv_ref, wo_ref, bo_ref, out_ref, ctx_ref) = refs
        bias_ref = None

    mm_dtype = wq_ref.dtype                 # native MXU operand dtype (bf16 stays bf16)

    # ---- fused QKV projections over the whole batch block ------------------
    # q_ref block is (Bt*Sq, Dq), kv_ref block is (Bt*Skv, Dkv): one MXU pass
    # per projection with M = Bt*S (good sublane fill), f32 accumulate.
    q = jnp.dot(q_ref[...], wq_ref[...],
                preferred_element_type=jnp.float32).astype(mm_dtype)   # (Bt*Sq,  Din)
    k = jnp.dot(kv_ref[...], wk_ref[...],
                preferred_element_type=jnp.float32).astype(mm_dtype)   # (Bt*Skv, Din)
    v = jnp.dot(kv_ref[...], wv_ref[...],
                preferred_element_type=jnp.float32).astype(mm_dtype)   # (Bt*Skv, Din)

    # ---- attention per (batch, head); softmax math stays f32 ---------------
    # TODO(synk): for long Skv, add a KV grid axis with flash-style online-
    # softmax accumulators instead of materializing the full (Sq, Skv) scores.
    # TODO(synk): for large num_heads, switch the static unroll to lax.fori_loop
    # so q/k/v and per-head temporaries are not all simultaneously live.
    for b in range(batch_block):
        qb = q[b * seq_q:(b + 1) * seq_q, :]
        kb = k[b * seq_kv:(b + 1) * seq_kv, :]
        vb = v[b * seq_kv:(b + 1) * seq_kv, :]
        mb = bias_ref[b].astype(jnp.float32) if bias_ref is not None else None
        for h in range(num_heads):
            lo = h * head_dim
            # NOTE: these lane slices are sub-128 when head_dim < 128 (relayout
            # cost); they are free when head_dim is a multiple of 128.
            qh = qb[:, lo:lo + head_dim]
            kh = kb[:, lo:lo + head_dim]
            # Scores: contract last axis of both operands (no explicit .T).
            s = lax.dot_general(qh, kh, (((1,), (1,)), ((), ())),
                                preferred_element_type=jnp.float32)    # (Sq, Skv)
            if mb is not None:
                s = s + mb
            # Numerically-stable softmax in f32; divide via EUP reciprocal.
            s = s - jnp.max(s, axis=-1, keepdims=True)
            p = jnp.exp(s)
            p = p * pl.reciprocal(jnp.sum(p, axis=-1, keepdims=True), approx=True)
            # TODO(synk): attention-prob dropout (p=0.1) is identity in eval mode.
            ctx_h = jnp.dot(p.astype(mm_dtype), vb[:, lo:lo + head_dim],
                            preferred_element_type=jnp.float32)        # (Sq, Dh)
            ctx_ref[b * seq_q:(b + 1) * seq_q, lo:lo + head_dim] = \
                ctx_h.astype(ctx_ref.dtype)

    # ---- single output projection: ONE matmul with K = Din -----------------
    out = jnp.dot(ctx_ref[...], wo_ref[...],
                  preferred_element_type=jnp.float32)                  # (Bt*Sq, Dp)
    out = out + bo_ref[...].astype(jnp.float32)
    out_ref[...] = out.astype(out_ref.dtype)                           # lane-dense vst


# --------------------------------------------------------------------------- #
# One-time parameter preparation (cache and reuse across forwards)
# --------------------------------------------------------------------------- #
def prepare_cross_attention_params(params, *, num_heads, head_dim, param_dtype=None):
    """Transpose to (in, out), fold the 1/sqrt(d) scale into Wq, and zero-pad
    Wo / bias to a lane-dense output width.  Call once; reuse the result."""
    wq, wk, wv, wo, bo = params
    din = num_heads * head_dim
    dq = wo.shape[0]
    if param_dtype is None:
        param_dtype = wq.dtype
    scale = float(head_dim) ** -0.5
    d_pad = max(LANE, ((dq + LANE - 1) // LANE) * LANE)

    wq_t = (wq.astype(jnp.float32) * scale).T.astype(param_dtype)       # (Dq,  Din)
    wk_t = wk.T.astype(param_dtype)                                     # (Dkv, Din)
    wv_t = wv.T.astype(param_dtype)                                     # (Dkv, Din)
    wo_t = (jnp.zeros((din, d_pad), jnp.float32)
            .at[:, :dq].set(wo.T.astype(jnp.float32)).astype(param_dtype))  # (Din, Dp)
    bo_p = jnp.zeros((1, d_pad), jnp.float32).at[0, :dq].set(bo.astype(jnp.float32))
    return (wq_t, wk_t, wv_t, wo_t, bo_p, d_pad)


def _pick_batch_block(B, Sq, Skv, Dq, Dkv, Din):
    """All batches in one grid step unless the work is large enough that
    splitting into two 'parallel' steps (v7x: one per TensorCore) pays off."""
    if B <= 1:
        return max(B, 1)
    flops_per_batch = 2.0 * (Sq * Dq * Din + 2.0 * Skv * Dkv * Din
                             + 2.0 * Sq * Skv * Din + Sq * Din * Dq)
    half = (B + 1) // 2
    if (flops_per_batch * half > 1.0e8           # per-step compute >> ~0.35us overhead
            and (half * Sq) % SUBLANE == 0       # blocks stay (8,128)-tileable
            and (half * Skv) % SUBLANE == 0):
        return half
    return B


# --------------------------------------------------------------------------- #
# Wrapper
# --------------------------------------------------------------------------- #
def cross_attention_pallas(query, key_value, prepared, *, num_heads, head_dim,
                           mask=None, batch_block=None):
    wq_t, wk_t, wv_t, wo_t, bo_p, d_pad = prepared
    B, Sq, Dq = query.shape
    _, Skv, Dkv = key_value.shape
    Din = num_heads * head_dim
    compute_dtype = wq_t.dtype
    out_dtype = query.dtype
    with_mask = mask is not None

    if batch_block is None:
        batch_block = _pick_batch_block(B, Sq, Skv, Dq, Dkv, Din)
    bt = max(1, min(batch_block, B))
    nblk = pl.cdiv(B, bt)
    Bp = nblk * bt

    # Pad batch (rare) so it divides evenly into batch blocks.
    if Bp != B:
        query = jnp.concatenate(
            [query, jnp.zeros((Bp - B, Sq, Dq), query.dtype)], axis=0)
        key_value = jnp.concatenate(
            [key_value, jnp.zeros((Bp - B, Skv, Dkv), key_value.dtype)], axis=0)

    # Fold the batch axis into the row (sublane) dim — free, contiguous reshape.
    q2 = query.reshape(Bp * Sq, Dq).astype(compute_dtype)
    kv2 = key_value.reshape(Bp * Skv, Dkv).astype(compute_dtype)

    inputs = [q2, kv2]
    if with_mask:
        # PyTorch: a 3-D mask (B, Sq, Skv) broadcasts over heads.  Compact bf16
        # additive bias (-1e9 where masked).  If the mask is static per call
        # site, precompute this once and pass the bias directly.
        mbias = jnp.where(mask.reshape(B, Sq, Skv) == 0,
                          jnp.float32(-1e9), jnp.float32(0.0)).astype(jnp.bfloat16)
        if Bp != B:
            mbias = jnp.concatenate(
                [mbias, jnp.zeros((Bp - B, Sq, Skv), mbias.dtype)], axis=0)
        inputs.append(mbias)
        # TODO(synk): per-head (4-D) masks are not supported by this kernel.
    inputs += [wq_t, wk_t, wv_t, wo_t, bo_p]

    kernel = functools.partial(_cross_attn_kernel, num_heads=num_heads,
                               head_dim=head_dim, with_mask=with_mask,
                               batch_block=bt, seq_q=Sq, seq_kv=Skv)

    # Explicit VMEM budget (v7x has only 64 MiB physical / 32 MiB default scoped).
    isz = jnp.dtype(compute_dtype).itemsize
    vmem_need = (
        2 * isz * (bt * Sq * Dq + bt * Skv * Dkv + bt * Sq * d_pad)         # act blocks (x2 buf)
        + (4 * bt * Sq * Skv if with_mask else 0)                           # bf16 bias (x2 buf)
        + 2 * isz * (Dq * Din + 2 * Dkv * Din + Din * d_pad + d_pad)        # weights (worst case x2)
        + isz * bt * Sq * Din                                               # ctx scratch
        + 8 * (bt * (Sq + 2 * Skv) * Din + Sq * Skv + bt * Sq * d_pad)      # f32 intermediates, 2x margin
    )
    vmem_limit = int(min(max(2 * vmem_need, 32 * 1024 * 1024), 64 * 1024 * 1024))

    def build(use_buffered_consts):
        def const_spec(shape):
            idx_map = lambda i, _s=shape: tuple(0 for _ in _s)
            if use_buffered_consts:
                # Constant blocks (index_map always (0,..)) don't need double
                # buffering — halves their VMEM residency.
                return pl.BlockSpec(shape, idx_map, pipeline_mode=pl.Buffered(1))
            return pl.BlockSpec(shape, idx_map)

        in_specs = [
            pl.BlockSpec((bt * Sq, Dq), lambda i: (i, 0)),
            pl.BlockSpec((bt * Skv, Dkv), lambda i: (i, 0)),
        ]
        if with_mask:
            in_specs.append(pl.BlockSpec((bt, Sq, Skv), lambda i: (i, 0, 0)))
        in_specs += [
            const_spec((Dq, Din)),
            const_spec((Dkv, Din)),
            const_spec((Dkv, Din)),
            const_spec((Din, d_pad)),
            const_spec((1, d_pad)),
        ]
        return pl.pallas_call(
            kernel,
            out_shape=jax.ShapeDtypeStruct((Bp * Sq, d_pad), out_dtype),
            grid=(nblk,),
            in_specs=in_specs,
            out_specs=pl.BlockSpec((bt * Sq, d_pad), lambda i: (i, 0)),
            scratch_shapes=[pltpu.VMEM((bt * Sq, Din), compute_dtype)],
            compiler_params=pltpu.CompilerParams(
                dimension_semantics=("parallel",),   # batch blocks across v7x's 2 TCs
                vmem_limit_bytes=vmem_limit,
            ),
        )

    try:
        out_pad = build(True)(*inputs)
    except Exception:
        # pipeline_mode=pl.Buffered may be unavailable on this JAX version.
        out_pad = build(False)(*inputs)

    return out_pad.reshape(Bp, Sq, d_pad)[:B, :, :Dq]


# --------------------------------------------------------------------------- #
# Pure-JAX reference (mirrors the PyTorch forward in eval mode)
# --------------------------------------------------------------------------- #
def cross_attention_ref(query, key_value, params, *, num_heads, head_dim, mask=None):
    wq, wk, wv, wo, bo = params
    B, Sq, _ = query.shape
    _, Skv, _ = key_value.shape
    q = (query @ wq.T).reshape(B, Sq, num_heads, head_dim).transpose(0, 2, 1, 3)
    k = (key_value @ wk.T).reshape(B, Skv, num_heads, head_dim).transpose(0, 2, 1, 3)
    v = (key_value @ wv.T).reshape(B, Skv, num_heads, head_dim).transpose(0, 2, 1, 3)
    s = jnp.einsum('bhqd,bhkd->bhqk', q, k) * (float(head_dim) ** -0.5)
    if mask is not None:
        s = jnp.where(mask[:, None, :, :] == 0, -1e9, s)
    p = jax.nn.softmax(s, axis=-1)
    ctx = (jnp.einsum('bhqk,bhkd->bhqd', p, v)
           .transpose(0, 2, 1, 3).reshape(B, Sq, num_heads * head_dim))
    return ctx @ wo.T + bo


if __name__ == "__main__":
    B, Sq, Skv = 2, 8, 10
    query_dim, key_value_dim = 32, 24
    num_heads, head_dim = 4, 8
    Din = num_heads * head_dim

    key = jax.random.PRNGKey(0)
    kq, kkv, k1, k2, k3, k4, k5, km = jax.random.split(key, 8)

    query = jax.random.normal(kq, (B, Sq, query_dim), dtype=jnp.float32)
    key_value = jax.random.normal(kkv, (B, Skv, key_value_dim), dtype=jnp.float32)

    # Deterministic synthetic parameters (PyTorch Linear weight shape: (out, in)).
    wq = 0.05 * jax.random.normal(k1, (Din, query_dim), dtype=jnp.float32)
    wk = 0.05 * jax.random.normal(k2, (Din, key_value_dim), dtype=jnp.float32)
    wv = 0.05 * jax.random.normal(k3, (Din, key_value_dim), dtype=jnp.float32)
    wo = 0.05 * jax.random.normal(k4, (query_dim, Din), dtype=jnp.float32)
    bo = 0.05 * jax.random.normal(k5, (query_dim,), dtype=jnp.float32)
    params = (wq, wk, wv, wo, bo)

    # One-time weight preparation (cached / reused across forwards).
    prepared = prepare_cross_attention_params(params, num_heads=num_heads,
                                              head_dim=head_dim)

    # --- no-mask path ---
    out = cross_attention_pallas(query, key_value, prepared,
                                 num_heads=num_heads, head_dim=head_dim)
    out = jax.block_until_ready(out)
    ref = cross_attention_ref(query, key_value, params,
                              num_heads=num_heads, head_dim=head_dim)
    assert out.shape == (B, Sq, query_dim)
    assert jnp.allclose(out, ref, rtol=2e-3, atol=2e-3), "mismatch (no mask)"

    # --- masked path (3-D mask, broadcast over heads) ---
    mask = (jax.random.uniform(km, (B, Sq, Skv)) > 0.3).astype(jnp.int32)
    mask = mask.at[:, :, 0].set(1)   # keep at least one visible key per query row
    out_m = cross_attention_pallas(query, key_value, prepared,
                                   num_heads=num_heads, head_dim=head_dim, mask=mask)
    out_m = jax.block_until_ready(out_m)
    ref_m = cross_attention_ref(query, key_value, params,
                                num_heads=num_heads, head_dim=head_dim, mask=mask)
    assert jnp.allclose(out_m, ref_m, rtol=2e-3, atol=2e-3), "mismatch (masked)"

    print("KERNEL_OK")
</pallas_src>

<mosaic_0001>
module attributes {stable_mosaic.version = 11 : i64} {
  func.func @_cross_attn_kernel(%arg0: i32, %arg1: memref<16x32xf32, #tpu.memory_space<vmem>>, %arg2: memref<20x24xf32, #tpu.memory_space<vmem>>, %arg3: memref<32x32xf32, #tpu.memory_space<vmem>>, %arg4: memref<24x32xf32, #tpu.memory_space<vmem>>, %arg5: memref<24x32xf32, #tpu.memory_space<vmem>>, %arg6: memref<32x128xf32, #tpu.memory_space<vmem>>, %arg7: memref<1x128xf32, #tpu.memory_space<vmem>>, %arg8: memref<16x128xf32, #tpu.memory_space<vmem>>, %arg9: memref<16x32xf32, #tpu.memory_space<vmem>>) attributes {dimension_semantics = [#tpu.dimension_semantics<parallel>], iteration_bounds = array<i64: 1>, scalar_prefetch = 0 : i64, scratch_operands = 1 : i64, tpu.core_type = #tpu.core_type<tc>, window_params = [{transform_indices = @transform_0, window_bounds = array<i64: 16, 32>}, {transform_indices = @transform_1, window_bounds = array<i64: 20, 24>}, {pipeline_mode = #tpu.pipeline_mode<synchronous>, transform_indices = @transform_2, window_bounds = array<i64: 32, 32>}, {pipeline_mode = #tpu.pipeline_mode<synchronous>, transform_indices = @transform_3, window_bounds = array<i64: 24, 32>}, {pipeline_mode = #tpu.pipeline_mode<synchronous>, transform_indices = @transform_4, window_bounds = array<i64: 24, 32>}, {pipeline_mode = #tpu.pipeline_mode<synchronous>, transform_indices = @transform_5, window_bounds = array<i64: 32, 128>}, {pipeline_mode = #tpu.pipeline_mode<synchronous>, transform_indices = @transform_6, window_bounds = array<i64: 1, 128>}, {transform_indices = @transform_7, window_bounds = array<i64: 16, 128>}]} {
    %c0 = arith.constant 0 : index
    %c0_0 = arith.constant 0 : index
    %0 = vector.load %arg1[%c0, %c0_0] : memref<16x32xf32, #tpu.memory_space<vmem>>, vector<16x32xf32>
    %c0_1 = arith.constant 0 : index
    %c0_2 = arith.constant 0 : index
    %1 = vector.load %arg3[%c0_1, %c0_2] : memref<32x32xf32, #tpu.memory_space<vmem>>, vector<32x32xf32>
    %cst = arith.constant dense<0.000000e+00> : vector<16x32xf32>
    %2 = tpu.matmul %0, %1, %cst {dimension_numbers = #tpu.dot_dimension_numbers<[1], [0], [0], [1], [0, 0, 1, 1], [], []>} : vector<16x32xf32>, vector<32x32xf32>, vector<16x32xf32> -> vector<16x32xf32>
    %c0_3 = arith.constant 0 : index
    %c0_4 = arith.constant 0 : index
    %3 = vector.load %arg2[%c0_3, %c0_4] : memref<20x24xf32, #tpu.memory_space<vmem>>, vector<20x24xf32>
    %c0_5 = arith.constant 0 : index
    %c0_6 = arith.constant 0 : index
    %4 = vector.load %arg4[%c0_5, %c0_6] : memref<24x32xf32, #tpu.memory_space<vmem>>, vector<24x32xf32>
    %cst_7 = arith.constant dense<0.000000e+00> : vector<20x32xf32>
    %5 = tpu.matmul %3, %4, %cst_7 {dimension_numbers = #tpu.dot_dimension_numbers<[1], [0], [0], [1], [0, 0, 1, 1], [], []>} : vector<20x24xf32>, vector<24x32xf32>, vector<20x32xf32> -> vector<20x32xf32>
    %c0_8 = arith.constant 0 : index
    %c0_9 = arith.constant 0 : index
    %6 = vector.load %arg2[%c0_8, %c0_9] : memref<20x24xf32, #tpu.memory_space<vmem>>, vector<20x24xf32>
    %c0_10 = arith.constant 0 : index
    %c0_11 = arith.constant 0 : index
    %7 = vector.load %arg5[%c0_10, %c0_11] : memref<24x32xf32, #tpu.memory_space<vmem>>, vector<24x32xf32>
    %cst_12 = arith.constant dense<0.000000e+00> : vector<20x32xf32>
    %8 = tpu.matmul %6, %7, %cst_12 {dimension_numbers = #tpu.dot_dimension_numbers<[1], [0], [0], [1], [0, 0, 1, 1], [], []>} : vector<20x24xf32>, vector<24x32xf32>, vector<20x32xf32> -> vector<20x32xf32>
    %9 = vector.extract_strided_slice %2 {offsets = [0, 0], sizes = [8, 32], strides = [1, 1]} : vector<16x32xf32> to vector<8x32xf32>
    %10 = vector.extract_strided_slice %5 {offsets = [0, 0], sizes = [10, 32], strides = [1, 1]} : vector<20x32xf32> to vector<10x32xf32>
    %11 = vector.extract_strided_slice %8 {offsets = [0, 0], sizes = [10, 32], strides = [1, 1]} : vector<20x32xf32> to vector<10x32xf32>
    %12 = vector.extract_strided_slice %9 {offsets = [0, 0], sizes = [8, 8], strides = [1, 1]} : vector<8x32xf32> to vector<8x8xf32>
    %13 = vector.extract_strided_slice %10 {offsets = [0, 0], sizes = [10, 8], strides = [1, 1]} : vector<10x32xf32> to vector<10x8xf32>
    %cst_13 = arith.constant dense<0.000000e+00> : vector<8x10xf32>
    %14 = tpu.matmul %12, %13, %cst_13 {dimension_numbers = #tpu.dot_dimension_numbers<[1], [1], [0], [0], [0, 0, 1, 0], [], []>} : vector<8x8xf32>, vector<10x8xf32>, vector<8x10xf32> -> vector<8x10xf32>
    %cst_14 = arith.constant dense<0xFF800000> : vector<8xf32>
    %15 = vector.multi_reduction <maximumf>, %14, %cst_14 [1] : vector<8x10xf32> to vector<8xf32>
    %16 = vector.shape_cast %15 : vector<8xf32> to vector<8x1xf32>
    %17 = vector.broadcast %16 : vector<8x1xf32> to vector<8x10xf32>
    %18 = arith.subf %14, %17 : vector<8x10xf32>
    %19 = math.exp %18 : vector<8x10xf32>
    %cst_15 = arith.constant dense<0.000000e+00> : vector<8xf32>
    %20 = vector.multi_reduction <add>, %19, %cst_15 [1] : vector<8x10xf32> to vector<8xf32>
    %21 = vector.shape_cast %20 : vector<8xf32> to vector<8x1xf32>
    %22 = tpu.reciprocal %21 {approx = true} : vector<8x1xf32> -> vector<8x1xf32>
    %23 = vector.broadcast %22 : vector<8x1xf32> to vector<8x10xf32>
    %24 = arith.mulf %19, %23 : vector<8x10xf32>
    %25 = vector.extract_strided_slice %11 {offsets = [0, 0], sizes = [10, 8], strides = [1, 1]} : vector<10x32xf32> to vector<10x8xf32>
    %cst_16 = arith.constant dense<0.000000e+00> : vector<8x8xf32>
    %26 = tpu.matmul %24, %25, %cst_16 {dimension_numbers = #tpu.dot_dimension_numbers<[1], [0], [0], [1], [0, 0, 1, 1], [], []>} : vector<8x10xf32>, vector<10x8xf32>, vector<8x8xf32> -> vector<8x8xf32>
    %c0_17 = arith.constant 0 : index
    %c0_18 = arith.constant 0 : index
    %27 = vector.load %arg9[%c0_17, %c0_18] : memref<16x32xf32, #tpu.memory_space<vmem>>, vector<8x8xf32>
    tpu.vector_store %arg9[%c0_17, %c0_18], %26 {strides = array<i32>} : memref<16x32xf32, #tpu.memory_space<vmem>>, vector<8x8xf32>,
    %28 = vector.extract_strided_slice %9 {offsets = [0, 8], sizes = [8, 8], strides = [1, 1]} : vector<8x32xf32> to vector<8x8xf32>
    %29 = vector.extract_strided_slice %10 {offsets = [0, 8], sizes = [10, 8], strides = [1, 1]} : vector<10x32xf32> to vector<10x8xf32>
    %cst_19 = arith.constant dense<0.000000e+00> : vector<8x10xf32>
    %30 = tpu.matmul %28, %29, %cst_19 {dimension_numbers = #tpu.dot_dimension_numbers<[1], [1], [0], [0], [0, 0, 1, 0], [], []>} : vector<8x8xf32>, vector<10x8xf32>, vector<8x10xf32> -> vector<8x10xf32>
    %cst_20 = arith.constant dense<0xFF800000> : vector<8xf32>
    %31 = vector.multi_reduction <maximumf>, %30, %cst_20 [1] : vector<8x10xf32> to vector<8xf32>
    %32 = vector.shape_cast %31 : vector<8xf32> to vector<8x1xf32>
    %33 = vector.broadcast %32 : vector<8x1xf32> to vector<8x10xf32>
    %34 = arith.subf %30, %33 : vector<8x10xf32>
    %35 = math.exp %34 : vector<8x10xf32>
    %cst_21 = arith.constant dense<0.000000e+00> : vector<8xf32>
    %36 = vector.multi_reduction <add>, %35, %cst_21 [1] : vector<8x10xf32> to vector<8xf32>
    %37 = vector.shape_cast %36 : vector<8xf32> to vector<8x1xf32>
    %38 = tpu.reciprocal %37 {approx = true} : vector<8x1xf32> -> vector<8x1xf32>
    %39 = vector.broadcast %38 : vector<8x1xf32> to vector<8x10xf32>
    %40 = arith.mulf %35, %39 : vector<8x10xf32>
    %41 = vector.extract_strided_slice %11 {offsets = [0, 8], sizes = [10, 8], strides = [1, 1]} : vector<10x32xf32> to vector<10x8xf32>
    %cst_22 = arith.constant dense<0.000000e+00> : vector<8x8xf32>
    %42 = tpu.matmul %40, %41, %cst_22 {dimension_numbers = #tpu.dot_dimension_numbers<[1], [0], [0], [1], [0, 0, 1, 1], [], []>} : vector<8x10xf32>, vector<10x8xf32>, vector<8x8xf32> -> vector<8x8xf32>
    %c0_23 = arith.constant 0 : index
    %c8 = arith.constant 8 : index
    %43 = vector.load %arg9[%c0_23, %c8] : memref<16x32xf32, #tpu.memory_space<vmem>>, vector<8x8xf32>
    tpu.vector_store %arg9[%c0_23, %c8], %42 {strides = array<i32>} : memref<16x32xf32, #tpu.memory_space<vmem>>, vector<8x8xf32>,
    %44 = vector.extract_strided_slice %9 {offsets = [0, 16], sizes = [8, 8], strides = [1, 1]} : vector<8x32xf32> to vector<8x8xf32>
    %45 = vector.extract_strided_slice %10 {offsets = [0, 16], sizes = [10, 8], strides = [1, 1]} : vector<10x32xf32> to vector<10x8xf32>
    %cst_24 = arith.constant dense<0.000000e+00> : vector<8x10xf32>
    %46 = tpu.matmul %44, %45, %cst_24 {dimension_numbers = #tpu.dot_dimension_numbers<[1], [1], [0], [0], [0, 0, 1, 0], [], []>} : vector<8x8xf32>, vector<10x8xf32>, vector<8x10xf32> -> vector<8x10xf32>
    %cst_25 = arith.constant dense<0xFF800000> : vector<8xf32>
    %47 = vector.multi_reduction <maximumf>, %46, %cst_25 [1] : vector<8x10xf32> to vector<8xf32>
    %48 = vector.shape_cast %47 : vector<8xf32> to vector<8x1xf32>
    %49 = vector.broadcast %48 : vector<8x1xf32> to vector<8x10xf32>
    %50 = arith.subf %46, %49 : vector<8x10xf32>
    %51 = math.exp %50 : vector<8x10xf32>
    %cst_26 = arith.constant dense<0.000000e+00> : vector<8xf32>
    %52 = vector.multi_reduction <add>, %51, %cst_26 [1] : vector<8x10xf32> to vector<8xf32>
    %53 = vector.shape_cast %52 : vector<8xf32> to vector<8x1xf32>
    %54 = tpu.reciprocal %53 {approx = true} : vector<8x1xf32> -> vector<8x1xf32>
    %55 = vector.broadcast %54 : vector<8x1xf32> to vector<8x10xf32>
    %56 = arith.mulf %51, %55 : vector<8x10xf32>
    %57 = vector.extract_strided_slice %11 {offsets = [0, 16], sizes = [10, 8], strides = [1, 1]} : vector<10x32xf32> to vector<10x8xf32>
    %cst_27 = arith.constant dense<0.000000e+00> : vector<8x8xf32>
    %58 = tpu.matmul %56, %57, %cst_27 {dimension_numbers = #tpu.dot_dimension_numbers<[1], [0], [0], [1], [0, 0, 1, 1], [], []>} : vector<8x10xf32>, vector<10x8xf32>, vector<8x8xf32> -> vector<8x8xf32>
    %c0_28 = arith.constant 0 : index
    %c16 = arith.constant 16 : index
    %59 = vector.load %arg9[%c0_28, %c16] : memref<16x32xf32, #tpu.memory_space<vmem>>, vector<8x8xf32>
    tpu.vector_store %arg9[%c0_28, %c16], %58 {strides = array<i32>} : memref<16x32xf32, #tpu.memory_space<vmem>>, vector<8x8xf32>,
    %60 = vector.extract_strided_slice %9 {offsets = [0, 24], sizes = [8, 8], strides = [1, 1]} : vector<8x32xf32> to vector<8x8xf32>
    %61 = vector.extract_strided_slice %10 {offsets = [0, 24], sizes = [10, 8], strides = [1, 1]} : vector<10x32xf32> to vector<10x8xf32>
    %cst_29 = arith.constant dense<0.000000e+00> : vector<8x10xf32>
    %62 = tpu.matmul %60, %61, %cst_29 {dimension_numbers = #tpu.dot_dimension_numbers<[1], [1], [0], [0], [0, 0, 1, 0], [], []>} : vector<8x8xf32>, vector<10x8xf32>, vector<8x10xf32> -> vector<8x10xf32>
    %cst_30 = arith.constant dense<0xFF800000> : vector<8xf32>
    %63 = vector.multi_reduction <maximumf>, %62, %cst_30 [1] : vector<8x10xf32> to vector<8xf32>
    %64 = vector.shape_cast %63 : vector<8xf32> to vector<8x1xf32>
    %65 = vector.broadcast %64 : vector<8x1xf32> to vector<8x10xf32>
    %66 = arith.subf %62, %65 : vector<8x10xf32>
    %67 = math.exp %66 : vector<8x10xf32>
    %cst_31 = arith.constant dense<0.000000e+00> : vector<8xf32>
    %68 = vector.multi_reduction <add>, %67, %cst_31 [1] : vector<8x10xf32> to vector<8xf32>
    %69 = vector.shape_cast %68 : vector<8xf32> to vector<8x1xf32>
    %70 = tpu.reciprocal %69 {approx = true} : vector<8x1xf32> -> vector<8x1xf32>
    %71 = vector.broadcast %70 : vector<8x1xf32> to vector<8x10xf32>
    %72 = arith.mulf %67, %71 : vector<8x10xf32>
    %73 = vector.extract_strided_slice %11 {offsets = [0, 24], sizes = [10, 8], strides = [1, 1]} : vector<10x32xf32> to vector<10x8xf32>
    %cst_32 = arith.constant dense<0.000000e+00> : vector<8x8xf32>
    %74 = tpu.matmul %72, %73, %cst_32 {dimension_numbers = #tpu.dot_dimension_numbers<[1], [0], [0], [1], [0, 0, 1, 1], [], []>} : vector<8x10xf32>, vector<10x8xf32>, vector<8x8xf32> -> vector<8x8xf32>
    %c0_33 = arith.constant 0 : index
    %c24 = arith.constant 24 : index
    %75 = vector.load %arg9[%c0_33, %c24] : memref<16x32xf32, #tpu.memory_space<vmem>>, vector<8x8xf32>
    tpu.vector_store %arg9[%c0_33, %c24], %74 {strides = array<i32>} : memref<16x32xf32, #tpu.memory_space<vmem>>, vector<8x8xf32>,
    %76 = vector.extract_strided_slice %2 {offsets = [8, 0], sizes = [8, 32], strides = [1, 1]} : vector<16x32xf32> to vector<8x32xf32>
    %77 = vector.extract_strided_slice %5 {offsets = [10, 0], sizes = [10, 32], strides = [1, 1]} : vector<20x32xf32> to vector<10x32xf32>
    %78 = vector.extract_strided_slice %8 {offsets = [10, 0], sizes = [10, 32], strides = [1, 1]} : vector<20x32xf32> to vector<10x32xf32>
    %79 = vector.extract_strided_slice %76 {offsets = [0, 0], sizes = [8, 8], strides = [1, 1]} : vector<8x32xf32> to vector<8x8xf32>
    %80 = vector.extract_strided_slice %77 {offsets = [0, 0], sizes = [10, 8], strides = [1, 1]} : vector<10x32xf32> to vector<10x8xf32>
    %cst_34 = arith.constant dense<0.000000e+00> : vector<8x10xf32>
    %81 = tpu.matmul %79, %80, %cst_34 {dimension_numbers = #tpu.dot_dimension_numbers<[1], [1], [0], [0], [0, 0, 1, 0], [], []>} : vector<8x8xf32>, vector<10x8xf32>, vector<8x10xf32> -> vector<8x10xf32>
    %cst_35 = arith.constant dense<0xFF800000> : vector<8xf32>
    %82 = vector.multi_reduction <maximumf>, %81, %cst_35 [1] : vector<8x10xf32> to vector<8xf32>
    %83 = vector.shape_cast %82 : vector<8xf32> to vector<8x1xf32>
    %84 = vector.broadcast %83 : vector<8x1xf32> to vector<8x10xf32>
    %85 = arith.subf %81, %84 : vector<8x10xf32>
    %86 = math.exp %85 : vector<8x10xf32>
    %cst_36 = arith.constant dense<0.000000e+00> : vector<8xf32>
    %87 = vector.multi_reduction <add>, %86, %cst_36 [1] : vector<8x10xf32> to vector<8xf32>
    %88 = vector.shape_cast %87 : vector<8xf32> to vector<8x1xf32>
    %89 = tpu.reciprocal %88 {approx = true} : vector<8x1xf32> -> vector<8x1xf32>
    %90 = vector.broadcast %89 : vector<8x1xf32> to vector<8x10xf32>
    %91 = arith.mulf %86, %90 : vector<8x10xf32>
    %92 = vector.extract_strided_slice %78 {offsets = [0, 0], sizes = [10, 8], strides = [1, 1]} : vector<10x32xf32> to vector<10x8xf32>
    %cst_37 = arith.constant dense<0.000000e+00> : vector<8x8xf32>
    %93 = tpu.matmul %91, %92, %cst_37 {dimension_numbers = #tpu.dot_dimension_numbers<[1], [0], [0], [1], [0, 0, 1, 1], [], []>} : vector<8x10xf32>, vector<10x8xf32>, vector<8x8xf32> -> vector<8x8xf32>
    %c8_38 = arith.constant 8 : index
    %c0_39 = arith.constant 0 : index
    %94 = vector.load %arg9[%c8_38, %c0_39] : memref<16x32xf32, #tpu.memory_space<vmem>>, vector<8x8xf32>
    tpu.vector_store %arg9[%c8_38, %c0_39], %93 {strides = array<i32>} : memref<16x32xf32, #tpu.memory_space<vmem>>, vector<8x8xf32>,
    %95 = vector.extract_strided_slice %76 {offsets = [0, 8], sizes = [8, 8], strides = [1, 1]} : vector<8x32xf32> to vector<8x8xf32>
    %96 = vector.extract_strided_slice %77 {offsets = [0, 8], sizes = [10, 8], strides = [1, 1]} : vector<10x32xf32> to vector<10x8xf32>
    %cst_40 = arith.constant dense<0.000000e+00> : vector<8x10xf32>
    %97 = tpu.matmul %95, %96, %cst_40 {dimension_numbers = #tpu.dot_dimension_numbers<[1], [1], [0], [0], [0, 0, 1, 0], [], []>} : vector<8x8xf32>, vector<10x8xf32>, vector<8x10xf32> -> vector<8x10xf32>
    %cst_41 = arith.constant dense<0xFF800000> : vector<8xf32>
    %98 = vector.multi_reduction <maximumf>, %97, %cst_41 [1] : vector<8x10xf32> to vector<8xf32>
    %99 = vector.shape_cast %98 : vector<8xf32> to vector<8x1xf32>
    %100 = vector.broadcast %99 : vector<8x1xf32> to vector<8x10xf32>
    %101 = arith.subf %97, %100 : vector<8x10xf32>
    %102 = math.exp %101 : vector<8x10xf32>
    %cst_42 = arith.constant dense<0.000000e+00> : vector<8xf32>
    %103 = vector.multi_reduction <add>, %102, %cst_42 [1] : vector<8x10xf32> to vector<8xf32>
    %104 = vector.shape_cast %103 : vector<8xf32> to vector<8x1xf32>
    %105 = tpu.reciprocal %104 {approx = true} : vector<8x1xf32> -> vector<8x1xf32>
    %106 = vector.broadcast %105 : vector<8x1xf32> to vector<8x10xf32>
    %107 = arith.mulf %102, %106 : vector<8x10xf32>
    %108 = vector.extract_strided_slice %78 {offsets = [0, 8], sizes = [10, 8], strides = [1, 1]} : vector<10x32xf32> to vector<10x8xf32>
    %cst_43 = arith.constant dense<0.000000e+00> : vector<8x8xf32>
    %109 = tpu.matmul %107, %108, %cst_43 {dimension_numbers = #tpu.dot_dimension_numbers<[1], [0], [0], [1], [0, 0, 1, 1], [], []>} : vector<8x10xf32>, vector<10x8xf32>, vector<8x8xf32> -> vector<8x8xf32>
    %c8_44 = arith.constant 8 : index
    %c8_45 = arith.constant 8 : index
    %110 = vector.load %arg9[%c8_44, %c8_45] : memref<16x32xf32, #tpu.memory_space<vmem>>, vector<8x8xf32>
    tpu.vector_store %arg9[%c8_44, %c8_45], %109 {strides = array<i32>} : memref<16x32xf32, #tpu.memory_space<vmem>>, vector<8x8xf32>,
    %111 = vector.extract_strided_slice %76 {offsets = [0, 16], sizes = [8, 8], strides = [1, 1]} : vector<8x32xf32> to vector<8x8xf32>
    %112 = vector.extract_strided_slice %77 {offsets = [0, 16], sizes = [10, 8], strides = [1, 1]} : vector<10x32xf32> to vector<10x8xf32>
    %cst_46 = arith.constant dense<0.000000e+00> : vector<8x10xf32>
    %113 = tpu.matmul %111, %112, %cst_46 {dimension_numbers = #tpu.dot_dimension_numbers<[1], [1], [0], [0], [0, 0, 1, 0], [], []>} : vector<8x8xf32>, vector<10x8xf32>, vector<8x10xf32> -> vector<8x10xf32>
    %cst_47 = arith.constant dense<0xFF800000> : vector<8xf32>
    %114 = vector.multi_reduction <maximumf>, %113, %cst_47 [1] : vector<8x10xf32> to vector<8xf32>
    %115 = vector.shape_cast %114 : vector<8xf32> to vector<8x1xf32>
    %116 = vector.broadcast %115 : vector<8x1xf32> to vector<8x10xf32>
    %117 = arith.subf %113, %116 : vector<8x10xf32>
    %118 = math.exp %117 : vector<8x10xf32>
    %cst_48 = arith.constant dense<0.000000e+00> : vector<8xf32>
    %119 = vector.multi_reduction <add>, %118, %cst_48 [1] : vector<8x10xf32> to vector<8xf32>
    %120 = vector.shape_cast %119 : vector<8xf32> to vector<8x1xf32>
    %121 = tpu.reciprocal %120 {approx = true} : vector<8x1xf32> -> vector<8x1xf32>
    %122 = vector.broadcast %121 : vector<8x1xf32> to vector<8x10xf32>
    %123 = arith.mulf %118, %122 : vector<8x10xf32>
    %124 = vector.extract_strided_slice %78 {offsets = [0, 16], sizes = [10, 8], strides = [1, 1]} : vector<10x32xf32> to vector<10x8xf32>
    %cst_49 = arith.constant dense<0.000000e+00> : vector<8x8xf32>
    %125 = tpu.matmul %123, %124, %cst_49 {dimension_numbers = #tpu.dot_dimension_numbers<[1], [0], [0], [1], [0, 0, 1, 1], [], []>} : vector<8x10xf32>, vector<10x8xf32>, vector<8x8xf32> -> vector<8x8xf32>
    %c8_50 = arith.constant 8 : index
    %c16_51 = arith.constant 16 : index
    %126 = vector.load %arg9[%c8_50, %c16_51] : memref<16x32xf32, #tpu.memory_space<vmem>>, vector<8x8xf32>
    tpu.vector_store %arg9[%c8_50, %c16_51], %125 {strides = array<i32>} : memref<16x32xf32, #tpu.memory_space<vmem>>, vector<8x8xf32>,
    %127 = vector.extract_strided_slice %76 {offsets = [0, 24], sizes = [8, 8], strides = [1, 1]} : vector<8x32xf32> to vector<8x8xf32>
    %128 = vector.extract_strided_slice %77 {offsets = [0, 24], sizes = [10, 8], strides = [1, 1]} : vector<10x32xf32> to vector<10x8xf32>
    %cst_52 = arith.constant dense<0.000000e+00> : vector<8x10xf32>
    %129 = tpu.matmul %127, %128, %cst_52 {dimension_numbers = #tpu.dot_dimension_numbers<[1], [1], [0], [0], [0, 0, 1, 0], [], []>} : vector<8x8xf32>, vector<10x8xf32>, vector<8x10xf32> -> vector<8x10xf32>
    %cst_53 = arith.constant dense<0xFF800000> : vector<8xf32>
    %130 = vector.multi_reduction <maximumf>, %129, %cst_53 [1] : vector<8x10xf32> to vector<8xf32>
    %131 = vector.shape_cast %130 : vector<8xf32> to vector<8x1xf32>
    %132 = vector.broadcast %131 : vector<8x1xf32> to vector<8x10xf32>
    %133 = arith.subf %129, %132 : vector<8x10xf32>
    %134 = math.exp %133 : vector<8x10xf32>
    %cst_54 = arith.constant dense<0.000000e+00> : vector<8xf32>
    %135 = vector.multi_reduction <add>, %134, %cst_54 [1] : vector<8x10xf32> to vector<8xf32>
    %136 = vector.shape_cast %135 : vector<8xf32> to vector<8x1xf32>
    %137 = tpu.reciprocal %136 {approx = true} : vector<8x1xf32> -> vector<8x1xf32>
    %138 = vector.broadcast %137 : vector<8x1xf32> to vector<8x10xf32>
    %139 = arith.mulf %134, %138 : vector<8x10xf32>
    %140 = vector.extract_strided_slice %78 {offsets = [0, 24], sizes = [10, 8], strides = [1, 1]} : vector<10x32xf32> to vector<10x8xf32>
    %cst_55 = arith.constant dense<0.000000e+00> : vector<8x8xf32>
    %141 = tpu.matmul %139, %140, %cst_55 {dimension_numbers = #tpu.dot_dimension_numbers<[1], [0], [0], [1], [0, 0, 1, 1], [], []>} : vector<8x10xf32>, vector<10x8xf32>, vector<8x8xf32> -> vector<8x8xf32>
    %c8_56 = arith.constant 8 : index
    %c24_57 = arith.constant 24 : index
    %142 = vector.load %arg9[%c8_56, %c24_57] : memref<16x32xf32, #tpu.memory_space<vmem>>, vector<8x8xf32>
    tpu.vector_store %arg9[%c8_56, %c24_57], %141 {strides = array<i32>} : memref<16x32xf32, #tpu.memory_space<vmem>>, vector<8x8xf32>,
    %c0_58 = arith.constant 0 : index
    %c0_59 = arith.constant 0 : index
    %143 = vector.load %arg9[%c0_58, %c0_59] : memref<16x32xf32, #tpu.memory_space<vmem>>, vector<16x32xf32>
    %c0_60 = arith.constant 0 : index
    %c0_61 = arith.constant 0 : index
    %144 = vector.load %arg6[%c0_60, %c0_61] : memref<32x128xf32, #tpu.memory_space<vmem>>, vector<32x128xf32>
    %cst_62 = arith.constant dense<0.000000e+00> : vector<16x128xf32>
    %145 = tpu.matmul %143, %144, %cst_62 {dimension_numbers = #tpu.dot_dimension_numbers<[1], [0], [0], [1], [0, 0, 1, 1], [], []>} : vector<16x32xf32>, vector<32x128xf32>, vector<16x128xf32> -> vector<16x128xf32>
    %c0_63 = arith.constant 0 : index
    %c0_64 = arith.constant 0 : index
    %146 = vector.load %arg7[%c0_63, %c0_64] : memref<1x128xf32, #tpu.memory_space<vmem>>, vector<1x128xf32>
    %147 = vector.broadcast %146 : vector<1x128xf32> to vector<16x128xf32>
    %148 = arith.addf %145, %147 : vector<16x128xf32>
    %c0_65 = arith.constant 0 : index
    %c0_66 = arith.constant 0 : index
    %149 = vector.load %arg8[%c0_65, %c0_66] : memref<16x128xf32, #tpu.memory_space<vmem>>, vector<16x128xf32>
    tpu.vector_store %arg8[%c0_65, %c0_66], %148 {strides = array<i32>} : memref<16x128xf32, #tpu.memory_space<vmem>>, vector<16x128xf32>,
    return
  }
  func.func @transform_0(%arg0: i32) -> (i32, i32) {
    %c0_i32 = arith.constant 0 : i32
    %c0_i32_0 = arith.constant 0 : i32
    return %arg0, %c0_i32 : i32, i32
  }
  func.func @transform_1(%arg0: i32) -> (i32, i32) {
    %c0_i32 = arith.constant 0 : i32
    %c0_i32_0 = arith.constant 0 : i32
    return %arg0, %c0_i32 : i32, i32
  }
  func.func @transform_2(%arg0: i32) -> (i32, i32) {
    %c0_i32 = arith.constant 0 : i32
    %c0_i32_0 = arith.constant 0 : i32
    %c0_i32_1 = arith.constant 0 : i32
    return %c0_i32, %c0_i32_0 : i32, i32
  }
  func.func @transform_3(%arg0: i32) -> (i32, i32) {
    %c0_i32 = arith.constant 0 : i32
    %c0_i32_0 = arith.constant 0 : i32
    %c0_i32_1 = arith.constant 0 : i32
    return %c0_i32, %c0_i32_0 : i32, i32
  }
  func.func @transform_4(%arg0: i32) -> (i32, i32) {
    %c0_i32 = arith.constant 0 : i32
    %c0_i32_0 = arith.constant 0 : i32
    %c0_i32_1 = arith.constant 0 : i32
    return %c0_i32, %c0_i32_0 : i32, i32
  }
  func.func @transform_5(%arg0: i32) -> (i32, i32) {
    %c0_i32 = arith.constant 0 : i32
    %c0_i32_0 = arith.constant 0 : i32
    %c0_i32_1 = arith.constant 0 : i32
    return %c0_i32, %c0_i32_0 : i32, i32
  }
  func.func @transform_6(%arg0: i32) -> (i32, i32) {
    %c0_i32 = arith.constant 0 : i32
    %c0_i32_0 = arith.constant 0 : i32
    %c0_i32_1 = arith.constant 0 : i32
    return %c0_i32, %c0_i32_0 : i32, i32
  }
  func.func @transform_7(%arg0: i32) -> (i32, i32) {
    %c0_i32 = arith.constant 0 : i32
    %c0_i32_0 = arith.constant 0 : i32
    return %arg0, %c0_i32 : i32, i32
  }
}

module attributes {stable_mosaic.version = 11 : i64} {
  func.func @_cross_attn_kernel(%arg0: i32, %arg1: memref<16x32xf32, #tpu.memory_space<vmem>>, %arg2: memref<20x24xf32, #tpu.memory_space<vmem>>, %arg3: memref<32x32xf32, #tpu.memory_space<vmem>>, %arg4: memref<24x32xf32, #tpu.memory_space<vmem>>, %arg5: memref<24x32xf32, #tpu.memory_space<vmem>>, %arg6: memref<32x128xf32, #tpu.memory_space<vmem>>, %arg7: memref<1x128xf32, #tpu.memory_space<vmem>>, %arg8: memref<16x128xf32, #tpu.memory_space<vmem>>, %arg9: memref<16x32xf32, #tpu.memory_space<vmem>>) attributes {dimension_semantics = [#tpu.dimension_semantics<parallel>], iteration_bounds = array<i64: 1>, scalar_prefetch = 0 : i64, scratch_operands = 1 : i64, tpu.core_type = #tpu.core_type<tc>, window_params = [{transform_indices = @transform_0, window_bounds = array<i64: 16, 32>}, {transform_indices = @transform_1, window_bounds = array<i64: 20, 24>}, {pipeline_mode = #tpu.pipeline_mode<synchronous>, transform_indices = @transform_2, window_bounds = array<i64: 32, 32>}, {pipeline_mode = #tpu.pipeline_mode<synchronous>, transform_indices = @transform_3, window_bounds = array<i64: 24, 32>}, {pipeline_mode = #tpu.pipeline_mode<synchronous>, transform_indices = @transform_4, window_bounds = array<i64: 24, 32>}, {pipeline_mode = #tpu.pipeline_mode<synchronous>, transform_indices = @transform_5, window_bounds = array<i64: 32, 128>}, {pipeline_mode = #tpu.pipeline_mode<synchronous>, transform_indices = @transform_6, window_bounds = array<i64: 1, 128>}, {transform_indices = @transform_7, window_bounds = array<i64: 16, 128>}]} {
    %c0 = arith.constant 0 : index
    %c0_0 = arith.constant 0 : index
    %0 = vector.load %arg1[%c0, %c0_0] : memref<16x32xf32, #tpu.memory_space<vmem>>, vector<16x32xf32>
    %c0_1 = arith.constant 0 : index
    %c0_2 = arith.constant 0 : index
    %1 = vector.load %arg3[%c0_1, %c0_2] : memref<32x32xf32, #tpu.memory_space<vmem>>, vector<32x32xf32>
    %cst = arith.constant dense<0.000000e+00> : vector<16x32xf32>
    %2 = tpu.matmul %0, %1, %cst {dimension_numbers = #tpu.dot_dimension_numbers<[1], [0], [0], [1], [0, 0, 1, 1], [], []>} : vector<16x32xf32>, vector<32x32xf32>, vector<16x32xf32> -> vector<16x32xf32>
    %c0_3 = arith.constant 0 : index
    %c0_4 = arith.constant 0 : index
    %3 = vector.load %arg2[%c0_3, %c0_4] : memref<20x24xf32, #tpu.memory_space<vmem>>, vector<20x24xf32>
    %c0_5 = arith.constant 0 : index
    %c0_6 = arith.constant 0 : index
    %4 = vector.load %arg4[%c0_5, %c0_6] : memref<24x32xf32, #tpu.memory_space<vmem>>, vector<24x32xf32>
    %cst_7 = arith.constant dense<0.000000e+00> : vector<20x32xf32>
    %5 = tpu.matmul %3, %4, %cst_7 {dimension_numbers = #tpu.dot_dimension_numbers<[1], [0], [0], [1], [0, 0, 1, 1], [], []>} : vector<20x24xf32>, vector<24x32xf32>, vector<20x32xf32> -> vector<20x32xf32>
    %c0_8 = arith.constant 0 : index
    %c0_9 = arith.constant 0 : index
    %6 = vector.load %arg2[%c0_8, %c0_9] : memref<20x24xf32, #tpu.memory_space<vmem>>, vector<20x24xf32>
    %c0_10 = arith.constant 0 : index
    %c0_11 = arith.constant 0 : index
    %7 = vector.load %arg5[%c0_10, %c0_11] : memref<24x32xf32, #tpu.memory_space<vmem>>, vector<24x32xf32>
    %cst_12 = arith.constant dense<0.000000e+00> : vector<20x32xf32>
    %8 = tpu.matmul %6, %7, %cst_12 {dimension_numbers = #tpu.dot_dimension_numbers<[1], [0], [0], [1], [0, 0, 1, 1], [], []>} : vector<20x24xf32>, vector<24x32xf32>, vector<20x32xf32> -> vector<20x32xf32>
    %9 = vector.extract_strided_slice %2 {offsets = [0, 0], sizes = [8, 32], strides = [1, 1]} : vector<16x32xf32> to vector<8x32xf32>
    %10 = vector.extract_strided_slice %5 {offsets = [0, 0], sizes = [10, 32], strides = [1, 1]} : vector<20x32xf32> to vector<10x32xf32>
    %11 = vector.extract_strided_slice %8 {offsets = [0, 0], sizes = [10, 32], strides = [1, 1]} : vector<20x32xf32> to vector<10x32xf32>
    %12 = vector.extract_strided_slice %9 {offsets = [0, 0], sizes = [8, 8], strides = [1, 1]} : vector<8x32xf32> to vector<8x8xf32>
    %13 = vector.extract_strided_slice %10 {offsets = [0, 0], sizes = [10, 8], strides = [1, 1]} : vector<10x32xf32> to vector<10x8xf32>
    %cst_13 = arith.constant dense<0.000000e+00> : vector<8x10xf32>
    %14 = tpu.matmul %12, %13, %cst_13 {dimension_numbers = #tpu.dot_dimension_numbers<[1], [1], [0], [0], [0, 0, 1, 0], [], []>} : vector<8x8xf32>, vector<10x8xf32>, vector<8x10xf32> -> vector<8x10xf32>
    %cst_14 = arith.constant dense<0xFF800000> : vector<8xf32>
    %15 = vector.multi_reduction <maximumf>, %14, %cst_14 [1] : vector<8x10xf32> to vector<8xf32>
    %16 = vector.shape_cast %15 : vector<8xf32> to vector<8x1xf32>
    %17 = vector.broadcast %16 : vector<8x1xf32> to vector<8x10xf32>
    %18 = arith.subf %14, %17 : vector<8x10xf32>
    %19 = math.exp %18 : vector<8x10xf32>
    %cst_15 = arith.constant dense<0.000000e+00> : vector<8xf32>
    %20 = vector.multi_reduction <add>, %19, %cst_15 [1] : vector<8x10xf32> to vector<8xf32>
    %21 = vector.shape_cast %20 : vector<8xf32> to vector<8x1xf32>
    %22 = tpu.reciprocal %21 {approx = true} : vector<8x1xf32> -> vector<8x1xf32>
    %23 = vector.broadcast %22 : vector<8x1xf32> to vector<8x10xf32>
    %24 = arith.mulf %19, %23 : vector<8x10xf32>
    %25 = vector.extract_strided_slice %11 {offsets = [0, 0], sizes = [10, 8], strides = [1, 1]} : vector<10x32xf32> to vector<10x8xf32>
    %cst_16 = arith.constant dense<0.000000e+00> : vector<8x8xf32>
    %26 = tpu.matmul %24, %25, %cst_16 {dimension_numbers = #tpu.dot_dimension_numbers<[1], [0], [0], [1], [0, 0, 1, 1], [], []>} : vector<8x10xf32>, vector<10x8xf32>, vector<8x8xf32> -> vector<8x8xf32>
    %c0_17 = arith.constant 0 : index
    %c0_18 = arith.constant 0 : index
    %27 = vector.load %arg9[%c0_17, %c0_18] : memref<16x32xf32, #tpu.memory_space<vmem>>, vector<8x8xf32>
    tpu.vector_store %arg9[%c0_17, %c0_18], %26 {strides = array<i32>} : memref<16x32xf32, #tpu.memory_space<vmem>>, vector<8x8xf32>,
    %28 = vector.extract_strided_slice %9 {offsets = [0, 8], sizes = [8, 8], strides = [1, 1]} : vector<8x32xf32> to vector<8x8xf32>
    %29 = vector.extract_strided_slice %10 {offsets = [0, 8], sizes = [10, 8], strides = [1, 1]} : vector<10x32xf32> to vector<10x8xf32>
    %cst_19 = arith.constant dense<0.000000e+00> : vector<8x10xf32>
    %30 = tpu.matmul %28, %29, %cst_19 {dimension_numbers = #tpu.dot_dimension_numbers<[1], [1], [0], [0], [0, 0, 1, 0], [], []>} : vector<8x8xf32>, vector<10x8xf32>, vector<8x10xf32> -> vector<8x10xf32>
    %cst_20 = arith.constant dense<0xFF800000> : vector<8xf32>
    %31 = vector.multi_reduction <maximumf>, %30, %cst_20 [1] : vector<8x10xf32> to vector<8xf32>
    %32 = vector.shape_cast %31 : vector<8xf32> to vector<8x1xf32>
    %33 = vector.broadcast %32 : vector<8x1xf32> to vector<8x10xf32>
    %34 = arith.subf %30, %33 : vector<8x10xf32>
    %35 = math.exp %34 : vector<8x10xf32>
    %cst_21 = arith.constant dense<0.000000e+00> : vector<8xf32>
    %36 = vector.multi_reduction <add>, %35, %cst_21 [1] : vector<8x10xf32> to vector<8xf32>
    %37 = vector.shape_cast %36 : vector<8xf32> to vector<8x1xf32>
    %38 = tpu.reciprocal %37 {approx = true} : vector<8x1xf32> -> vector<8x1xf32>
    %39 = vector.broadcast %38 : vector<8x1xf32> to vector<8x10xf32>
    %40 = arith.mulf %35, %39 : vector<8x10xf32>
    %41 = vector.extract_strided_slice %11 {offsets = [0, 8], sizes = [10, 8], strides = [1, 1]} : vector<10x32xf32> to vector<10x8xf32>
    %cst_22 = arith.constant dense<0.000000e+00> : vector<8x8xf32>
    %42 = tpu.matmul %40, %41, %cst_22 {dimension_numbers = #tpu.dot_dimension_numbers<[1], [0], [0], [1], [0, 0, 1, 1], [], []>} : vector<8x10xf32>, vector<10x8xf32>, vector<8x8xf32> -> vector<8x8xf32>
    %c0_23 = arith.constant 0 : index
    %c8 = arith.constant 8 : index
    %43 = vector.load %arg9[%c0_23, %c8] : memref<16x32xf32, #tpu.memory_space<vmem>>, vector<8x8xf32>
    tpu.vector_store %arg9[%c0_23, %c8], %42 {strides = array<i32>} : memref<16x32xf32, #tpu.memory_space<vmem>>, vector<8x8xf32>,
    %44 = vector.extract_strided_slice %9 {offsets = [0, 16], sizes = [8, 8], strides = [1, 1]} : vector<8x32xf32> to vector<8x8xf32>
    %45 = vector.extract_strided_slice %10 {offsets = [0, 16], sizes = [10, 8], strides = [1, 1]} : vector<10x32xf32> to vector<10x8xf32>
    %cst_24 = arith.constant dense<0.000000e+00> : vector<8x10xf32>
    %46 = tpu.matmul %44, %45, %cst_24 {dimension_numbers = #tpu.dot_dimension_numbers<[1], [1], [0], [0], [0, 0, 1, 0], [], []>} : vector<8x8xf32>, vector<10x8xf32>, vector<8x10xf32> -> vector<8x10xf32>
    %cst_25 = arith.constant dense<0xFF800000> : vector<8xf32>
    %47 = vector.multi_reduction <maximumf>, %46, %cst_25 [1] : vector<8x10xf32> to vector<8xf32>
    %48 = vector.shape_cast %47 : vector<8xf32> to vector<8x1xf32>
    %49 = vector.broadcast %48 : vector<8x1xf32> to vector<8x10xf32>
    %50 = arith.subf %46, %49 : vector<8x10xf32>
    %51 = math.exp %50 : vector<8x10xf32>
    %cst_26 = arith.constant dense<0.000000e+00> : vector<8xf32>
    %52 = vector.multi_reduction <add>, %51, %cst_26 [1] : vector<8x10xf32> to vector<8xf32>
    %53 = vector.shape_cast %52 : vector<8xf32> to vector<8x1xf32>
    %54 = tpu.reciprocal %53 {approx = true} : vector<8x1xf32> -> vector<8x1xf32>
    %55 = vector.broadcast %54 : vector<8x1xf32> to vector<8x10xf32>
    %56 = arith.mulf %51, %55 : vector<8x10xf32>
    %57 = vector.extract_strided_slice %11 {offsets = [0, 16], sizes = [10, 8], strides = [1, 1]} : vector<10x32xf32> to vector<10x8xf32>
    %cst_27 = arith.constant dense<0.000000e+00> : vector<8x8xf32>
    %58 = tpu.matmul %56, %57, %cst_27 {dimension_numbers = #tpu.dot_dimension_numbers<[1], [0], [0], [1], [0, 0, 1, 1], [], []>} : vector<8x10xf32>, vector<10x8xf32>, vector<8x8xf32> -> vector<8x8xf32>
    %c0_28 = arith.constant 0 : index
    %c16 = arith.constant 16 : index
    %59 = vector.load %arg9[%c0_28, %c16] : memref<16x32xf32, #tpu.memory_space<vmem>>, vector<8x8xf32>
    tpu.vector_store %arg9[%c0_28, %c16], %58 {strides = array<i32>} : memref<16x32xf32, #tpu.memory_space<vmem>>, vector<8x8xf32>,
    %60 = vector.extract_strided_slice %9 {offsets = [0, 24], sizes = [8, 8], strides = [1, 1]} : vector<8x32xf32> to vector<8x8xf32>
    %61 = vector.extract_strided_slice %10 {offsets = [0, 24], sizes = [10, 8], strides = [1, 1]} : vector<10x32xf32> to vector<10x8xf32>
    %cst_29 = arith.constant dense<0.000000e+00> : vector<8x10xf32>
    %62 = tpu.matmul %60, %61, %cst_29 {dimension_numbers = #tpu.dot_dimension_numbers<[1], [1], [0], [0], [0, 0, 1, 0], [], []>} : vector<8x8xf32>, vector<10x8xf32>, vector<8x10xf32> -> vector<8x10xf32>
    %cst_30 = arith.constant dense<0xFF800000> : vector<8xf32>
    %63 = vector.multi_reduction <maximumf>, %62, %cst_30 [1] : vector<8x10xf32> to vector<8xf32>
    %64 = vector.shape_cast %63 : vector<8xf32> to vector<8x1xf32>
    %65 = vector.broadcast %64 : vector<8x1xf32> to vector<8x10xf32>
    %66 = arith.subf %62, %65 : vector<8x10xf32>
    %67 = math.exp %66 : vector<8x10xf32>
    %cst_31 = arith.constant dense<0.000000e+00> : vector<8xf32>
    %68 = vector.multi_reduction <add>, %67, %cst_31 [1] : vector<8x10xf32> to vector<8xf32>
    %69 = vector.shape_cast %68 : vector<8xf32> to vector<8x1xf32>
    %70 = tpu.reciprocal %69 {approx = true} : vector<8x1xf32> -> vector<8x1xf32>
    %71 = vector.broadcast %70 : vector<8x1xf32> to vector<8x10xf32>
    %72 = arith.mulf %67, %71 : vector<8x10xf32>
    %73 = vector.extract_strided_slice %11 {offsets = [0, 24], sizes = [10, 8], strides = [1, 1]} : vector<10x32xf32> to vector<10x8xf32>
    %cst_32 = arith.constant dense<0.000000e+00> : vector<8x8xf32>
    %74 = tpu.matmul %72, %73, %cst_32 {dimension_numbers = #tpu.dot_dimension_numbers<[1], [0], [0], [1], [0, 0, 1, 1], [], []>} : vector<8x10xf32>, vector<10x8xf32>, vector<8x8xf32> -> vector<8x8xf32>
    %c0_33 = arith.constant 0 : index
    %c24 = arith.constant 24 : index
    %75 = vector.load %arg9[%c0_33, %c24] : memref<16x32xf32, #tpu.memory_space<vmem>>, vector<8x8xf32>
    tpu.vector_store %arg9[%c0_33, %c24], %74 {strides = array<i32>} : memref<16x32xf32, #tpu.memory_space<vmem>>, vector<8x8xf32>,
    %76 = vector.extract_strided_slice %2 {offsets = [8, 0], sizes = [8, 32], strides = [1, 1]} : vector<16x32xf32> to vector<8x32xf32>
    %77 = vector.extract_strided_slice %5 {offsets = [10, 0], sizes = [10, 32], strides = [1, 1]} : vector<20x32xf32> to vector<10x32xf32>
    %78 = vector.extract_strided_slice %8 {offsets = [10, 0], sizes = [10, 32], strides = [1, 1]} : vector<20x32xf32> to vector<10x32xf32>
    %79 = vector.extract_strided_slice %76 {offsets = [0, 0], sizes = [8, 8], strides = [1, 1]} : vector<8x32xf32> to vector<8x8xf32>
    %80 = vector.extract_strided_slice %77 {offsets = [0, 0], sizes = [10, 8], strides = [1, 1]} : vector<10x32xf32> to vector<10x8xf32>
    %cst_34 = arith.constant dense<0.000000e+00> : vector<8x10xf32>
    %81 = tpu.matmul %79, %80, %cst_34 {dimension_numbers = #tpu.dot_dimension_numbers<[1], [1], [0], [0], [0, 0, 1, 0], [], []>} : vector<8x8xf32>, vector<10x8xf32>, vector<8x10xf32> -> vector<8x10xf32>
    %cst_35 = arith.constant dense<0xFF800000> : vector<8xf32>
    %82 = vector.multi_reduction <maximumf>, %81, %cst_35 [1] : vector<8x10xf32> to vector<8xf32>
    %83 = vector.shape_cast %82 : vector<8xf32> to vector<8x1xf32>
    %84 = vector.broadcast %83 : vector<8x1xf32> to vector<8x10xf32>
    %85 = arith.subf %81, %84 : vector<8x10xf32>
    %86 = math.exp %85 : vector<8x10xf32>
    %cst_36 = arith.constant dense<0.000000e+00> : vector<8xf32>
    %87 = vector.multi_reduction <add>, %86, %cst_36 [1] : vector<8x10xf32> to vector<8xf32>
    %88 = vector.shape_cast %87 : vector<8xf32> to vector<8x1xf32>
    %89 = tpu.reciprocal %88 {approx = true} : vector<8x1xf32> -> vector<8x1xf32>
    %90 = vector.broadcast %89 : vector<8x1xf32> to vector<8x10xf32>
    %91 = arith.mulf %86, %90 : vector<8x10xf32>
    %92 = vector.extract_strided_slice %78 {offsets = [0, 0], sizes = [10, 8], strides = [1, 1]} : vector<10x32xf32> to vector<10x8xf32>
    %cst_37 = arith.constant dense<0.000000e+00> : vector<8x8xf32>
    %93 = tpu.matmul %91, %92, %cst_37 {dimension_numbers = #tpu.dot_dimension_numbers<[1], [0], [0], [1], [0, 0, 1, 1], [], []>} : vector<8x10xf32>, vector<10x8xf32>, vector<8x8xf32> -> vector<8x8xf32>
    %c8_38 = arith.constant 8 : index
    %c0_39 = arith.constant 0 : index
    %94 = vector.load %arg9[%c8_38, %c0_39] : memref<16x32xf32, #tpu.memory_space<vmem>>, vector<8x8xf32>
    tpu.vector_store %arg9[%c8_38, %c0_39], %93 {strides = array<i32>} : memref<16x32xf32, #tpu.memory_space<vmem>>, vector<8x8xf32>,
    %95 = vector.extract_strided_slice %76 {offsets = [0, 8], sizes = [8, 8], strides = [1, 1]} : vector<8x32xf32> to vector<8x8xf32>
    %96 = vector.extract_strided_slice %77 {offsets = [0, 8], sizes = [10, 8], strides = [1, 1]} : vector<10x32xf32> to vector<10x8xf32>
    %cst_40 = arith.constant dense<0.000000e+00> : vector<8x10xf32>
    %97 = tpu.matmul %95, %96, %cst_40 {dimension_numbers = #tpu.dot_dimension_numbers<[1], [1], [0], [0], [0, 0, 1, 0], [], []>} : vector<8x8xf32>, vector<10x8xf32>, vector<8x10xf32> -> vector<8x10xf32>
    %cst_41 = arith.constant dense<0xFF800000> : vector<8xf32>
    %98 = vector.multi_reduction <maximumf>, %97, %cst_41 [1] : vector<8x10xf32> to vector<8xf32>
    %99 = vector.shape_cast %98 : vector<8xf32> to vector<8x1xf32>
    %100 = vector.broadcast %99 : vector<8x1xf32> to vector<8x10xf32>
    %101 = arith.subf %97, %100 : vector<8x10xf32>
    %102 = math.exp %101 : vector<8x10xf32>
    %cst_42 = arith.constant dense<0.000000e+00> : vector<8xf32>
    %103 = vector.multi_reduction <add>, %102, %cst_42 [1] : vector<8x10xf32> to vector<8xf32>
    %104 = vector.shape_cast %103 : vector<8xf32> to vector<8x1xf32>
    %105 = tpu.reciprocal %104 {approx = true} : vector<8x1xf32> -> vector<8x1xf32>
    %106 = vector.broadcast %105 : vector<8x1xf32> to vector<8x10xf32>
    %107 = arith.mulf %102, %106 : vector<8x10xf32>
    %108 = vector.extract_strided_slice %78 {offsets = [0, 8], sizes = [10, 8], strides = [1, 1]} : vector<10x32xf32> to vector<10x8xf32>
    %cst_43 = arith.constant dense<0.000000e+00> : vector<8x8xf32>
    %109 = tpu.matmul %107, %108, %cst_43 {dimension_numbers = #tpu.dot_dimension_numbers<[1], [0], [0], [1], [0, 0, 1, 1], [], []>} : vector<8x10xf32>, vector<10x8xf32>, vector<8x8xf32> -> vector<8x8xf32>
    %c8_44 = arith.constant 8 : index
    %c8_45 = arith.constant 8 : index
    %110 = vector.load %arg9[%c8_44, %c8_45] : memref<16x32xf32, #tpu.memory_space<vmem>>, vector<8x8xf32>
    tpu.vector_store %arg9[%c8_44, %c8_45], %109 {strides = array<i32>} : memref<16x32xf32, #tpu.memory_space<vmem>>, vector<8x8xf32>,
    %111 = vector.extract_strided_slice %76 {offsets = [0, 16], sizes = [8, 8], strides = [1, 1]} : vector<8x32xf32> to vector<8x8xf32>
    %112 = vector.extract_strided_slice %77 {offsets = [0, 16], sizes = [10, 8], strides = [1, 1]} : vector<10x32xf32> to vector<10x8xf32>
    %cst_46 = arith.constant dense<0.000000e+00> : vector<8x10xf32>
    %113 = tpu.matmul %111, %112, %cst_46 {dimension_numbers = #tpu.dot_dimension_numbers<[1], [1], [0], [0], [0, 0, 1, 0], [], []>} : vector<8x8xf32>, vector<10x8xf32>, vector<8x10xf32> -> vector<8x10xf32>
    %cst_47 = arith.constant dense<0xFF800000> : vector<8xf32>
    %114 = vector.multi_reduction <maximumf>, %113, %cst_47 [1] : vector<8x10xf32> to vector<8xf32>
    %115 = vector.shape_cast %114 : vector<8xf32> to vector<8x1xf32>
    %116 = vector.broadcast %115 : vector<8x1xf32> to vector<8x10xf32>
    %117 = arith.subf %113, %116 : vector<8x10xf32>
    %118 = math.exp %117 : vector<8x10xf32>
    %cst_48 = arith.constant dense<0.000000e+00> : vector<8xf32>
    %119 = vector.multi_reduction <add>, %118, %cst_48 [1] : vector<8x10xf32> to vector<8xf32>
    %120 = vector.shape_cast %119 : vector<8xf32> to vector<8x1xf32>
    %121 = tpu.reciprocal %120 {approx = true} : vector<8x1xf32> -> vector<8x1xf32>
    %122 = vector.broadcast %121 : vector<8x1xf32> to vector<8x10xf32>
    %123 = arith.mulf %118, %122 : vector<8x10xf32>
    %124 = vector.extract_strided_slice %78 {offsets = [0, 16], sizes = [10, 8], strides = [1, 1]} : vector<10x32xf32> to vector<10x8xf32>
    %cst_49 = arith.constant dense<0.000000e+00> : vector<8x8xf32>
    %125 = tpu.matmul %123, %124, %cst_49 {dimension_numbers = #tpu.dot_dimension_numbers<[1], [0], [0], [1], [0, 0, 1, 1], [], []>} : vector<8x10xf32>, vector<10x8xf32>, vector<8x8xf32> -> vector<8x8xf32>
    %c8_50 = arith.constant 8 : index
    %c16_51 = arith.constant 16 : index
    %126 = vector.load %arg9[%c8_50, %c16_51] : memref<16x32xf32, #tpu.memory_space<vmem>>, vector<8x8xf32>
    tpu.vector_store %arg9[%c8_50, %c16_51], %125 {strides = array<i32>} : memref<16x32xf32, #tpu.memory_space<vmem>>, vector<8x8xf32>,
    %127 = vector.extract_strided_slice %76 {offsets = [0, 24], sizes = [8, 8], strides = [1, 1]} : vector<8x32xf32> to vector<8x8xf32>
    %128 = vector.extract_strided_slice %77 {offsets = [0, 24], sizes = [10, 8], strides = [1, 1]} : vector<10x32xf32> to vector<10x8xf32>
    %cst_52 = arith.constant dense<0.000000e+00> : vector<8x10xf32>
    %129 = tpu.matmul %127, %128, %cst_52 {dimension_numbers = #tpu.dot_dimension_numbers<[1], [1], [0], [0], [0, 0, 1, 0], [], []>} : vector<8x8xf32>, vector<10x8xf32>, vector<8x10xf32> -> vector<8x10xf32>
    %cst_53 = arith.constant dense<0xFF800000> : vector<8xf32>
    %130 = vector.multi_reduction <maximumf>, %129, %cst_53 [1] : vector<8x10xf32> to vector<8xf32>
    %131 = vector.shape_cast %130 : vector<8xf32> to vector<8x1xf32>
    %132 = vector.broadcast %131 : vector<8x1xf32> to vector<8x10xf32>
    %133 = arith.subf %129, %132 : vector<8x10xf32>
    %134 = math.exp %133 : vector<8x10xf32>
    %cst_54 = arith.constant dense<0.000000e+00> : vector<8xf32>
    %135 = vector.multi_reduction <add>, %134, %cst_54 [1] : vector<8x10xf32> to vector<8xf32>
    %136 = vector.shape_cast %135 : vector<8xf32> to vector<8x1xf32>
    %137 = tpu.reciprocal %136 {approx = true} : vector<8x1xf32> -> vector<8x1xf32>
    %138 = vector.broadcast %137 : vector<8x1xf32> to vector<8x10xf32>
    %139 = arith.mulf %134, %138 : vector<8x10xf32>
    %140 = vector.extract_strided_slice %78 {offsets = [0, 24], sizes = [10, 8], strides = [1, 1]} : vector<10x32xf32> to vector<10x8xf32>
    %cst_55 = arith.constant dense<0.000000e+00> : vector<8x8xf32>
    %141 = tpu.matmul %139, %140, %cst_55 {dimension_numbers = #tpu.dot_dimension_numbers<[1], [0], [0], [1], [0, 0, 1, 1], [], []>} : vector<8x10xf32>, vector<10x8xf32>, vector<8x8xf32> -> vector<8x8xf32>
    %c8_56 = arith.constant 8 : index
    %c24_57 = arith.constant 24 : index
    %142 = vector.load %arg9[%c8_56, %c24_57] : memref<16x32xf32, #tpu.memory_space<vmem>>, vector<8x8xf32>
    tpu.vector_store %arg9[%c8_56, %c24_57], %141 {strides = array<i32>} : memref<16x32xf32, #tpu.memory_space<vmem>>, vector<8x8xf32>,
    %c0_58 = arith.constant 0 : index
    %c0_59 = arith.constant 0 : index
    %143 = vector.load %arg9[%c0_58, %c0_59] : memref<16x32xf32, #tpu.memory_space<vmem>>, vector<16x32xf32>
    %c0_60 = arith.constant 0 : index
    %c0_61 = arith.constant 0 : index
    %144 = vector.load %arg6[%c0_60, %c0_61] : memref<32x128xf32, #tpu.memory_space<vmem>>, vector<32x128xf32>
    %cst_62 = arith.constant dense<0.000000e+00> : vector<16x128xf32>
    %145 = tpu.matmul %143, %144, %cst_62 {dimension_numbers = #tpu.dot_dimension_numbers<[1], [0], [0], [1], [0, 0, 1, 1], [], []>} : vector<16x32xf32>, vector<32x128xf32>, vector<16x128xf32> -> vector<16x128xf32>
    %c0_63 = arith.constant 0 : index
    %c0_64 = arith.constant 0 : index
    %146 = vector.load %arg7[%c0_63, %c0_64] : memref<1x128xf32, #tpu.memory_space<vmem>>, vector<1x128xf32>
    %147 = vector.broadcast %146 : vector<1x128xf32> to vector<16x128xf32>
    %148 = arith.addf %145, %147 : vector<16x128xf32>
    %c0_65 = arith.constant 0 : index
    %c0_66 = arith.constant 0 : index
    %149 = vector.load %arg8[%c0_65, %c0_66] : memref<16x128xf32, #tpu.memory_space<vmem>>, vector<16x128xf32>
    tpu.vector_store %arg8[%c0_65, %c0_66], %148 {strides = array<i32>} : memref<16x128xf32, #tpu.memory_space<vmem>>, vector<16x128xf32>,
    return
  }
  func.func @transform_0(%arg0: i32) -> (i32, i32) {
    %c0_i32 = arith.constant 0 : i32
    %c0_i32_0 = arith.constant 0 : i32
    return %arg0, %c0_i32 : i32, i32
  }
  func.func @transform_1(%arg0: i32) -> (i32, i32) {
    %c0_i32 = arith.constant 0 : i32
    %c0_i32_0 = arith.constant 0 : i32
    return %arg0, %c0_i32 : i32, i32
  }
  func.func @transform_2(%arg0: i32) -> (i32, i32) {
    %c0_i32 = arith.constant 0 : i32
    %c0_i32_0 = arith.constant 0 : i32
    %c0_i32_1 = arith.constant 0 : i32
    return %c0_i32, %c0_i32_0 : i32, i32
  }
  func.func @transform_3(%arg0: i32) -> (i32, i32) {
    %c0_i32 = arith.constant 0 : i32
    %c0_i32_0 = arith.constant 0 : i32
    %c0_i32_1 = arith.constant 0 : i32
    return %c0_i32, %c0_i32_0 : i32, i32
  }
  func.func @transform_4(%arg0: i32) -> (i32, i32) {
    %c0_i32 = arith.constant 0 : i32
    %c0_i32_0 = arith.constant 0 : i32
    %c0_i32_1 = arith.constant 0 : i32
    return %c0_i32, %c0_i32_0 : i32, i32
  }
  func.func @transform_5(%arg0: i32) -> (i32, i32) {
    %c0_i32 = arith.constant 0 : i32
    %c0_i32_0 = arith.constant 0 : i32
    %c0_i32_1 = arith.constant 0 : i32
    return %c0_i32, %c0_i32_0 : i32, i32
  }
  func.func @transform_6(%arg0: i32) -> (i32, i32) {
    %c0_i32 = arith.constant 0 : i32
    %c0_i32_0 = arith.constant 0 : i32
    %c0_i32_1 = arith.constant 0 : i32
    return %c0_i32, %c0_i32_0 : i32, i32
  }
  func.func @transform_7(%arg0: i32) -> (i32, i32) {
    %c0_i32 = arith.constant 0 : i32
    %c0_i32_0 = arith.constant 0 : i32
    return %arg0, %c0_i32 : i32, i32
  }
}

</mosaic_0001>

<llo_original>
// kernel: tpu_custom_call.1
$region0: #{tpu_custom_call.1}
  #allocation0 [shape = 'u32[]', space=smem, size = 0x4, offset = 0x4, fixed_abs, tag = 'smem constant byte address 0x4 - core index']
  #allocation1 [shape = 'u32[144,128]{1,0:T(1,128)}', space=vmem, size = 0x12000, scoped, tag = 'internal scratch']
  #allocation2 [shape = 'f32[16,32]{1,0:T(8,128)}', space=vmem, size = 0x2000, scoped, tag = 'scratch operand']
  %s0 = inlined_call_operand.hbm [shape: f32[16,32], index: 0, kind: input, shape index: {}]
  %s1 = inlined_call_operand.hbm [shape: f32[20,24], index: 1, kind: input, shape index: {}]
  %s2 = inlined_call_operand.hbm [shape: f32[32,32], index: 2, kind: input, shape index: {}]
  %s3 = inlined_call_operand.hbm [shape: f32[24,32], index: 3, kind: input, shape index: {}]
  %s4 = inlined_call_operand.hbm [shape: f32[24,32], index: 4, kind: input, shape index: {}]
  %s5 = inlined_call_operand.hbm [shape: f32[32,128], index: 5, kind: input, shape index: {}]
  %s6 = inlined_call_operand.vmem [shape: f32[1,128], index: 6, kind: input, shape index: {}]
  %s7 = inlined_call_operand.hbm [shape: f32[16,128], index: 7, kind: output, shape index: {}]
  %s8 = sld [smem:[#allocation0]]
  $region62: #{tpu_custom_call.1} parent=0
    _
  %s10 = ssub.s32 1, %s8
  %s11 = scalar_select 0, %s10, %s8
  $region1: #{tpu_custom_call.1} parent=0
    #allocation3 [shape = 'u8[8192]{0}', space=vmem, size = 0x2000, scoped, tag = 'input window, operand 0, single buffered']
    #allocation4 [shape = 's32[1]{0}', space=sflag, size = 0x4, scoped, tag = 'scoped memory for tpu_custom_call.1']
    #allocation5 [shape = 's32[1]{0}', space=sflag, size = 0x4, scoped, tag = 'scoped memory for tpu_custom_call.1']
    #allocation6 [shape = 'u8[12288]{0}', space=vmem, size = 0x3000, scoped, tag = 'input window, operand 1, single buffered']
    #allocation7 [shape = 's32[1]{0}', space=sflag, size = 0x4, scoped, tag = 'scoped memory for tpu_custom_call.1']
    #allocation8 [shape = 'u8[16384]{0}', space=vmem, size = 0x4000, scoped, tag = 'input window, operand 2, single buffered']
    #allocation9 [shape = 'u8[12288]{0}', space=vmem, size = 0x3000, scoped, tag = 'input window, operand 3, single buffered']
    #allocation10 [shape = 's32[1]{0}', space=sflag, size = 0x4, scoped, tag = 'scoped memory for tpu_custom_call.1']
    #allocation11 [shape = 'u8[12288]{0}', space=vmem, size = 0x3000, scoped, tag = 'input window, operand 4, single buffered']
    #allocation12 [shape = 'u8[16384]{0}', space=vmem, size = 0x4000, scoped, tag = 'input window, operand 5, single buffered']
    #allocation13 [shape = 's32[1]{0}', space=sflag, size = 0x4, scoped, tag = 'scoped memory for tpu_custom_call.1']
    #allocation14 [shape = 'u8[8192]{0}', space=vmem, size = 0x2000, scoped, tag = 'output window, operand 0, single buffered']
    %12 = vsyncpa [#allocation4], 0
    %13 = vsyncpa [#allocation7], 0
    %14 = vsyncpa [#allocation10], 0
    %15 = vsyncpa [#allocation13], 0
    %16 = vsyncpa [#allocation5], 0
    // Predicated region
    $region2: #{tpu_custom_call.1} parent=1 // pred_check
      _
    $region3: #{tpu_custom_call.1} parent=1 // pred_check_branch
      %18 = sbr.rel (0) target = $region5
    $region4: #{tpu_custom_call.1} parent=1 // pred_region
      %s20 = ssub.s32 256, 256
      %21 = vsyncadd [#allocation4], %s20
      %s22 = sshll.u32 [#allocation3], 4
      %s23 = int_to_ptr.vmem [resolvable:$true] %s22
      %28 = dma.hbm_to_vmem [thread:$0]  %s0, 256, %s23, [#allocation4], 128, 128, 8
    $region5: #{tpu_custom_call.1} parent=1 // pred_fallthru
      _
    // Predicated region
    $region6: #{tpu_custom_call.1} parent=1 // pred_check
      _
    $region7: #{tpu_custom_call.1} parent=1 // pred_check_branch
      %30 = sbr.rel (0) target = $region9
    $region8: #{tpu_custom_call.1} parent=1 // pred_region
      %s32 = ssub.s32 384, 384
      %33 = vsyncadd [#allocation7], %s32
      %s34 = sshll.u32 [#allocation6], 4
      %s35 = int_to_ptr.vmem [resolvable:$true] %s34
      %40 = dma.hbm_to_vmem [thread:$0]  %s1, 384, %s35, [#allocation7], 128, 128, 8
    $region9: #{tpu_custom_call.1} parent=1 // pred_fallthru
      _
    // Predicated region
    $region10: #{tpu_custom_call.1} parent=1 // pred_check
      _
    $region11: #{tpu_custom_call.1} parent=1 // pred_check_branch
      %42 = sbr.rel (0) target = $region13
    $region12: #{tpu_custom_call.1} parent=1 // pred_region
      %s44 = ssub.s32 512, 512
      %45 = vsyncadd [#allocation7], %s44
      %s46 = sshll.u32 [#allocation8], 4
      %s47 = int_to_ptr.vmem [resolvable:$true] %s46
      %52 = dma.hbm_to_vmem [thread:$0]  %s2, 512, %s47, [#allocation7], 128, 128, 8
    $region13: #{tpu_custom_call.1} parent=1 // pred_fallthru
      _
    // Predicated region
    $region14: #{tpu_custom_call.1} parent=1 // pred_check
      _
    $region15: #{tpu_custom_call.1} parent=1 // pred_check_branch
      %54 = sbr.rel (0) target = $region17
    $region16: #{tpu_custom_call.1} parent=1 // pred_region
      %s56 = ssub.s32 384, 384
      %57 = vsyncadd [#allocation10], %s56
      %s58 = sshll.u32 [#allocation9], 4
      %s59 = int_to_ptr.vmem [resolvable:$true] %s58
      %64 = dma.hbm_to_vmem [thread:$0]  %s3, 384, %s59, [#allocation10], 128, 128, 8
    $region17: #{tpu_custom_call.1} parent=1 // pred_fallthru
      _
    // Predicated region
    $region18: #{tpu_custom_call.1} parent=1 // pred_check
      _
    $region19: #{tpu_custom_call.1} parent=1 // pred_check_branch
      %66 = sbr.rel (0) target = $region21
    $region20: #{tpu_custom_call.1} parent=1 // pred_region
      %s68 = ssub.s32 384, 384
      %69 = vsyncadd [#allocation10], %s68
      %s70 = sshll.u32 [#allocation11], 4
      %s71 = int_to_ptr.vmem [resolvable:$true] %s70
      %76 = dma.hbm_to_vmem [thread:$0]  %s4, 384, %s71, [#allocation10], 128, 128, 8
    $region21: #{tpu_custom_call.1} parent=1 // pred_fallthru
      _
    // Predicated region
    $region22: #{tpu_custom_call.1} parent=1 // pred_check
      _
    $region23: #{tpu_custom_call.1} parent=1 // pred_check_branch
      %78 = sbr.rel (0) target = $region25
    $region24: #{tpu_custom_call.1} parent=1 // pred_region
      %s80 = ssub.s32 512, 512
      %81 = vsyncadd [#allocation13], %s80
      %s82 = sshll.u32 [#allocation12], 4
      %s83 = int_to_ptr.vmem [resolvable:$true] %s82
      %88 = dma.hbm_to_vmem [thread:$0]  %s5, 512, %s83, [#allocation13], 128, 128, 8
    $region25: #{tpu_custom_call.1} parent=1 // pred_fallthru
      _
    // Predicated region
    $region26: #{tpu_custom_call.1} parent=1 // pred_check
      _
    $region27: #{tpu_custom_call.1} parent=1 // pred_check_branch
      %90 = sbr.rel (0) target = $region29
    $region28: #{tpu_custom_call.1} parent=1 // pred_region
      _
    $region29: #{tpu_custom_call.1} parent=1 // pred_fallthru
      _
    // Predicated region
    $region30: #{tpu_custom_call.1} parent=1 // pred_check
      _
    $region31: #{tpu_custom_call.1} parent=1 // pred_check_branch
      %92 = sbr.rel (0) target = $region33
    $region32: #{tpu_custom_call.1} parent=1 // pred_region
      %93 = dma.done [#allocation4], 256
    $region33: #{tpu_custom_call.1} parent=1 // pred_fallthru
      _
    // Predicated region
    $region34: #{tpu_custom_call.1} parent=1 // pred_check
      _
    $region35: #{tpu_custom_call.1} parent=1 // pred_check_branch
      %95 = sbr.rel (0) target = $region37
    $region36: #{tpu_custom_call.1} parent=1 // pred_region
      %96 = dma.done [#allocation7], 384
    $region37: #{tpu_custom_call.1} parent=1 // pred_fallthru
      _
    // Predicated region
    $region38: #{tpu_custom_call.1} parent=1 // pred_check
      _
    $region39: #{tpu_custom_call.1} parent=1 // pred_check_branch
      %98 = sbr.rel (0) target = $region41
    $region40: #{tpu_custom_call.1} parent=1 // pred_region
      %99 = dma.done [#allocation7], 512
    $region41: #{tpu_custom_call.1} parent=1 // pred_fallthru
      _
    // Predicated region
    $region42: #{tpu_custom_call.1} parent=1 // pred_check
      _
    $region43: #{tpu_custom_call.1} parent=1 // pred_check_branch
      %101 = sbr.rel (0) target = $region45
    $region44: #{tpu_custom_call.1} parent=1 // pred_region
      %102 = dma.done [#allocation10], 384
    $region45: #{tpu_custom_call.1} parent=1 // pred_fallthru
      _
    // Predicated region
    $region46: #{tpu_custom_call.1} parent=1 // pred_check
      _
    $region47: #{tpu_custom_call.1} parent=1 // pred_check_branch
      %104 = sbr.rel (0) target = $region49
    $region48: #{tpu_custom_call.1} parent=1 // pred_region
      %105 = dma.done [#allocation10], 384
    $region49: #{tpu_custom_call.1} parent=1 // pred_fallthru
      _
    // Predicated region
    $region50: #{tpu_custom_call.1} parent=1 // pred_check
      _
    $region51: #{tpu_custom_call.1} parent=1 // pred_check_branch
      %107 = sbr.rel (0) target = $region53
    $region52: #{tpu_custom_call.1} parent=1 // pred_region
      %108 = dma.done [#allocation13], 512
    $region53: #{tpu_custom_call.1} parent=1 // pred_fallthru
      _
    %v109 = vld [vmem:[#allocation3] sm:$0xff]
    %v110 = vld [vmem:[#allocation3 + $0x8] sm:$0xff]
    %v111 = vld [vmem:[#allocation8] sm:$0xff]
    %v112 = vld [vmem:[#allocation8 + $0x8] sm:$0xff]
    %v113 = vld [vmem:[#allocation8 + $0x10] sm:$0xff]
    %v114 = vld [vmem:[#allocation8 + $0x18] sm:$0xff]
    %vm115 = vcmask 261120
    %v117 = vsel %vm115, %v109, 0
    %v120 = vsel %vm115, %v110, 0
    %122 = vmatprep.subr.mxu0 0.0
    %123 = vmatpush1.msra.mxu0 %v111
    %124 = vmatprep.subr.mxu0 0.0
    %125 = vmatpush1.msra.mxu0 %v112
    %126 = vmatprep.subr.mxu0 0.0
    %127 = vmatpush1.msra.mxu0 %v113
    %128 = vmatprep.subr.mxu0 0.0
    %129 = vmatpush1.msra.mxu0 %v114
    %130 = vmatprep.subr.mxu0 0.0
    %131 = vmatpush1.msra.mxu0 0.0
    %132 = vmatprep.subr.mxu0 0.0
    %133 = vmatpush1.msra.mxu0 0.0
    %134 = vmatprep.subr.mxu0 0.0
    %135 = vmatpush1.msra.mxu0 0.0
    %136 = vmatprep.subr.mxu0 0.0
    %137 = vmatpush1.msra.mxu0 0.0
    %138 = vmatprep.subr.mxu0 0.0
    %139 = vmatpush1.msra.mxu0 0.0
    %140 = vmatprep.subr.mxu0 0.0
    %141 = vmatpush1.msra.mxu0 0.0
    %142 = vmatprep.subr.mxu0 0.0
    %143 = vmatpush1.msra.mxu0 0.0
    %144 = vmatprep.subr.mxu0 0.0
    %145 = vmatpush1.msra.mxu0 0.0
    %146 = vmatprep.subr.mxu0 0.0
    %147 = vmatpush1.msra.mxu0 0.0
    %148 = vmatprep.subr.mxu0 0.0
    %149 = vmatpush1.msra.mxu0 0.0
    %150 = vmatprep.subr.mxu0 0.0
    %151 = vmatpush1.msra.mxu0 0.0
    %152 = vmatprep.subr.mxu0 0.0
    %153 = vmatpush1.msra.mxu0 0.0
    %154 = vmatprep.subr.mxu0 0.0
    %155 = vmatpush1.msra.mxu0 0.0
    %156 = vmatprep.subr.mxu0 0.0
    %157 = vmatpush1.msra.mxu0 0.0
    %158 = vmatprep.subr.mxu0 0.0
    %159 = vmatpush1.msra.mxu0 0.0
    %160 = vmatprep.subr.mxu0 0.0
    %161 = vmatpush1.msra.mxu0 0.0
    %162 = vmatprep.subr.mxu0 0.0
    %163 = vmatpush1.msra.mxu0 0.0
    %164 = vmatprep.subr.mxu0 0.0
    %165 = vmatpush1.msra.mxu0 0.0
    %166 = vmatprep.subr.mxu0 0.0
    %167 = vmatpush1.msra.mxu0 0.0
    %168 = vmatprep.subr.mxu0 0.0
    %169 = vmatpush1.msra.mxu0 0.0
    %170 = vmatprep.subr.mxu0 0.0
    %171 = vmatpush1.msra.mxu0 0.0
    %172 = vmatprep.subr.mxu0 0.0
    %173 = vmatpush1.msra.mxu0 0.0
    %174 = vmatprep.subr.mxu0 0.0
    %175 = vmatpush1.msra.mxu0 0.0
    %176 = vmatprep.subr.mxu0 0.0
    %177 = vmatpush1.msra.mxu0 0.0
    %178 = vmatprep.subr.mxu0 0.0
    %179 = vmatpush1.msra.mxu0 0.0
    %180 = vmatprep.subr.mxu0 0.0
    %181 = vmatpush1.msra.mxu0 0.0
    %182 = vmatprep.subr.mxu0 0.0
    %183 = vmatpush1.msra.mxu0 0.0
    %184 = vmatprep.subr.mxu0 0.0
    %185 = vmatpush1.msra.mxu0 0.0
    %186 = vmatprep.mubr.f32.mxu0 0.0
    %187 = vmatmul.mubr.f32.gmra.mrb[0].mxu0 %v117
    %v188 = vpop.f32.mrb[0].mxu0
    %v189 = vadd.f32 0.0, %v188
    %v190 = vpop.f32.mrb[0].mxu0
    %191 = vmatprep.mubr.f32.mxu0 0.0
    %192 = vmatmul.mubr.f32.gmra.mrb[0].mxu0 %v120
    %v193 = vpop.f32.mrb[0].mxu0
    %v194 = vadd.f32 0.0, %v193
    %v195 = vpop.f32.mrb[0].mxu0
    %196 = vdwg.mxu0
    %v197 = vld [vmem:[#allocation6] sm:$0xff]
    %v198 = vld [vmem:[#allocation6 + $0x8] sm:$0xff]
    %v199 = vld [vmem:[#allocation6 + $0x10] sm:$0xf]
    %v200 = vld [vmem:[#allocation9] sm:$0xff]
    %v201 = vld [vmem:[#allocation9 + $0x8] sm:$0xff]
    %v202 = vld [vmem:[#allocation9 + $0x10] sm:$0xff]
    %vm203 = vcmask 195584
    %v205 = vsel %vm203, %v197, 0
    %v208 = vsel %vm203, %v198, 0
    %v211 = vsel %vm203, %v199, 0
    %213 = vmatprep.subr.mxu0 0.0
    %214 = vmatpush1.msra.mxu0 %v200
    %215 = vmatprep.subr.mxu0 0.0
    %216 = vmatpush1.msra.mxu0 %v201
    %217 = vmatprep.subr.mxu0 0.0
    %218 = vmatpush1.msra.mxu0 %v202
    %219 = vmatprep.subr.mxu0 0.0
    %220 = vmatpush1.msra.mxu0 0.0
    %221 = vmatprep.subr.mxu0 0.0
    %222 = vmatpush1.msra.mxu0 0.0
    %223 = vmatprep.subr.mxu0 0.0
    %224 = vmatpush1.msra.mxu0 0.0
    %225 = vmatprep.subr.mxu0 0.0
    %226 = vmatpush1.msra.mxu0 0.0
    %227 = vmatprep.subr.mxu0 0.0
    %228 = vmatpush1.msra.mxu0 0.0
    %229 = vmatprep.subr.mxu0 0.0
    %230 = vmatpush1.msra.mxu0 0.0
    %231 = vmatprep.subr.mxu0 0.0
    %232 = vmatpush1.msra.mxu0 0.0
    %233 = vmatprep.subr.mxu0 0.0
    %234 = vmatpush1.msra.mxu0 0.0
    %235 = vmatprep.subr.mxu0 0.0
    %236 = vmatpush1.msra.mxu0 0.0
    %237 = vmatprep.subr.mxu0 0.0
    %238 = vmatpush1.msra.mxu0 0.0
    %239 = vmatprep.subr.mxu0 0.0
    %240 = vmatpush1.msra.mxu0 0.0
    %241 = vmatprep.subr.mxu0 0.0
    %242 = vmatpush1.msra.mxu0 0.0
    %243 = vmatprep.subr.mxu0 0.0
    %244 = vmatpush1.msra.mxu0 0.0
    %245 = vmatprep.subr.mxu0 0.0
    %246 = vmatpush1.msra.mxu0 0.0
    %247 = vmatprep.subr.mxu0 0.0
    %248 = vmatpush1.msra.mxu0 0.0
    %249 = vmatprep.subr.mxu0 0.0
    %250 = vmatpush1.msra.mxu0 0.0
    %251 = vmatprep.subr.mxu0 0.0
    %252 = vmatpush1.msra.mxu0 0.0
    %253 = vmatprep.subr.mxu0 0.0
    %254 = vmatpush1.msra.mxu0 0.0
    %255 = vmatprep.subr.mxu0 0.0
    %256 = vmatpush1.msra.mxu0 0.0
    %257 = vmatprep.subr.mxu0 0.0
    %258 = vmatpush1.msra.mxu0 0.0
    %259 = vmatprep.subr.mxu0 0.0
    %260 = vmatpush1.msra.mxu0 0.0
    %261 = vmatprep.subr.mxu0 0.0
    %262 = vmatpush1.msra.mxu0 0.0
    %263 = vmatprep.subr.mxu0 0.0
    %264 = vmatpush1.msra.mxu0 0.0
    %265 = vmatprep.subr.mxu0 0.0
    %266 = vmatpush1.msra.mxu0 0.0
    %267 = vmatprep.subr.mxu0 0.0
    %268 = vmatpush1.msra.mxu0 0.0
    %269 = vmatprep.subr.mxu0 0.0
    %270 = vmatpush1.msra.mxu0 0.0
    %271 = vmatprep.subr.mxu0 0.0
    %272 = vmatpush1.msra.mxu0 0.0
    %273 = vmatprep.subr.mxu0 0.0
    %274 = vmatpush1.msra.mxu0 0.0
    %275 = vmatprep.subr.mxu0 0.0
    %276 = vmatpush1.msra.mxu0 0.0
    %277 = vmatprep.mubr.f32.mxu0 0.0
    %278 = vmatmul.mubr.f32.gmra.mrb[0].mxu0 %v205
    %v279 = vpop.f32.mrb[0].mxu0
    %v280 = vadd.f32 0.0, %v279
    %v281 = vpop.f32.mrb[0].mxu0
    %282 = vmatprep.mubr.f32.mxu0 0.0
    %283 = vmatmul.mubr.f32.gmra.mrb[0].mxu0 %v208
    %v284 = vpop.f32.mrb[0].mxu0
    %v285 = vadd.f32 0.0, %v284
    %v286 = vpop.f32.mrb[0].mxu0
    %287 = vmatprep.mubr.f32.mxu0 0.0
    %288 = vmatmul.mubr.f32.gmra.mrb[0].mxu0 %v211
    %v289 = vpop.f32.mrb[0].mxu0
    %v290 = vadd.f32 0.0, %v289
    %v291 = vpop.f32.mrb[0].mxu0
    %292 = vdwg.mxu0
    %v293 = vld [vmem:[#allocation11] sm:$0xff]
    %v294 = vld [vmem:[#allocation11 + $0x8] sm:$0xff]
    %v295 = vld [vmem:[#allocation11 + $0x10] sm:$0xff]
    %296 = vmatprep.subr.mxu0 0.0
    %297 = vmatpush1.msra.mxu0 %v293
    %298 = vmatprep.subr.mxu0 0.0
    %299 = vmatpush1.msra.mxu0 %v294
    %300 = vmatprep.subr.mxu0 0.0
    %301 = vmatpush1.msra.mxu0 %v295
    %302 = vmatprep.subr.mxu0 0.0
    %303 = vmatpush1.msra.mxu0 0.0
    %304 = vmatprep.subr.mxu0 0.0
    %305 = vmatpush1.msra.mxu0 0.0
    %306 = vmatprep.subr.mxu0 0.0
    %307 = vmatpush1.msra.mxu0 0.0
    %308 = vmatprep.subr.mxu0 0.0
    %309 = vmatpush1.msra.mxu0 0.0
    %310 = vmatprep.subr.mxu0 0.0
    %311 = vmatpush1.msra.mxu0 0.0
    %312 = vmatprep.subr.mxu0 0.0
    %313 = vmatpush1.msra.mxu0 0.0
    %314 = vmatprep.subr.mxu0 0.0
    %315 = vmatpush1.msra.mxu0 0.0
    %316 = vmatprep.subr.mxu0 0.0
    %317 = vmatpush1.msra.mxu0 0.0
    %318 = vmatprep.subr.mxu0 0.0
    %319 = vmatpush1.msra.mxu0 0.0
    %320 = vmatprep.subr.mxu0 0.0
    %321 = vmatpush1.msra.mxu0 0.0
    %322 = vmatprep.subr.mxu0 0.0
    %323 = vmatpush1.msra.mxu0 0.0
    %324 = vmatprep.subr.mxu0 0.0
    %325 = vmatpush1.msra.mxu0 0.0
    %326 = vmatprep.subr.mxu0 0.0
    %327 = vmatpush1.msra.mxu0 0.0
    %328 = vmatprep.subr.mxu0 0.0
    %329 = vmatpush1.msra.mxu0 0.0
    %330 = vmatprep.subr.mxu0 0.0
    %331 = vmatpush1.msra.mxu0 0.0
    %332 = vmatprep.subr.mxu0 0.0
    %333 = vmatpush1.msra.mxu0 0.0
    %334 = vmatprep.subr.mxu0 0.0
    %335 = vmatpush1.msra.mxu0 0.0
    %336 = vmatprep.subr.mxu0 0.0
    %337 = vmatpush1.msra.mxu0 0.0
    %338 = vmatprep.subr.mxu0 0.0
    %339 = vmatpush1.msra.mxu0 0.0
    %340 = vmatprep.subr.mxu0 0.0
    %341 = vmatpush1.msra.mxu0 0.0
    %342 = vmatprep.subr.mxu0 0.0
    %343 = vmatpush1.msra.mxu0 0.0
    %344 = vmatprep.subr.mxu0 0.0
    %345 = vmatpush1.msra.mxu0 0.0
    %346 = vmatprep.subr.mxu0 0.0
    %347 = vmatpush1.msra.mxu0 0.0
    %348 = vmatprep.subr.mxu0 0.0
    %349 = vmatpush1.msra.mxu0 0.0
    %350 = vmatprep.subr.mxu0 0.0
    %351 = vmatpush1.msra.mxu0 0.0
    %352 = vmatprep.subr.mxu0 0.0
    %353 = vmatpush1.msra.mxu0 0.0
    %354 = vmatprep.subr.mxu0 0.0
    %355 = vmatpush1.msra.mxu0 0.0
    %356 = vmatprep.subr.mxu0 0.0
    %357 = vmatpush1.msra.mxu0 0.0
    %358 = vmatprep.subr.mxu0 0.0
    %359 = vmatpush1.msra.mxu0 0.0
    %360 = vmatprep.mubr.f32.mxu0 0.0
    %361 = vmatmul.mubr.f32.gmra.mrb[0].mxu0 %v205
    %v362 = vpop.f32.mrb[0].mxu0
    %v363 = vadd.f32 0.0, %v362
    %v364 = vpop.f32.mrb[0].mxu0
    %365 = vmatprep.mubr.f32.mxu0 0.0
    %366 = vmatmul.mubr.f32.gmra.mrb[0].mxu0 %v208
    %v367 = vpop.f32.mrb[0].mxu0
    %v368 = vadd.f32 0.0, %v367
    %v369 = vpop.f32.mrb[0].mxu0
    %370 = vmatprep.mubr.f32.mxu0 0.0
    %371 = vmatmul.mubr.f32.gmra.mrb[0].mxu0 %v211
    %v372 = vpop.f32.mrb[0].mxu0
    %v373 = vadd.f32 0.0, %v372
    %v374 = vpop.f32.mrb[0].mxu0
    %375 = vdwg.mxu0
    %vm376 = vcmask 64512
    %v378 = vsel %vm376, %v189, 0
    %v381 = vsel %vm376, %v280, 0
    %v384 = vsel %vm376, %v285, 0
    %386 = vmatprep.subr.mxu0 0.0
    %387 = vmatpush1.xpose.msra.mxu0 %v381
    %388 = vmatprep.subr.mxu0 0.0
    %389 = vmatpush1.xpose.msra.mxu0 %v384
    %390 = vmatprep.subr.mxu0 0.0
    %391 = vmatpush1.xpose.msra.mxu0 0.0
    %392 = vmatprep.subr.mxu0 0.0
    %393 = vmatpush1.xpose.msra.mxu0 0.0
    %394 = vmatprep.subr.mxu0 0.0
    %395 = vmatpush1.xpose.msra.mxu0 0.0
    %396 = vmatprep.subr.mxu0 0.0
    %397 = vmatpush1.xpose.msra.mxu0 0.0
    %398 = vmatprep.subr.mxu0 0.0
    %399 = vmatpush1.xpose.msra.mxu0 0.0
    %400 = vmatprep.subr.mxu0 0.0
    %401 = vmatpush1.xpose.msra.mxu0 0.0
    %402 = vmatprep.subr.mxu0 0.0
    %403 = vmatpush1.xpose.msra.mxu0 0.0
    %404 = vmatprep.subr.mxu0 0.0
    %405 = vmatpush1.xpose.msra.mxu0 0.0
    %406 = vmatprep.subr.mxu0 0.0
    %407 = vmatpush1.xpose.msra.mxu0 0.0
    %408 = vmatprep.subr.mxu0 0.0
    %409 = vmatpush1.xpose.msra.mxu0 0.0
    %410 = vmatprep.subr.mxu0 0.0
    %411 = vmatpush1.xpose.msra.mxu0 0.0
    %412 = vmatprep.subr.mxu0 0.0
    %413 = vmatpush1.xpose.msra.mxu0 0.0
    %414 = vmatprep.subr.mxu0 0.0
    %415 = vmatpush1.xpose.msra.mxu0 0.0
    %416 = vmatprep.subr.mxu0 0.0
    %417 = vmatpush1.xpose.msra.mxu0 0.0
    %418 = vmatprep.subr.mxu0 0.0
    %419 = vmatpush1.xpose.msra.mxu0 0.0
    %420 = vmatprep.subr.mxu0 0.0
    %421 = vmatpush1.xpose.msra.mxu0 0.0
    %422 = vmatprep.subr.mxu0 0.0
    %423 = vmatpush1.xpose.msra.mxu0 0.0
    %424 = vmatprep.subr.mxu0 0.0
    %425 = vmatpush1.xpose.msra.mxu0 0.0
    %426 = vmatprep.subr.mxu0 0.0
    %427 = vmatpush1.xpose.msra.mxu0 0.0
    %428 = vmatprep.subr.mxu0 0.0
    %429 = vmatpush1.xpose.msra.mxu0 0.0
    %430 = vmatprep.subr.mxu0 0.0
    %431 = vmatpush1.xpose.msra.mxu0 0.0
    %432 = vmatprep.subr.mxu0 0.0
    %433 = vmatpush1.xpose.msra.mxu0 0.0
    %434 = vmatprep.subr.mxu0 0.0
    %435 = vmatpush1.xpose.msra.mxu0 0.0
    %436 = vmatprep.subr.mxu0 0.0
    %437 = vmatpush1.xpose.msra.mxu0 0.0
    %438 = vmatprep.subr.mxu0 0.0
    %439 = vmatpush1.xpose.msra.mxu0 0.0
    %440 = vmatprep.subr.mxu0 0.0
    %441 = vmatpush1.xpose.msra.mxu0 0.0
    %442 = vmatprep.subr.mxu0 0.0
    %443 = vmatpush1.xpose.msra.mxu0 0.0
    %444 = vmatprep.subr.mxu0 0.0
    %445 = vmatpush1.xpose.msra.mxu0 0.0
    %446 = vmatprep.subr.mxu0 0.0
    %447 = vmatpush1.xpose.msra.mxu0 0.0
    %448 = vmatprep.subr.mxu0 0.0
    %449 = vmatpush1.xpose.msra.mxu0 0.0
    %450 = vmatprep.mubr.f32.mxu0 0.0
    %451 = vmatmul.mubr.f32.gmra.mrb[0].mxu0 %v378
    %v452 = vpop.f32.mrb[0].mxu0
    %v453 = vadd.f32 0.0, %v452
    %v454 = vpop.f32.mrb[0].mxu0
    %455 = vdwg.mxu0
    %vm456 = vcmask 80896
    %v457 = vsel %vm456, %v453, -inf
    %458 = vmax.xlane.f32.xlu0 %v457
    %v459 = vpop.xlane.xlu0 %458
    %v460 = vsub.f32 %v453, %v459
    %v461 = vmul.f32 %v460, 1.442695
    %v462 = vpow.pop %v461
    %v463 = vsel %vm456, %v462, 0.0
    %464 = vadd.xlane.f32.xlu0 %v463
    %v465 = vpop.xlane.xlu0 %464
    %v466 = vrcp.pop %v465
    %v467 = vmul.f32 %v462, %v466
    %v469 = vsel %vm456, %v467, 0
    %vm471 = vcmask 1041408
    %v473 = vsel %vm471, %v368, 0
    %475 = vmatprep.subr.mxu0 0.0
    %476 = vmatpush1.msra.mxu0 %v363
    %477 = vmatprep.subr.mxu0 0.0
    %478 = vmatpush1.msra.mxu0 %v473
    %479 = vmatprep.subr.mxu0 0.0
    %480 = vmatpush1.msra.mxu0 0.0
    %481 = vmatprep.subr.mxu0 0.0
    %482 = vmatpush1.msra.mxu0 0.0
    %483 = vmatprep.subr.mxu0 0.0
    %484 = vmatpush1.msra.mxu0 0.0
    %485 = vmatprep.subr.mxu0 0.0
    %486 = vmatpush1.msra.mxu0 0.0
    %487 = vmatprep.subr.mxu0 0.0
    %488 = vmatpush1.msra.mxu0 0.0
    %489 = vmatprep.subr.mxu0 0.0
    %490 = vmatpush1.msra.mxu0 0.0
    %491 = vmatprep.subr.mxu0 0.0
    %492 = vmatpush1.msra.mxu0 0.0
    %493 = vmatprep.subr.mxu0 0.0
    %494 = vmatpush1.msra.mxu0 0.0
    %495 = vmatprep.subr.mxu0 0.0
    %496 = vmatpush1.msra.mxu0 0.0
    %497 = vmatprep.subr.mxu0 0.0
    %498 = vmatpush1.msra.mxu0 0.0
    %499 = vmatprep.subr.mxu0 0.0
    %500 = vmatpush1.msra.mxu0 0.0
    %501 = vmatprep.subr.mxu0 0.0
    %502 = vmatpush1.msra.mxu0 0.0
    %503 = vmatprep.subr.mxu0 0.0
    %504 = vmatpush1.msra.mxu0 0.0
    %505 = vmatprep.subr.mxu0 0.0
    %506 = vmatpush1.msra.mxu0 0.0
    %507 = vmatprep.subr.mxu0 0.0
    %508 = vmatpush1.msra.mxu0 0.0
    %509 = vmatprep.subr.mxu0 0.0
    %510 = vmatpush1.msra.mxu0 0.0
    %511 = vmatprep.subr.mxu0 0.0
    %512 = vmatpush1.msra.mxu0 0.0
    %513 = vmatprep.subr.mxu0 0.0
    %514 = vmatpush1.msra.mxu0 0.0
    %515 = vmatprep.subr.mxu0 0.0
    %516 = vmatpush1.msra.mxu0 0.0
    %517 = vmatprep.subr.mxu0 0.0
    %518 = vmatpush1.msra.mxu0 0.0
    %519 = vmatprep.subr.mxu0 0.0
    %520 = vmatpush1.msra.mxu0 0.0
    %521 = vmatprep.subr.mxu0 0.0
    %522 = vmatpush1.msra.mxu0 0.0
    %523 = vmatprep.subr.mxu0 0.0
    %524 = vmatpush1.msra.mxu0 0.0
    %525 = vmatprep.subr.mxu0 0.0
    %526 = vmatpush1.msra.mxu0 0.0
    %527 = vmatprep.subr.mxu0 0.0
    %528 = vmatpush1.msra.mxu0 0.0
    %529 = vmatprep.subr.mxu0 0.0
    %530 = vmatpush1.msra.mxu0 0.0
    %531 = vmatprep.subr.mxu0 0.0
    %532 = vmatpush1.msra.mxu0 0.0
    %533 = vmatprep.subr.mxu0 0.0
    %534 = vmatpush1.msra.mxu0 0.0
    %535 = vmatprep.subr.mxu0 0.0
    %536 = vmatpush1.msra.mxu0 0.0
    %537 = vmatprep.subr.mxu0 0.0
    %538 = vmatpush1.msra.mxu0 0.0
    %539 = vmatprep.mubr.f32.mxu0 0.0
    %540 = vmatmul.mubr.f32.gmra.mrb[0].mxu0 %v469
    %v541 = vpop.f32.mrb[0].mxu0
    %v542 = vadd.f32 0.0, %v541
    %v543 = vpop.f32.mrb[0].mxu0
    %544 = vdwg.mxu0
    %545 = vst.msk [vmem:[#allocation2] sm:$0xff] %vm376, %v542
    %546 = vrot.lane.b32.xlu0 %v189, 120
    %v547 = vpop.permute.xlu0 %546
    %548 = vrot.lane.b32.xlu0 %v280, 120
    %v549 = vpop.permute.xlu0 %548
    %550 = vrot.lane.b32.xlu0 %v285, 120
    %v551 = vpop.permute.xlu0 %550
    %v552 = vsel %vm376, %v547, 0
    %v554 = vsel %vm376, %v549, 0
    %v556 = vsel %vm376, %v551, 0
    %558 = vmatprep.subr.mxu0 0.0
    %559 = vmatpush1.xpose.msra.mxu0 %v554
    %560 = vmatprep.subr.mxu0 0.0
    %561 = vmatpush1.xpose.msra.mxu0 %v556
    %562 = vmatprep.subr.mxu0 0.0
    %563 = vmatpush1.xpose.msra.mxu0 0.0
    %564 = vmatprep.subr.mxu0 0.0
    %565 = vmatpush1.xpose.msra.mxu0 0.0
    %566 = vmatprep.subr.mxu0 0.0
    %567 = vmatpush1.xpose.msra.mxu0 0.0
    %568 = vmatprep.subr.mxu0 0.0
    %569 = vmatpush1.xpose.msra.mxu0 0.0
    %570 = vmatprep.subr.mxu0 0.0
    %571 = vmatpush1.xpose.msra.mxu0 0.0
    %572 = vmatprep.subr.mxu0 0.0
    %573 = vmatpush1.xpose.msra.mxu0 0.0
    %574 = vmatprep.subr.mxu0 0.0
    %575 = vmatpush1.xpose.msra.mxu0 0.0
    %576 = vmatprep.subr.mxu0 0.0
    %577 = vmatpush1.xpose.msra.mxu0 0.0
    %578 = vmatprep.subr.mxu0 0.0
    %579 = vmatpush1.xpose.msra.mxu0 0.0
    %580 = vmatprep.subr.mxu0 0.0
    %581 = vmatpush1.xpose.msra.mxu0 0.0
    %582 = vmatprep.subr.mxu0 0.0
    %583 = vmatpush1.xpose.msra.mxu0 0.0
    %584 = vmatprep.subr.mxu0 0.0
    %585 = vmatpush1.xpose.msra.mxu0 0.0
    %586 = vmatprep.subr.mxu0 0.0
    %587 = vmatpush1.xpose.msra.mxu0 0.0
    %588 = vmatprep.subr.mxu0 0.0
    %589 = vmatpush1.xpose.msra.mxu0 0.0
    %590 = vmatprep.subr.mxu0 0.0
    %591 = vmatpush1.xpose.msra.mxu0 0.0
    %592 = vmatprep.subr.mxu0 0.0
    %593 = vmatpush1.xpose.msra.mxu0 0.0
    %594 = vmatprep.subr.mxu0 0.0
    %595 = vmatpush1.xpose.msra.mxu0 0.0
    %596 = vmatprep.subr.mxu0 0.0
    %597 = vmatpush1.xpose.msra.mxu0 0.0
    %598 = vmatprep.subr.mxu0 0.0
    %599 = vmatpush1.xpose.msra.mxu0 0.0
    %600 = vmatprep.subr.mxu0 0.0
    %601 = vmatpush1.xpose.msra.mxu0 0.0
    %602 = vmatprep.subr.mxu0 0.0
    %603 = vmatpush1.xpose.msra.mxu0 0.0
    %604 = vmatprep.subr.mxu0 0.0
    %605 = vmatpush1.xpose.msra.mxu0 0.0
    %606 = vmatprep.subr.mxu0 0.0
    %607 = vmatpush1.xpose.msra.mxu0 0.0
    %608 = vmatprep.subr.mxu0 0.0
    %609 = vmatpush1.xpose.msra.mxu0 0.0
    %610 = vmatprep.subr.mxu0 0.0
    %611 = vmatpush1.xpose.msra.mxu0 0.0
    %612 = vmatprep.subr.mxu0 0.0
    %613 = vmatpush1.xpose.msra.mxu0 0.0
    %614 = vmatprep.subr.mxu0 0.0
    %615 = vmatpush1.xpose.msra.mxu0 0.0
    %616 = vmatprep.subr.mxu0 0.0
    %617 = vmatpush1.xpose.msra.mxu0 0.0
    %618 = vmatprep.subr.mxu0 0.0
    %619 = vmatpush1.xpose.msra.mxu0 0.0
    %620 = vmatprep.subr.mxu0 0.0
    %621 = vmatpush1.xpose.msra.mxu0 0.0
    %622 = vmatprep.mubr.f32.mxu0 0.0
    %623 = vmatmul.mubr.f32.gmra.mrb[0].mxu0 %v552
    %v624 = vpop.f32.mrb[0].mxu0
    %v625 = vadd.f32 0.0, %v624
    %v626 = vpop.f32.mrb[0].mxu0
    %627 = vdwg.mxu0
    %v628 = vsel %vm456, %v625, -inf
    %629 = vmax.xlane.f32.xlu0 %v628
    %v630 = vpop.xlane.xlu0 %629
    %v631 = vsub.f32 %v625, %v630
    %v632 = vmul.f32 %v631, 1.442695
    %v633 = vpow.pop %v632
    %v634 = vsel %vm456, %v633, 0.0
    %635 = vadd.xlane.f32.xlu0 %v634
    %v636 = vpop.xlane.xlu0 %635
    %v637 = vrcp.pop %v636
    %v638 = vmul.f32 %v633, %v637
    %640 = vrot.lane.b32.xlu0 %v363, 120
    %v641 = vpop.permute.xlu0 %640
    %642 = vrot.lane.b32.xlu0 %v368, 120
    %v643 = vpop.permute.xlu0 %642
    %v646 = vsel %vm456, %v638, 0
    %v648 = vsel %vm471, %v643, 0
    %650 = vmatprep.subr.mxu0 0.0
    %651 = vmatpush1.msra.mxu0 %v641
    %652 = vmatprep.subr.mxu0 0.0
    %653 = vmatpush1.msra.mxu0 %v648
    %654 = vmatprep.subr.mxu0 0.0
    %655 = vmatpush1.msra.mxu0 0.0
    %656 = vmatprep.subr.mxu0 0.0
    %657 = vmatpush1.msra.mxu0 0.0
    %658 = vmatprep.subr.mxu0 0.0
    %659 = vmatpush1.msra.mxu0 0.0
    %660 = vmatprep.subr.mxu0 0.0
    %661 = vmatpush1.msra.mxu0 0.0
    %662 = vmatprep.subr.mxu0 0.0
    %663 = vmatpush1.msra.mxu0 0.0
    %664 = vmatprep.subr.mxu0 0.0
    %665 = vmatpush1.msra.mxu0 0.0
    %666 = vmatprep.subr.mxu0 0.0
    %667 = vmatpush1.msra.mxu0 0.0
    %668 = vmatprep.subr.mxu0 0.0
    %669 = vmatpush1.msra.mxu0 0.0
    %670 = vmatprep.subr.mxu0 0.0
    %671 = vmatpush1.msra.mxu0 0.0
    %672 = vmatprep.subr.mxu0 0.0
    %673 = vmatpush1.msra.mxu0 0.0
    %674 = vmatprep.subr.mxu0 0.0
    %675 = vmatpush1.msra.mxu0 0.0
    %676 = vmatprep.subr.mxu0 0.0
    %677 = vmatpush1.msra.mxu0 0.0
    %678 = vmatprep.subr.mxu0 0.0
    %679 = vmatpush1.msra.mxu0 0.0
    %680 = vmatprep.subr.mxu0 0.0
    %681 = vmatpush1.msra.mxu0 0.0
    %682 = vmatprep.subr.mxu0 0.0
    %683 = vmatpush1.msra.mxu0 0.0
    %684 = vmatprep.subr.mxu0 0.0
    %685 = vmatpush1.msra.mxu0 0.0
    %686 = vmatprep.subr.mxu0 0.0
    %687 = vmatpush1.msra.mxu0 0.0
    %688 = vmatprep.subr.mxu0 0.0
    %689 = vmatpush1.msra.mxu0 0.0
    %690 = vmatprep.subr.mxu0 0.0
    %691 = vmatpush1.msra.mxu0 0.0
    %692 = vmatprep.subr.mxu0 0.0
    %693 = vmatpush1.msra.mxu0 0.0
    %694 = vmatprep.subr.mxu0 0.0
    %695 = vmatpush1.msra.mxu0 0.0
    %696 = vmatprep.subr.mxu0 0.0
    %697 = vmatpush1.msra.mxu0 0.0
    %698 = vmatprep.subr.mxu0 0.0
    %699 = vmatpush1.msra.mxu0 0.0
    %700 = vmatprep.subr.mxu0 0.0
    %701 = vmatpush1.msra.mxu0 0.0
    %702 = vmatprep.subr.mxu0 0.0
    %703 = vmatpush1.msra.mxu0 0.0
    %704 = vmatprep.subr.mxu0 0.0
    %705 = vmatpush1.msra.mxu0 0.0
    %706 = vmatprep.subr.mxu0 0.0
    %707 = vmatpush1.msra.mxu0 0.0
    %708 = vmatprep.subr.mxu0 0.0
    %709 = vmatpush1.msra.mxu0 0.0
    %710 = vmatprep.subr.mxu0 0.0
    %711 = vmatpush1.msra.mxu0 0.0
    %712 = vmatprep.subr.mxu0 0.0
    %713 = vmatpush1.msra.mxu0 0.0
    %714 = vmatprep.mubr.f32.mxu0 0.0
    %715 = vmatmul.mubr.f32.gmra.mrb[0].mxu0 %v646
    %v716 = vpop.f32.mrb[0].mxu0
    %v717 = vadd.f32 0.0, %v716
    %v718 = vpop.f32.mrb[0].mxu0
    %719 = vdwg.mxu0
    %721 = vrot.lane.b32.xlu0 %v717, 8
    %v722 = vpop.permute.xlu0 %721
    %vm724 = vcmask 130112
    %725 = vst.msk [vmem:[#allocation2] sm:$0xff] %vm724, %v722
    %726 = vrot.lane.b32.xlu0 %v189, 112
    %v727 = vpop.permute.xlu0 %726
    %728 = vrot.lane.b32.xlu0 %v280, 112
    %v729 = vpop.permute.xlu0 %728
    %730 = vrot.lane.b32.xlu0 %v285, 112
    %v731 = vpop.permute.xlu0 %730
    %v732 = vsel %vm376, %v727, 0
    %v734 = vsel %vm376, %v729, 0
    %v736 = vsel %vm376, %v731, 0
    %738 = vmatprep.subr.mxu0 0.0
    %739 = vmatpush1.xpose.msra.mxu0 %v734
    %740 = vmatprep.subr.mxu0 0.0
    %741 = vmatpush1.xpose.msra.mxu0 %v736
    %742 = vmatprep.subr.mxu0 0.0
    %743 = vmatpush1.xpose.msra.mxu0 0.0
    %744 = vmatprep.subr.mxu0 0.0
    %745 = vmatpush1.xpose.msra.mxu0 0.0
    %746 = vmatprep.subr.mxu0 0.0
    %747 = vmatpush1.xpose.msra.mxu0 0.0
    %748 = vmatprep.subr.mxu0 0.0
    %749 = vmatpush1.xpose.msra.mxu0 0.0
    %750 = vmatprep.subr.mxu0 0.0
    %751 = vmatpush1.xpose.msra.mxu0 0.0
    %752 = vmatprep.subr.mxu0 0.0
    %753 = vmatpush1.xpose.msra.mxu0 0.0
    %754 = vmatprep.subr.mxu0 0.0
    %755 = vmatpush1.xpose.msra.mxu0 0.0
    %756 = vmatprep.subr.mxu0 0.0
    %757 = vmatpush1.xpose.msra.mxu0 0.0
    %758 = vmatprep.subr.mxu0 0.0
    %759 = vmatpush1.xpose.msra.mxu0 0.0
    %760 = vmatprep.subr.mxu0 0.0
    %761 = vmatpush1.xpose.msra.mxu0 0.0
    %762 = vmatprep.subr.mxu0 0.0
    %763 = vmatpush1.xpose.msra.mxu0 0.0
    %764 = vmatprep.subr.mxu0 0.0
    %765 = vmatpush1.xpose.msra.mxu0 0.0
    %766 = vmatprep.subr.mxu0 0.0
    %767 = vmatpush1.xpose.msra.mxu0 0.0
    %768 = vmatprep.subr.mxu0 0.0
    %769 = vmatpush1.xpose.msra.mxu0 0.0
    %770 = vmatprep.subr.mxu0 0.0
    %771 = vmatpush1.xpose.msra.mxu0 0.0
    %772 = vmatprep.subr.mxu0 0.0
    %773 = vmatpush1.xpose.msra.mxu0 0.0
    %774 = vmatprep.subr.mxu0 0.0
    %775 = vmatpush1.xpose.msra.mxu0 0.0
    %776 = vmatprep.subr.mxu0 0.0
    %777 = vmatpush1.xpose.msra.mxu0 0.0
    %778 = vmatprep.subr.mxu0 0.0
    %779 = vmatpush1.xpose.msra.mxu0 0.0
    %780 = vmatprep.subr.mxu0 0.0
    %781 = vmatpush1.xpose.msra.mxu0 0.0
    %782 = vmatprep.subr.mxu0 0.0
    %783 = vmatpush1.xpose.msra.mxu0 0.0
    %784 = vmatprep.subr.mxu0 0.0
    %785 = vmatpush1.xpose.msra.mxu0 0.0
    %786 = vmatprep.subr.mxu0 0.0
    %787 = vmatpush1.xpose.msra.mxu0 0.0
    %788 = vmatprep.subr.mxu0 0.0
    %789 = vmatpush1.xpose.msra.mxu0 0.0
    %790 = vmatprep.subr.mxu0 0.0
    %791 = vmatpush1.xpose.msra.mxu0 0.0
    %792 = vmatprep.subr.mxu0 0.0
    %793 = vmatpush1.xpose.msra.mxu0 0.0
    %794 = vmatprep.subr.mxu0 0.0
    %795 = vmatpush1.xpose.msra.mxu0 0.0
    %796 = vmatprep.subr.mxu0 0.0
    %797 = vmatpush1.xpose.msra.mxu0 0.0
    %798 = vmatprep.subr.mxu0 0.0
    %799 = vmatpush1.xpose.msra.mxu0 0.0
    %800 = vmatprep.subr.mxu0 0.0
    %801 = vmatpush1.xpose.msra.mxu0 0.0
    %802 = vmatprep.mubr.f32.mxu0 0.0
    %803 = vmatmul.mubr.f32.gmra.mrb[0].mxu0 %v732
    %v804 = vpop.f32.mrb[0].mxu0
    %v805 = vadd.f32 0.0, %v804
    %v806 = vpop.f32.mrb[0].mxu0
    %807 = vdwg.mxu0
    %v808 = vsel %vm456, %v805, -inf
    %809 = vmax.xlane.f32.xlu0 %v808
    %v810 = vpop.xlane.xlu0 %809
    %v811 = vsub.f32 %v805, %v810
    %v812 = vmul.f32 %v811, 1.442695
    %v813 = vpow.pop %v812
    %v814 = vsel %vm456, %v813, 0.0
    %815 = vadd.xlane.f32.xlu0 %v814
    %v816 = vpop.xlane.xlu0 %815
    %v817 = vrcp.pop %v816
    %v818 = vmul.f32 %v813, %v817
    %819 = vrot.lane.b32.xlu0 %v363, 112
    %v820 = vpop.permute.xlu0 %819
    %821 = vrot.lane.b32.xlu0 %v368, 112
    %v822 = vpop.permute.xlu0 %821
    %v825 = vsel %vm456, %v818, 0
    %v827 = vsel %vm471, %v822, 0
    %829 = vmatprep.subr.mxu0 0.0
    %830 = vmatpush1.msra.mxu0 %v820
    %831 = vmatprep.subr.mxu0 0.0
    %832 = vmatpush1.msra.mxu0 %v827
    %833 = vmatprep.subr.mxu0 0.0
    %834 = vmatpush1.msra.mxu0 0.0
    %835 = vmatprep.subr.mxu0 0.0
    %836 = vmatpush1.msra.mxu0 0.0
    %837 = vmatprep.subr.mxu0 0.0
    %838 = vmatpush1.msra.mxu0 0.0
    %839 = vmatprep.subr.mxu0 0.0
    %840 = vmatpush1.msra.mxu0 0.0
    %841 = vmatprep.subr.mxu0 0.0
    %842 = vmatpush1.msra.mxu0 0.0
    %843 = vmatprep.subr.mxu0 0.0
    %844 = vmatpush1.msra.mxu0 0.0
    %845 = vmatprep.subr.mxu0 0.0
    %846 = vmatpush1.msra.mxu0 0.0
    %847 = vmatprep.subr.mxu0 0.0
    %848 = vmatpush1.msra.mxu0 0.0
    %849 = vmatprep.subr.mxu0 0.0
    %850 = vmatpush1.msra.mxu0 0.0
    %851 = vmatprep.subr.mxu0 0.0
    %852 = vmatpush1.msra.mxu0 0.0
    %853 = vmatprep.subr.mxu0 0.0
    %854 = vmatpush1.msra.mxu0 0.0
    %855 = vmatprep.subr.mxu0 0.0
    %856 = vmatpush1.msra.mxu0 0.0
    %857 = vmatprep.subr.mxu0 0.0
    %858 = vmatpush1.msra.mxu0 0.0
    %859 = vmatprep.subr.mxu0 0.0
    %860 = vmatpush1.msra.mxu0 0.0
    %861 = vmatprep.subr.mxu0 0.0
    %862 = vmatpush1.msra.mxu0 0.0
    %863 = vmatprep.subr.mxu0 0.0
    %864 = vmatpush1.msra.mxu0 0.0
    %865 = vmatprep.subr.mxu0 0.0
    %866 = vmatpush1.msra.mxu0 0.0
    %867 = vmatprep.subr.mxu0 0.0
    %868 = vmatpush1.msra.mxu0 0.0
    %869 = vmatprep.subr.mxu0 0.0
    %870 = vmatpush1.msra.mxu0 0.0
    %871 = vmatprep.subr.mxu0 0.0
    %872 = vmatpush1.msra.mxu0 0.0
    %873 = vmatprep.subr.mxu0 0.0
    %874 = vmatpush1.msra.mxu0 0.0
    %875 = vmatprep.subr.mxu0 0.0
    %876 = vmatpush1.msra.mxu0 0.0
    %877 = vmatprep.subr.mxu0 0.0
    %878 = vmatpush1.msra.mxu0 0.0
    %879 = vmatprep.subr.mxu0 0.0
    %880 = vmatpush1.msra.mxu0 0.0
    %881 = vmatprep.subr.mxu0 0.0
    %882 = vmatpush1.msra.mxu0 0.0
    %883 = vmatprep.subr.mxu0 0.0
    %884 = vmatpush1.msra.mxu0 0.0
    %885 = vmatprep.subr.mxu0 0.0
    %886 = vmatpush1.msra.mxu0 0.0
    %887 = vmatprep.subr.mxu0 0.0
    %888 = vmatpush1.msra.mxu0 0.0
    %889 = vmatprep.subr.mxu0 0.0
    %890 = vmatpush1.msra.mxu0 0.0
    %891 = vmatprep.subr.mxu0 0.0
    %892 = vmatpush1.msra.mxu0 0.0
    %893 = vmatprep.mubr.f32.mxu0 0.0
    %894 = vmatmul.mubr.f32.gmra.mrb[0].mxu0 %v825
    %v895 = vpop.f32.mrb[0].mxu0
    %v896 = vadd.f32 0.0, %v895
    %v897 = vpop.f32.mrb[0].mxu0
    %898 = vdwg.mxu0
    %900 = vrot.lane.b32.xlu0 %v896, 16
    %v901 = vpop.permute.xlu0 %900
    %vm903 = vcmask 195712
    %904 = vst.msk [vmem:[#allocation2] sm:$0xff] %vm903, %v901
    %905 = vrot.lane.b32.xlu0 %v189, 104
    %v906 = vpop.permute.xlu0 %905
    %907 = vrot.lane.b32.xlu0 %v280, 104
    %v908 = vpop.permute.xlu0 %907
    %909 = vrot.lane.b32.xlu0 %v285, 104
    %v910 = vpop.permute.xlu0 %909
    %v911 = vsel %vm376, %v906, 0
    %v913 = vsel %vm376, %v908, 0
    %v915 = vsel %vm376, %v910, 0
    %917 = vmatprep.subr.mxu0 0.0
    %918 = vmatpush1.xpose.msra.mxu0 %v913
    %919 = vmatprep.subr.mxu0 0.0
    %920 = vmatpush1.xpose.msra.mxu0 %v915
    %921 = vmatprep.subr.mxu0 0.0
    %922 = vmatpush1.xpose.msra.mxu0 0.0
    %923 = vmatprep.subr.mxu0 0.0
    %924 = vmatpush1.xpose.msra.mxu0 0.0
    %925 = vmatprep.subr.mxu0 0.0
    %926 = vmatpush1.xpose.msra.mxu0 0.0
    %927 = vmatprep.subr.mxu0 0.0
    %928 = vmatpush1.xpose.msra.mxu0 0.0
    %929 = vmatprep.subr.mxu0 0.0
    %930 = vmatpush1.xpose.msra.mxu0 0.0
    %931 = vmatprep.subr.mxu0 0.0
    %932 = vmatpush1.xpose.msra.mxu0 0.0
    %933 = vmatprep.subr.mxu0 0.0
    %934 = vmatpush1.xpose.msra.mxu0 0.0
    %935 = vmatprep.subr.mxu0 0.0
    %936 = vmatpush1.xpose.msra.mxu0 0.0
    %937 = vmatprep.subr.mxu0 0.0
    %938 = vmatpush1.xpose.msra.mxu0 0.0
    %939 = vmatprep.subr.mxu0 0.0
    %940 = vmatpush1.xpose.msra.mxu0 0.0
    %941 = vmatprep.subr.mxu0 0.0
    %942 = vmatpush1.xpose.msra.mxu0 0.0
    %943 = vmatprep.subr.mxu0 0.0
    %944 = vmatpush1.xpose.msra.mxu0 0.0
    %945 = vmatprep.subr.mxu0 0.0
    %946 = vmatpush1.xpose.msra.mxu0 0.0
    %947 = vmatprep.subr.mxu0 0.0
    %948 = vmatpush1.xpose.msra.mxu0 0.0
    %949 = vmatprep.subr.mxu0 0.0
    %950 = vmatpush1.xpose.msra.mxu0 0.0
    %951 = vmatprep.subr.mxu0 0.0
    %952 = vmatpush1.xpose.msra.mxu0 0.0
    %953 = vmatprep.subr.mxu0 0.0
    %954 = vmatpush1.xpose.msra.mxu0 0.0
    %955 = vmatprep.subr.mxu0 0.0
    %956 = vmatpush1.xpose.msra.mxu0 0.0
    %957 = vmatprep.subr.mxu0 0.0
    %958 = vmatpush1.xpose.msra.mxu0 0.0
    %959 = vmatprep.subr.mxu0 0.0
    %960 = vmatpush1.xpose.msra.mxu0 0.0
    %961 = vmatprep.subr.mxu0 0.0
    %962 = vmatpush1.xpose.msra.mxu0 0.0
    %963 = vmatprep.subr.mxu0 0.0
    %964 = vmatpush1.xpose.msra.mxu0 0.0
    %965 = vmatprep.subr.mxu0 0.0
    %966 = vmatpush1.xpose.msra.mxu0 0.0
    %967 = vmatprep.subr.mxu0 0.0
    %968 = vmatpush1.xpose.msra.mxu0 0.0
    %969 = vmatprep.subr.mxu0 0.0
    %970 = vmatpush1.xpose.msra.mxu0 0.0
    %971 = vmatprep.subr.mxu0 0.0
    %972 = vmatpush1.xpose.msra.mxu0 0.0
    %973 = vmatprep.subr.mxu0 0.0
    %974 = vmatpush1.xpose.msra.mxu0 0.0
    %975 = vmatprep.subr.mxu0 0.0
    %976 = vmatpush1.xpose.msra.mxu0 0.0
    %977 = vmatprep.subr.mxu0 0.0
    %978 = vmatpush1.xpose.msra.mxu0 0.0
    %979 = vmatprep.subr.mxu0 0.0
    %980 = vmatpush1.xpose.msra.mxu0 0.0
    %981 = vmatprep.mubr.f32.mxu0 0.0
    %982 = vmatmul.mubr.f32.gmra.mrb[0].mxu0 %v911
    %v983 = vpop.f32.mrb[0].mxu0
    %v984 = vadd.f32 0.0, %v983
    %v985 = vpop.f32.mrb[0].mxu0
    %986 = vdwg.mxu0
    %v987 = vsel %vm456, %v984, -inf
    %988 = vmax.xlane.f32.xlu0 %v987
    %v989 = vpop.xlane.xlu0 %988
    %v990 = vsub.f32 %v984, %v989
    %v991 = vmul.f32 %v990, 1.442695
    %v992 = vpow.pop %v991
    %v993 = vsel %vm456, %v992, 0.0
    %994 = vadd.xlane.f32.xlu0 %v993
    %v995 = vpop.xlane.xlu0 %994
    %v996 = vrcp.pop %v995
    %v997 = vmul.f32 %v992, %v996
    %998 = vrot.lane.b32.xlu0 %v363, 104
    %v999 = vpop.permute.xlu0 %998
    %1000 = vrot.lane.b32.xlu0 %v368, 104
    %v1001 = vpop.permute.xlu0 %1000
    %v1004 = vsel %vm456, %v997, 0
    %v1006 = vsel %vm471, %v1001, 0
    %1008 = vmatprep.subr.mxu0 0.0
    %1009 = vmatpush1.msra.mxu0 %v999
    %1010 = vmatprep.subr.mxu0 0.0
    %1011 = vmatpush1.msra.mxu0 %v1006
    %1012 = vmatprep.subr.mxu0 0.0
    %1013 = vmatpush1.msra.mxu0 0.0
    %1014 = vmatprep.subr.mxu0 0.0
    %1015 = vmatpush1.msra.mxu0 0.0
    %1016 = vmatprep.subr.mxu0 0.0
    %1017 = vmatpush1.msra.mxu0 0.0
    %1018 = vmatprep.subr.mxu0 0.0
    %1019 = vmatpush1.msra.mxu0 0.0
    %1020 = vmatprep.subr.mxu0 0.0
    %1021 = vmatpush1.msra.mxu0 0.0
    %1022 = vmatprep.subr.mxu0 0.0
    %1023 = vmatpush1.msra.mxu0 0.0
    %1024 = vmatprep.subr.mxu0 0.0
    %1025 = vmatpush1.msra.mxu0 0.0
    %1026 = vmatprep.subr.mxu0 0.0
    %1027 = vmatpush1.msra.mxu0 0.0
    %1028 = vmatprep.subr.mxu0 0.0
    %1029 = vmatpush1.msra.mxu0 0.0
    %1030 = vmatprep.subr.mxu0 0.0
    %1031 = vmatpush1.msra.mxu0 0.0
    %1032 = vmatprep.subr.mxu0 0.0
    %1033 = vmatpush1.msra.mxu0 0.0
    %1034 = vmatprep.subr.mxu0 0.0
    %1035 = vmatpush1.msra.mxu0 0.0
    %1036 = vmatprep.subr.mxu0 0.0
    %1037 = vmatpush1.msra.mxu0 0.0
    %1038 = vmatprep.subr.mxu0 0.0
    %1039 = vmatpush1.msra.mxu0 0.0
    %1040 = vmatprep.subr.mxu0 0.0
    %1041 = vmatpush1.msra.mxu0 0.0
    %1042 = vmatprep.subr.mxu0 0.0
    %1043 = vmatpush1.msra.mxu0 0.0
    %1044 = vmatprep.subr.mxu0 0.0
    %1045 = vmatpush1.msra.mxu0 0.0
    %1046 = vmatprep.subr.mxu0 0.0
    %1047 = vmatpush1.msra.mxu0 0.0
    %1048 = vmatprep.subr.mxu0 0.0
    %1049 = vmatpush1.msra.mxu0 0.0
    %1050 = vmatprep.subr.mxu0 0.0
    %1051 = vmatpush1.msra.mxu0 0.0
    %1052 = vmatprep.subr.mxu0 0.0
    %1053 = vmatpush1.msra.mxu0 0.0
    %1054 = vmatprep.subr.mxu0 0.0
    %1055 = vmatpush1.msra.mxu0 0.0
    %1056 = vmatprep.subr.mxu0 0.0
    %1057 = vmatpush1.msra.mxu0 0.0
    %1058 = vmatprep.subr.mxu0 0.0
    %1059 = vmatpush1.msra.mxu0 0.0
    %1060 = vmatprep.subr.mxu0 0.0
    %1061 = vmatpush1.msra.mxu0 0.0
    %1062 = vmatprep.subr.mxu0 0.0
    %1063 = vmatpush1.msra.mxu0 0.0
    %1064 = vmatprep.subr.mxu0 0.0
    %1065 = vmatpush1.msra.mxu0 0.0
    %1066 = vmatprep.subr.mxu0 0.0
    %1067 = vmatpush1.msra.mxu0 0.0
    %1068 = vmatprep.subr.mxu0 0.0
    %1069 = vmatpush1.msra.mxu0 0.0
    %1070 = vmatprep.subr.mxu0 0.0
    %1071 = vmatpush1.msra.mxu0 0.0
    %1072 = vmatprep.mubr.f32.mxu0 0.0
    %1073 = vmatmul.mubr.f32.gmra.mrb[0].mxu0 %v1004
    %v1074 = vpop.f32.mrb[0].mxu0
    %v1075 = vadd.f32 0.0, %v1074
    %v1076 = vpop.f32.mrb[0].mxu0
    %1077 = vdwg.mxu0
    %1079 = vrot.lane.b32.xlu0 %v1075, 24
    %v1080 = vpop.permute.xlu0 %1079
    %vm1082 = vcmask 261312
    %1083 = vst.msk [vmem:[#allocation2] sm:$0xff] %vm1082, %v1080
    %vm1085 = vcmask 1045504
    %v1086 = vrot.slane %v285, 2
    %v1087 = vrot.slane %v290, 2
    %v1088 = vsel %vm1085, %v1086, %v1087
    %v1090 = vsel %vm376, %v194, 0
    %v1092 = vsel %vm376, %v1088, 0
    %v1094 = vsel %vm376, %v1087, 0
    %1096 = vmatprep.subr.mxu0 0.0
    %1097 = vmatpush1.xpose.msra.mxu0 %v1092
    %1098 = vmatprep.subr.mxu0 0.0
    %1099 = vmatpush1.xpose.msra.mxu0 %v1094
    %1100 = vmatprep.subr.mxu0 0.0
    %1101 = vmatpush1.xpose.msra.mxu0 0.0
    %1102 = vmatprep.subr.mxu0 0.0
    %1103 = vmatpush1.xpose.msra.mxu0 0.0
    %1104 = vmatprep.subr.mxu0 0.0
    %1105 = vmatpush1.xpose.msra.mxu0 0.0
    %1106 = vmatprep.subr.mxu0 0.0
    %1107 = vmatpush1.xpose.msra.mxu0 0.0
    %1108 = vmatprep.subr.mxu0 0.0
    %1109 = vmatpush1.xpose.msra.mxu0 0.0
    %1110 = vmatprep.subr.mxu0 0.0
    %1111 = vmatpush1.xpose.msra.mxu0 0.0
    %1112 = vmatprep.subr.mxu0 0.0
    %1113 = vmatpush1.xpose.msra.mxu0 0.0
    %1114 = vmatprep.subr.mxu0 0.0
    %1115 = vmatpush1.xpose.msra.mxu0 0.0
    %1116 = vmatprep.subr.mxu0 0.0
    %1117 = vmatpush1.xpose.msra.mxu0 0.0
    %1118 = vmatprep.subr.mxu0 0.0
    %1119 = vmatpush1.xpose.msra.mxu0 0.0
    %1120 = vmatprep.subr.mxu0 0.0
    %1121 = vmatpush1.xpose.msra.mxu0 0.0
    %1122 = vmatprep.subr.mxu0 0.0
    %1123 = vmatpush1.xpose.msra.mxu0 0.0
    %1124 = vmatprep.subr.mxu0 0.0
    %1125 = vmatpush1.xpose.msra.mxu0 0.0
    %1126 = vmatprep.subr.mxu0 0.0
    %1127 = vmatpush1.xpose.msra.mxu0 0.0
    %1128 = vmatprep.subr.mxu0 0.0
    %1129 = vmatpush1.xpose.msra.mxu0 0.0
    %1130 = vmatprep.subr.mxu0 0.0
    %1131 = vmatpush1.xpose.msra.mxu0 0.0
    %1132 = vmatprep.subr.mxu0 0.0
    %1133 = vmatpush1.xpose.msra.mxu0 0.0
    %1134 = vmatprep.subr.mxu0 0.0
    %1135 = vmatpush1.xpose.msra.mxu0 0.0
    %1136 = vmatprep.subr.mxu0 0.0
    %1137 = vmatpush1.xpose.msra.mxu0 0.0
    %1138 = vmatprep.subr.mxu0 0.0
    %1139 = vmatpush1.xpose.msra.mxu0 0.0
    %1140 = vmatprep.subr.mxu0 0.0
    %1141 = vmatpush1.xpose.msra.mxu0 0.0
    %1142 = vmatprep.subr.mxu0 0.0
    %1143 = vmatpush1.xpose.msra.mxu0 0.0
    %1144 = vmatprep.subr.mxu0 0.0
    %1145 = vmatpush1.xpose.msra.mxu0 0.0
    %1146 = vmatprep.subr.mxu0 0.0
    %1147 = vmatpush1.xpose.msra.mxu0 0.0
    %1148 = vmatprep.subr.mxu0 0.0
    %1149 = vmatpush1.xpose.msra.mxu0 0.0
    %1150 = vmatprep.subr.mxu0 0.0
    %1151 = vmatpush1.xpose.msra.mxu0 0.0
    %1152 = vmatprep.subr.mxu0 0.0
    %1153 = vmatpush1.xpose.msra.mxu0 0.0
    %1154 = vmatprep.subr.mxu0 0.0
    %1155 = vmatpush1.xpose.msra.mxu0 0.0
    %1156 = vmatprep.subr.mxu0 0.0
    %1157 = vmatpush1.xpose.msra.mxu0 0.0
    %1158 = vmatprep.subr.mxu0 0.0
    %1159 = vmatpush1.xpose.msra.mxu0 0.0
    %1160 = vmatprep.mubr.f32.mxu0 0.0
    %1161 = vmatmul.mubr.f32.gmra.mrb[0].mxu0 %v1090
    %v1162 = vpop.f32.mrb[0].mxu0
    %v1163 = vadd.f32 0.0, %v1162
    %v1164 = vpop.f32.mrb[0].mxu0
    %1165 = vdwg.mxu0
    %v1166 = vsel %vm456, %v1163, -inf
    %1167 = vmax.xlane.f32.xlu0 %v1166
    %v1168 = vpop.xlane.xlu0 %1167
    %v1169 = vsub.f32 %v1163, %v1168
    %v1170 = vmul.f32 %v1169, 1.442695
    %v1171 = vpow.pop %v1170
    %v1172 = vsel %vm456, %v1171, 0.0
    %1173 = vadd.xlane.f32.xlu0 %v1172
    %v1174 = vpop.xlane.xlu0 %1173
    %v1175 = vrcp.pop %v1174
    %v1176 = vmul.f32 %v1171, %v1175
    %v1178 = vrot.slane %v368, 2
    %v1179 = vrot.slane %v373, 2
    %v1180 = vsel %vm1085, %v1178, %v1179
    %v1183 = vsel %vm456, %v1176, 0
    %v1185 = vsel %vm471, %v1179, 0
    %1187 = vmatprep.subr.mxu0 0.0
    %1188 = vmatpush1.msra.mxu0 %v1180
    %1189 = vmatprep.subr.mxu0 0.0
    %1190 = vmatpush1.msra.mxu0 %v1185
    %1191 = vmatprep.subr.mxu0 0.0
    %1192 = vmatpush1.msra.mxu0 0.0
    %1193 = vmatprep.subr.mxu0 0.0
    %1194 = vmatpush1.msra.mxu0 0.0
    %1195 = vmatprep.subr.mxu0 0.0
    %1196 = vmatpush1.msra.mxu0 0.0
    %1197 = vmatprep.subr.mxu0 0.0
    %1198 = vmatpush1.msra.mxu0 0.0
    %1199 = vmatprep.subr.mxu0 0.0
    %1200 = vmatpush1.msra.mxu0 0.0
    %1201 = vmatprep.subr.mxu0 0.0
    %1202 = vmatpush1.msra.mxu0 0.0
    %1203 = vmatprep.subr.mxu0 0.0
    %1204 = vmatpush1.msra.mxu0 0.0
    %1205 = vmatprep.subr.mxu0 0.0
    %1206 = vmatpush1.msra.mxu0 0.0
    %1207 = vmatprep.subr.mxu0 0.0
    %1208 = vmatpush1.msra.mxu0 0.0
    %1209 = vmatprep.subr.mxu0 0.0
    %1210 = vmatpush1.msra.mxu0 0.0
    %1211 = vmatprep.subr.mxu0 0.0
    %1212 = vmatpush1.msra.mxu0 0.0
    %1213 = vmatprep.subr.mxu0 0.0
    %1214 = vmatpush1.msra.mxu0 0.0
    %1215 = vmatprep.subr.mxu0 0.0
    %1216 = vmatpush1.msra.mxu0 0.0
    %1217 = vmatprep.subr.mxu0 0.0
    %1218 = vmatpush1.msra.mxu0 0.0
    %1219 = vmatprep.subr.mxu0 0.0
    %1220 = vmatpush1.msra.mxu0 0.0
    %1221 = vmatprep.subr.mxu0 0.0
    %1222 = vmatpush1.msra.mxu0 0.0
    %1223 = vmatprep.subr.mxu0 0.0
    %1224 = vmatpush1.msra.mxu0 0.0
    %1225 = vmatprep.subr.mxu0 0.0
    %1226 = vmatpush1.msra.mxu0 0.0
    %1227 = vmatprep.subr.mxu0 0.0
    %1228 = vmatpush1.msra.mxu0 0.0
    %1229 = vmatprep.subr.mxu0 0.0
    %1230 = vmatpush1.msra.mxu0 0.0
    %1231 = vmatprep.subr.mxu0 0.0
    %1232 = vmatpush1.msra.mxu0 0.0
    %1233 = vmatprep.subr.mxu0 0.0
    %1234 = vmatpush1.msra.mxu0 0.0
    %1235 = vmatprep.subr.mxu0 0.0
    %1236 = vmatpush1.msra.mxu0 0.0
    %1237 = vmatprep.subr.mxu0 0.0
    %1238 = vmatpush1.msra.mxu0 0.0
    %1239 = vmatprep.subr.mxu0 0.0
    %1240 = vmatpush1.msra.mxu0 0.0
    %1241 = vmatprep.subr.mxu0 0.0
    %1242 = vmatpush1.msra.mxu0 0.0
    %1243 = vmatprep.subr.mxu0 0.0
    %1244 = vmatpush1.msra.mxu0 0.0
    %1245 = vmatprep.subr.mxu0 0.0
    %1246 = vmatpush1.msra.mxu0 0.0
    %1247 = vmatprep.subr.mxu0 0.0
    %1248 = vmatpush1.msra.mxu0 0.0
    %1249 = vmatprep.subr.mxu0 0.0
    %1250 = vmatpush1.msra.mxu0 0.0
    %1251 = vmatprep.mubr.f32.mxu0 0.0
    %1252 = vmatmul.mubr.f32.gmra.mrb[0].mxu0 %v1183
    %v1253 = vpop.f32.mrb[0].mxu0
    %v1254 = vadd.f32 0.0, %v1253
    %v1255 = vpop.f32.mrb[0].mxu0
    %1256 = vdwg.mxu0
    %1257 = vst.msk [vmem:[#allocation2 + $0x8] sm:$0xff] %vm376, %v1254
    %1258 = vrot.lane.b32.xlu0 %v194, 120
    %v1259 = vpop.permute.xlu0 %1258
    %1260 = vrot.lane.b32.xlu0 %v1088, 120
    %v1261 = vpop.permute.xlu0 %1260
    %1262 = vrot.lane.b32.xlu0 %v1087, 120
    %v1263 = vpop.permute.xlu0 %1262
    %v1264 = vsel %vm376, %v1259, 0
    %v1266 = vsel %vm376, %v1261, 0
    %v1268 = vsel %vm376, %v1263, 0
    %1270 = vmatprep.subr.mxu0 0.0
    %1271 = vmatpush1.xpose.msra.mxu0 %v1266
    %1272 = vmatprep.subr.mxu0 0.0
    %1273 = vmatpush1.xpose.msra.mxu0 %v1268
    %1274 = vmatprep.subr.mxu0 0.0
    %1275 = vmatpush1.xpose.msra.mxu0 0.0
    %1276 = vmatprep.subr.mxu0 0.0
    %1277 = vmatpush1.xpose.msra.mxu0 0.0
    %1278 = vmatprep.subr.mxu0 0.0
    %1279 = vmatpush1.xpose.msra.mxu0 0.0
    %1280 = vmatprep.subr.mxu0 0.0
    %1281 = vmatpush1.xpose.msra.mxu0 0.0
    %1282 = vmatprep.subr.mxu0 0.0
    %1283 = vmatpush1.xpose.msra.mxu0 0.0
    %1284 = vmatprep.subr.mxu0 0.0
    %1285 = vmatpush1.xpose.msra.mxu0 0.0
    %1286 = vmatprep.subr.mxu0 0.0
    %1287 = vmatpush1.xpose.msra.mxu0 0.0
    %1288 = vmatprep.subr.mxu0 0.0
    %1289 = vmatpush1.xpose.msra.mxu0 0.0
    %1290 = vmatprep.subr.mxu0 0.0
    %1291 = vmatpush1.xpose.msra.mxu0 0.0
    %1292 = vmatprep.subr.mxu0 0.0
    %1293 = vmatpush1.xpose.msra.mxu0 0.0
    %1294 = vmatprep.subr.mxu0 0.0
    %1295 = vmatpush1.xpose.msra.mxu0 0.0
    %1296 = vmatprep.subr.mxu0 0.0
    %1297 = vmatpush1.xpose.msra.mxu0 0.0
    %1298 = vmatprep.subr.mxu0 0.0
    %1299 = vmatpush1.xpose.msra.mxu0 0.0
    %1300 = vmatprep.subr.mxu0 0.0
    %1301 = vmatpush1.xpose.msra.mxu0 0.0
    %1302 = vmatprep.subr.mxu0 0.0
    %1303 = vmatpush1.xpose.msra.mxu0 0.0
    %1304 = vmatprep.subr.mxu0 0.0
    %1305 = vmatpush1.xpose.msra.mxu0 0.0
    %1306 = vmatprep.subr.mxu0 0.0
    %1307 = vmatpush1.xpose.msra.mxu0 0.0
    %1308 = vmatprep.subr.mxu0 0.0
    %1309 = vmatpush1.xpose.msra.mxu0 0.0
    %1310 = vmatprep.subr.mxu0 0.0
    %1311 = vmatpush1.xpose.msra.mxu0 0.0
    %1312 = vmatprep.subr.mxu0 0.0
    %1313 = vmatpush1.xpose.msra.mxu0 0.0
    %1314 = vmatprep.subr.mxu0 0.0
    %1315 = vmatpush1.xpose.msra.mxu0 0.0
    %1316 = vmatprep.subr.mxu0 0.0
    %1317 = vmatpush1.xpose.msra.mxu0 0.0
    %1318 = vmatprep.subr.mxu0 0.0
    %1319 = vmatpush1.xpose.msra.mxu0 0.0
    %1320 = vmatprep.subr.mxu0 0.0
    %1321 = vmatpush1.xpose.msra.mxu0 0.0
    %1322 = vmatprep.subr.mxu0 0.0
    %1323 = vmatpush1.xpose.msra.mxu0 0.0
    %1324 = vmatprep.subr.mxu0 0.0
    %1325 = vmatpush1.xpose.msra.mxu0 0.0
    %1326 = vmatprep.subr.mxu0 0.0
    %1327 = vmatpush1.xpose.msra.mxu0 0.0
    %1328 = vmatprep.subr.mxu0 0.0
    %1329 = vmatpush1.xpose.msra.mxu0 0.0
    %1330 = vmatprep.subr.mxu0 0.0
    %1331 = vmatpush1.xpose.msra.mxu0 0.0
    %1332 = vmatprep.subr.mxu0 0.0
    %1333 = vmatpush1.xpose.msra.mxu0 0.0
    %1334 = vmatprep.mubr.f32.mxu0 0.0
    %1335 = vmatmul.mubr.f32.gmra.mrb[0].mxu0 %v1264
    %v1336 = vpop.f32.mrb[0].mxu0
    %v1337 = vadd.f32 0.0, %v1336
    %v1338 = vpop.f32.mrb[0].mxu0
    %1339 = vdwg.mxu0
    %v1340 = vsel %vm456, %v1337, -inf
    %1341 = vmax.xlane.f32.xlu0 %v1340
    %v1342 = vpop.xlane.xlu0 %1341
    %v1343 = vsub.f32 %v1337, %v1342
    %v1344 = vmul.f32 %v1343, 1.442695
    %v1345 = vpow.pop %v1344
    %v1346 = vsel %vm456, %v1345, 0.0
    %1347 = vadd.xlane.f32.xlu0 %v1346
    %v1348 = vpop.xlane.xlu0 %1347
    %v1349 = vrcp.pop %v1348
    %v1350 = vmul.f32 %v1345, %v1349
    %1351 = vrot.lane.b32.xlu0 %v1180, 120
    %v1352 = vpop.permute.xlu0 %1351
    %1353 = vrot.lane.b32.xlu0 %v1179, 120
    %v1354 = vpop.permute.xlu0 %1353
    %v1357 = vsel %vm456, %v1350, 0
    %v1359 = vsel %vm471, %v1354, 0
    %1361 = vmatprep.subr.mxu0 0.0
    %1362 = vmatpush1.msra.mxu0 %v1352
    %1363 = vmatprep.subr.mxu0 0.0
    %1364 = vmatpush1.msra.mxu0 %v1359
    %1365 = vmatprep.subr.mxu0 0.0
    %1366 = vmatpush1.msra.mxu0 0.0
    %1367 = vmatprep.subr.mxu0 0.0
    %1368 = vmatpush1.msra.mxu0 0.0
    %1369 = vmatprep.subr.mxu0 0.0
    %1370 = vmatpush1.msra.mxu0 0.0
    %1371 = vmatprep.subr.mxu0 0.0
    %1372 = vmatpush1.msra.mxu0 0.0
    %1373 = vmatprep.subr.mxu0 0.0
    %1374 = vmatpush1.msra.mxu0 0.0
    %1375 = vmatprep.subr.mxu0 0.0
    %1376 = vmatpush1.msra.mxu0 0.0
    %1377 = vmatprep.subr.mxu0 0.0
    %1378 = vmatpush1.msra.mxu0 0.0
    %1379 = vmatprep.subr.mxu0 0.0
    %1380 = vmatpush1.msra.mxu0 0.0
    %1381 = vmatprep.subr.mxu0 0.0
    %1382 = vmatpush1.msra.mxu0 0.0
    %1383 = vmatprep.subr.mxu0 0.0
    %1384 = vmatpush1.msra.mxu0 0.0
    %1385 = vmatprep.subr.mxu0 0.0
    %1386 = vmatpush1.msra.mxu0 0.0
    %1387 = vmatprep.subr.mxu0 0.0
    %1388 = vmatpush1.msra.mxu0 0.0
    %1389 = vmatprep.subr.mxu0 0.0
    %1390 = vmatpush1.msra.mxu0 0.0
    %1391 = vmatprep.subr.mxu0 0.0
    %1392 = vmatpush1.msra.mxu0 0.0
    %1393 = vmatprep.subr.mxu0 0.0
    %1394 = vmatpush1.msra.mxu0 0.0
    %1395 = vmatprep.subr.mxu0 0.0
    %1396 = vmatpush1.msra.mxu0 0.0
    %1397 = vmatprep.subr.mxu0 0.0
    %1398 = vmatpush1.msra.mxu0 0.0
    %1399 = vmatprep.subr.mxu0 0.0
    %1400 = vmatpush1.msra.mxu0 0.0
    %1401 = vmatprep.subr.mxu0 0.0
    %1402 = vmatpush1.msra.mxu0 0.0
    %1403 = vmatprep.subr.mxu0 0.0
    %1404 = vmatpush1.msra.mxu0 0.0
    %1405 = vmatprep.subr.mxu0 0.0
    %1406 = vmatpush1.msra.mxu0 0.0
    %1407 = vmatprep.subr.mxu0 0.0
    %1408 = vmatpush1.msra.mxu0 0.0
    %1409 = vmatprep.subr.mxu0 0.0
    %1410 = vmatpush1.msra.mxu0 0.0
    %1411 = vmatprep.subr.mxu0 0.0
    %1412 = vmatpush1.msra.mxu0 0.0
    %1413 = vmatprep.subr.mxu0 0.0
    %1414 = vmatpush1.msra.mxu0 0.0
    %1415 = vmatprep.subr.mxu0 0.0
    %1416 = vmatpush1.msra.mxu0 0.0
    %1417 = vmatprep.subr.mxu0 0.0
    %1418 = vmatpush1.msra.mxu0 0.0
    %1419 = vmatprep.subr.mxu0 0.0
    %1420 = vmatpush1.msra.mxu0 0.0
    %1421 = vmatprep.subr.mxu0 0.0
    %1422 = vmatpush1.msra.mxu0 0.0
    %1423 = vmatprep.subr.mxu0 0.0
    %1424 = vmatpush1.msra.mxu0 0.0
    %1425 = vmatprep.mubr.f32.mxu0 0.0
    %1426 = vmatmul.mubr.f32.gmra.mrb[0].mxu0 %v1357
    %v1427 = vpop.f32.mrb[0].mxu0
    %v1428 = vadd.f32 0.0, %v1427
    %v1429 = vpop.f32.mrb[0].mxu0
    %1430 = vdwg.mxu0
    %1432 = vrot.lane.b32.xlu0 %v1428, 8
    %v1433 = vpop.permute.xlu0 %1432
    %1435 = vst.msk [vmem:[#allocation2 + $0x8] sm:$0xff] %vm724, %v1433
    %1436 = vrot.lane.b32.xlu0 %v194, 112
    %v1437 = vpop.permute.xlu0 %1436
    %1438 = vrot.lane.b32.xlu0 %v1088, 112
    %v1439 = vpop.permute.xlu0 %1438
    %1440 = vrot.lane.b32.xlu0 %v1087, 112
    %v1441 = vpop.permute.xlu0 %1440
    %v1442 = vsel %vm376, %v1437, 0
    %v1444 = vsel %vm376, %v1439, 0
    %v1446 = vsel %vm376, %v1441, 0
    %1448 = vmatprep.subr.mxu0 0.0
    %1449 = vmatpush1.xpose.msra.mxu0 %v1444
    %1450 = vmatprep.subr.mxu0 0.0
    %1451 = vmatpush1.xpose.msra.mxu0 %v1446
    %1452 = vmatprep.subr.mxu0 0.0
    %1453 = vmatpush1.xpose.msra.mxu0 0.0
    %1454 = vmatprep.subr.mxu0 0.0
    %1455 = vmatpush1.xpose.msra.mxu0 0.0
    %1456 = vmatprep.subr.mxu0 0.0
    %1457 = vmatpush1.xpose.msra.mxu0 0.0
    %1458 = vmatprep.subr.mxu0 0.0
    %1459 = vmatpush1.xpose.msra.mxu0 0.0
    %1460 = vmatprep.subr.mxu0 0.0
    %1461 = vmatpush1.xpose.msra.mxu0 0.0
    %1462 = vmatprep.subr.mxu0 0.0
    %1463 = vmatpush1.xpose.msra.mxu0 0.0
    %1464 = vmatprep.subr.mxu0 0.0
    %1465 = vmatpush1.xpose.msra.mxu0 0.0
    %1466 = vmatprep.subr.mxu0 0.0
    %1467 = vmatpush1.xpose.msra.mxu0 0.0
    %1468 = vmatprep.subr.mxu0 0.0
    %1469 = vmatpush1.xpose.msra.mxu0 0.0
    %1470 = vmatprep.subr.mxu0 0.0
    %1471 = vmatpush1.xpose.msra.mxu0 0.0
    %1472 = vmatprep.subr.mxu0 0.0
    %1473 = vmatpush1.xpose.msra.mxu0 0.0
    %1474 = vmatprep.subr.mxu0 0.0
    %1475 = vmatpush1.xpose.msra.mxu0 0.0
    %1476 = vmatprep.subr.mxu0 0.0
    %1477 = vmatpush1.xpose.msra.mxu0 0.0
    %1478 = vmatprep.subr.mxu0 0.0
    %1479 = vmatpush1.xpose.msra.mxu0 0.0
    %1480 = vmatprep.subr.mxu0 0.0
    %1481 = vmatpush1.xpose.msra.mxu0 0.0
    %1482 = vmatprep.subr.mxu0 0.0
    %1483 = vmatpush1.xpose.msra.mxu0 0.0
    %1484 = vmatprep.subr.mxu0 0.0
    %1485 = vmatpush1.xpose.msra.mxu0 0.0
    %1486 = vmatprep.subr.mxu0 0.0
    %1487 = vmatpush1.xpose.msra.mxu0 0.0
    %1488 = vmatprep.subr.mxu0 0.0
    %1489 = vmatpush1.xpose.msra.mxu0 0.0
    %1490 = vmatprep.subr.mxu0 0.0
    %1491 = vmatpush1.xpose.msra.mxu0 0.0
    %1492 = vmatprep.subr.mxu0 0.0
    %1493 = vmatpush1.xpose.msra.mxu0 0.0
    %1494 = vmatprep.subr.mxu0 0.0
    %1495 = vmatpush1.xpose.msra.mxu0 0.0
    %1496 = vmatprep.subr.mxu0 0.0
    %1497 = vmatpush1.xpose.msra.mxu0 0.0
    %1498 = vmatprep.subr.mxu0 0.0
    %1499 = vmatpush1.xpose.msra.mxu0 0.0
    %1500 = vmatprep.subr.mxu0 0.0
    %1501 = vmatpush1.xpose.msra.mxu0 0.0
    %1502 = vmatprep.subr.mxu0 0.0
    %1503 = vmatpush1.xpose.msra.mxu0 0.0
    %1504 = vmatprep.subr.mxu0 0.0
    %1505 = vmatpush1.xpose.msra.mxu0 0.0
    %1506 = vmatprep.subr.mxu0 0.0
    %1507 = vmatpush1.xpose.msra.mxu0 0.0
    %1508 = vmatprep.subr.mxu0 0.0
    %1509 = vmatpush1.xpose.msra.mxu0 0.0
    %1510 = vmatprep.subr.mxu0 0.0
    %1511 = vmatpush1.xpose.msra.mxu0 0.0
    %1512 = vmatprep.mubr.f32.mxu0 0.0
    %1513 = vmatmul.mubr.f32.gmra.mrb[0].mxu0 %v1442
    %v1514 = vpop.f32.mrb[0].mxu0
    %v1515 = vadd.f32 0.0, %v1514
    %v1516 = vpop.f32.mrb[0].mxu0
    %1517 = vdwg.mxu0
    %v1518 = vsel %vm456, %v1515, -inf
    %1519 = vmax.xlane.f32.xlu0 %v1518
    %v1520 = vpop.xlane.xlu0 %1519
    %v1521 = vsub.f32 %v1515, %v1520
    %v1522 = vmul.f32 %v1521, 1.442695
    %v1523 = vpow.pop %v1522
    %v1524 = vsel %vm456, %v1523, 0.0
    %1525 = vadd.xlane.f32.xlu0 %v1524
    %v1526 = vpop.xlane.xlu0 %1525
    %v1527 = vrcp.pop %v1526
    %v1528 = vmul.f32 %v1523, %v1527
    %1529 = vrot.lane.b32.xlu0 %v1180, 112
    %v1530 = vpop.permute.xlu0 %1529
    %1531 = vrot.lane.b32.xlu0 %v1179, 112
    %v1532 = vpop.permute.xlu0 %1531
    %v1535 = vsel %vm456, %v1528, 0
    %v1537 = vsel %vm471, %v1532, 0
    %1539 = vmatprep.subr.mxu0 0.0
    %1540 = vmatpush1.msra.mxu0 %v1530
    %1541 = vmatprep.subr.mxu0 0.0
    %1542 = vmatpush1.msra.mxu0 %v1537
    %1543 = vmatprep.subr.mxu0 0.0
    %1544 = vmatpush1.msra.mxu0 0.0
    %1545 = vmatprep.subr.mxu0 0.0
    %1546 = vmatpush1.msra.mxu0 0.0
    %1547 = vmatprep.subr.mxu0 0.0
    %1548 = vmatpush1.msra.mxu0 0.0
    %1549 = vmatprep.subr.mxu0 0.0
    %1550 = vmatpush1.msra.mxu0 0.0
    %1551 = vmatprep.subr.mxu0 0.0
    %1552 = vmatpush1.msra.mxu0 0.0
    %1553 = vmatprep.subr.mxu0 0.0
    %1554 = vmatpush1.msra.mxu0 0.0
    %1555 = vmatprep.subr.mxu0 0.0
    %1556 = vmatpush1.msra.mxu0 0.0
    %1557 = vmatprep.subr.mxu0 0.0
    %1558 = vmatpush1.msra.mxu0 0.0
    %1559 = vmatprep.subr.mxu0 0.0
    %1560 = vmatpush1.msra.mxu0 0.0
    %1561 = vmatprep.subr.mxu0 0.0
    %1562 = vmatpush1.msra.mxu0 0.0
    %1563 = vmatprep.subr.mxu0 0.0
    %1564 = vmatpush1.msra.mxu0 0.0
    %1565 = vmatprep.subr.mxu0 0.0
    %1566 = vmatpush1.msra.mxu0 0.0
    %1567 = vmatprep.subr.mxu0 0.0
    %1568 = vmatpush1.msra.mxu0 0.0
    %1569 = vmatprep.subr.mxu0 0.0
    %1570 = vmatpush1.msra.mxu0 0.0
    %1571 = vmatprep.subr.mxu0 0.0
    %1572 = vmatpush1.msra.mxu0 0.0
    %1573 = vmatprep.subr.mxu0 0.0
    %1574 = vmatpush1.msra.mxu0 0.0
    %1575 = vmatprep.subr.mxu0 0.0
    %1576 = vmatpush1.msra.mxu0 0.0
    %1577 = vmatprep.subr.mxu0 0.0
    %1578 = vmatpush1.msra.mxu0 0.0
    %1579 = vmatprep.subr.mxu0 0.0
    %1580 = vmatpush1.msra.mxu0 0.0
    %1581 = vmatprep.subr.mxu0 0.0
    %1582 = vmatpush1.msra.mxu0 0.0
    %1583 = vmatprep.subr.mxu0 0.0
    %1584 = vmatpush1.msra.mxu0 0.0
    %1585 = vmatprep.subr.mxu0 0.0
    %1586 = vmatpush1.msra.mxu0 0.0
    %1587 = vmatprep.subr.mxu0 0.0
    %1588 = vmatpush1.msra.mxu0 0.0
    %1589 = vmatprep.subr.mxu0 0.0
    %1590 = vmatpush1.msra.mxu0 0.0
    %1591 = vmatprep.subr.mxu0 0.0
    %1592 = vmatpush1.msra.mxu0 0.0
    %1593 = vmatprep.subr.mxu0 0.0
    %1594 = vmatpush1.msra.mxu0 0.0
    %1595 = vmatprep.subr.mxu0 0.0
    %1596 = vmatpush1.msra.mxu0 0.0
    %1597 = vmatprep.subr.mxu0 0.0
    %1598 = vmatpush1.msra.mxu0 0.0
    %1599 = vmatprep.subr.mxu0 0.0
    %1600 = vmatpush1.msra.mxu0 0.0
    %1601 = vmatprep.subr.mxu0 0.0
    %1602 = vmatpush1.msra.mxu0 0.0
    %1603 = vmatprep.mubr.f32.mxu0 0.0
    %1604 = vmatmul.mubr.f32.gmra.mrb[0].mxu0 %v1535
    %v1605 = vpop.f32.mrb[0].mxu0
    %v1606 = vadd.f32 0.0, %v1605
    %v1607 = vpop.f32.mrb[0].mxu0
    %1608 = vdwg.mxu0
    %1610 = vrot.lane.b32.xlu0 %v1606, 16
    %v1611 = vpop.permute.xlu0 %1610
    %1613 = vst.msk [vmem:[#allocation2 + $0x8] sm:$0xff] %vm903, %v1611
    %1614 = vrot.lane.b32.xlu0 %v194, 104
    %v1615 = vpop.permute.xlu0 %1614
    %1616 = vrot.lane.b32.xlu0 %v1088, 104
    %v1617 = vpop.permute.xlu0 %1616
    %1618 = vrot.lane.b32.xlu0 %v1087, 104
    %v1619 = vpop.permute.xlu0 %1618
    %v1620 = vsel %vm376, %v1615, 0
    %v1622 = vsel %vm376, %v1617, 0
    %v1624 = vsel %vm376, %v1619, 0
    %1626 = vmatprep.subr.mxu0 0.0
    %1627 = vmatpush1.xpose.msra.mxu0 %v1622
    %1628 = vmatprep.subr.mxu0 0.0
    %1629 = vmatpush1.xpose.msra.mxu0 %v1624
    %1630 = vmatprep.subr.mxu0 0.0
    %1631 = vmatpush1.xpose.msra.mxu0 0.0
    %1632 = vmatprep.subr.mxu0 0.0
    %1633 = vmatpush1.xpose.msra.mxu0 0.0
    %1634 = vmatprep.subr.mxu0 0.0
    %1635 = vmatpush1.xpose.msra.mxu0 0.0
    %1636 = vmatprep.subr.mxu0 0.0
    %1637 = vmatpush1.xpose.msra.mxu0 0.0
    %1638 = vmatprep.subr.mxu0 0.0
    %1639 = vmatpush1.xpose.msra.mxu0 0.0
    %1640 = vmatprep.subr.mxu0 0.0
    %1641 = vmatpush1.xpose.msra.mxu0 0.0
    %1642 = vmatprep.subr.mxu0 0.0
    %1643 = vmatpush1.xpose.msra.mxu0 0.0
    %1644 = vmatprep.subr.mxu0 0.0
    %1645 = vmatpush1.xpose.msra.mxu0 0.0
    %1646 = vmatprep.subr.mxu0 0.0
    %1647 = vmatpush1.xpose.msra.mxu0 0.0
    %1648 = vmatprep.subr.mxu0 0.0
    %1649 = vmatpush1.xpose.msra.mxu0 0.0
    %1650 = vmatprep.subr.mxu0 0.0
    %1651 = vmatpush1.xpose.msra.mxu0 0.0
    %1652 = vmatprep.subr.mxu0 0.0
    %1653 = vmatpush1.xpose.msra.mxu0 0.0
    %1654 = vmatprep.subr.mxu0 0.0
    %1655 = vmatpush1.xpose.msra.mxu0 0.0
    %1656 = vmatprep.subr.mxu0 0.0
    %1657 = vmatpush1.xpose.msra.mxu0 0.0
    %1658 = vmatprep.subr.mxu0 0.0
    %1659 = vmatpush1.xpose.msra.mxu0 0.0
    %1660 = vmatprep.subr.mxu0 0.0
    %1661 = vmatpush1.xpose.msra.mxu0 0.0
    %1662 = vmatprep.subr.mxu0 0.0
    %1663 = vmatpush1.xpose.msra.mxu0 0.0
    %1664 = vmatprep.subr.mxu0 0.0
    %1665 = vmatpush1.xpose.msra.mxu0 0.0
    %1666 = vmatprep.subr.mxu0 0.0
    %1667 = vmatpush1.xpose.msra.mxu0 0.0
    %1668 = vmatprep.subr.mxu0 0.0
    %1669 = vmatpush1.xpose.msra.mxu0 0.0
    %1670 = vmatprep.subr.mxu0 0.0
    %1671 = vmatpush1.xpose.msra.mxu0 0.0
    %1672 = vmatprep.subr.mxu0 0.0
    %1673 = vmatpush1.xpose.msra.mxu0 0.0
    %1674 = vmatprep.subr.mxu0 0.0
    %1675 = vmatpush1.xpose.msra.mxu0 0.0
    %1676 = vmatprep.subr.mxu0 0.0
    %1677 = vmatpush1.xpose.msra.mxu0 0.0
    %1678 = vmatprep.subr.mxu0 0.0
    %1679 = vmatpush1.xpose.msra.mxu0 0.0
    %1680 = vmatprep.subr.mxu0 0.0
    %1681 = vmatpush1.xpose.msra.mxu0 0.0
    %1682 = vmatprep.subr.mxu0 0.0
    %1683 = vmatpush1.xpose.msra.mxu0 0.0
    %1684 = vmatprep.subr.mxu0 0.0
    %1685 = vmatpush1.xpose.msra.mxu0 0.0
    %1686 = vmatprep.subr.mxu0 0.0
    %1687 = vmatpush1.xpose.msra.mxu0 0.0
    %1688 = vmatprep.subr.mxu0 0.0
    %1689 = vmatpush1.xpose.msra.mxu0 0.0
    %1690 = vmatprep.mubr.f32.mxu0 0.0
    %1691 = vmatmul.mubr.f32.gmra.mrb[0].mxu0 %v1620
    %v1692 = vpop.f32.mrb[0].mxu0
    %v1693 = vadd.f32 0.0, %v1692
    %v1694 = vpop.f32.mrb[0].mxu0
    %1695 = vdwg.mxu0
    %v1696 = vsel %vm456, %v1693, -inf
    %1697 = vmax.xlane.f32.xlu0 %v1696
    %v1698 = vpop.xlane.xlu0 %1697
    %v1699 = vsub.f32 %v1693, %v1698
    %v1700 = vmul.f32 %v1699, 1.442695
    %v1701 = vpow.pop %v1700
    %v1702 = vsel %vm456, %v1701, 0.0
    %1703 = vadd.xlane.f32.xlu0 %v1702
    %v1704 = vpop.xlane.xlu0 %1703
    %v1705 = vrcp.pop %v1704
    %v1706 = vmul.f32 %v1701, %v1705
    %1707 = vrot.lane.b32.xlu0 %v1180, 104
    %v1708 = vpop.permute.xlu0 %1707
    %1709 = vrot.lane.b32.xlu0 %v1179, 104
    %v1710 = vpop.permute.xlu0 %1709
    %v1713 = vsel %vm456, %v1706, 0
    %v1715 = vsel %vm471, %v1710, 0
    %1717 = vmatprep.subr.mxu0 0.0
    %1718 = vmatpush1.msra.mxu0 %v1708
    %1719 = vmatprep.subr.mxu0 0.0
    %1720 = vmatpush1.msra.mxu0 %v1715
    %1721 = vmatprep.subr.mxu0 0.0
    %1722 = vmatpush1.msra.mxu0 0.0
    %1723 = vmatprep.subr.mxu0 0.0
    %1724 = vmatpush1.msra.mxu0 0.0
    %1725 = vmatprep.subr.mxu0 0.0
    %1726 = vmatpush1.msra.mxu0 0.0
    %1727 = vmatprep.subr.mxu0 0.0
    %1728 = vmatpush1.msra.mxu0 0.0
    %1729 = vmatprep.subr.mxu0 0.0
    %1730 = vmatpush1.msra.mxu0 0.0
    %1731 = vmatprep.subr.mxu0 0.0
    %1732 = vmatpush1.msra.mxu0 0.0
    %1733 = vmatprep.subr.mxu0 0.0
    %1734 = vmatpush1.msra.mxu0 0.0
    %1735 = vmatprep.subr.mxu0 0.0
    %1736 = vmatpush1.msra.mxu0 0.0
    %1737 = vmatprep.subr.mxu0 0.0
    %1738 = vmatpush1.msra.mxu0 0.0
    %1739 = vmatprep.subr.mxu0 0.0
    %1740 = vmatpush1.msra.mxu0 0.0
    %1741 = vmatprep.subr.mxu0 0.0
    %1742 = vmatpush1.msra.mxu0 0.0
    %1743 = vmatprep.subr.mxu0 0.0
    %1744 = vmatpush1.msra.mxu0 0.0
    %1745 = vmatprep.subr.mxu0 0.0
    %1746 = vmatpush1.msra.mxu0 0.0
    %1747 = vmatprep.subr.mxu0 0.0
    %1748 = vmatpush1.msra.mxu0 0.0
    %1749 = vmatprep.subr.mxu0 0.0
    %1750 = vmatpush1.msra.mxu0 0.0
    %1751 = vmatprep.subr.mxu0 0.0
    %1752 = vmatpush1.msra.mxu0 0.0
    %1753 = vmatprep.subr.mxu0 0.0
    %1754 = vmatpush1.msra.mxu0 0.0
    %1755 = vmatprep.subr.mxu0 0.0
    %1756 = vmatpush1.msra.mxu0 0.0
    %1757 = vmatprep.subr.mxu0 0.0
    %1758 = vmatpush1.msra.mxu0 0.0
    %1759 = vmatprep.subr.mxu0 0.0
    %1760 = vmatpush1.msra.mxu0 0.0
    %1761 = vmatprep.subr.mxu0 0.0
    %1762 = vmatpush1.msra.mxu0 0.0
    %1763 = vmatprep.subr.mxu0 0.0
    %1764 = vmatpush1.msra.mxu0 0.0
    %1765 = vmatprep.subr.mxu0 0.0
    %1766 = vmatpush1.msra.mxu0 0.0
    %1767 = vmatprep.subr.mxu0 0.0
    %1768 = vmatpush1.msra.mxu0 0.0
    %1769 = vmatprep.subr.mxu0 0.0
    %1770 = vmatpush1.msra.mxu0 0.0
    %1771 = vmatprep.subr.mxu0 0.0
    %1772 = vmatpush1.msra.mxu0 0.0
    %1773 = vmatprep.subr.mxu0 0.0
    %1774 = vmatpush1.msra.mxu0 0.0
    %1775 = vmatprep.subr.mxu0 0.0
    %1776 = vmatpush1.msra.mxu0 0.0
    %1777 = vmatprep.subr.mxu0 0.0
    %1778 = vmatpush1.msra.mxu0 0.0
    %1779 = vmatprep.subr.mxu0 0.0
    %1780 = vmatpush1.msra.mxu0 0.0
    %1781 = vmatprep.mubr.f32.mxu0 0.0
    %1782 = vmatmul.mubr.f32.gmra.mrb[0].mxu0 %v1713
    %v1783 = vpop.f32.mrb[0].mxu0
    %v1784 = vadd.f32 0.0, %v1783
    %v1785 = vpop.f32.mrb[0].mxu0
    %1786 = vdwg.mxu0
    %1788 = vrot.lane.b32.xlu0 %v1784, 24
    %v1789 = vpop.permute.xlu0 %1788
    %1791 = vst.msk [vmem:[#allocation2 + $0x8] sm:$0xff] %vm1082, %v1789
    %v1792 = vld [vmem:[#allocation2] sm:$0xff]
    %v1793 = vld [vmem:[#allocation2 + $0x8] sm:$0xff]
    %v1794 = vld [vmem:[#allocation12] sm:$0xff]
    %v1795 = vld [vmem:[#allocation12 + $0x8] sm:$0xff]
    %v1796 = vld [vmem:[#allocation12 + $0x10] sm:$0xff]
    %v1797 = vld [vmem:[#allocation12 + $0x18] sm:$0xff]
    %v1798 = vld [vmem:[%s6] sm:$0x1]
    %v1800 = vlaneseq
    %v1801 = vshrl.u32 %v1800, 7
    %v1802 = vsub.s32 0, %v1801
    %v1803 = vrot.slane %v1798, %v1802
    %v1806 = vsel %vm115, %v1792, 0
    %v1809 = vsel %vm115, %v1793, 0
    %1811 = vmatprep.subr.mxu0 0.0
    %1812 = vmatpush1.msra.mxu0 %v1794
    %1813 = vmatprep.subr.mxu0 0.0
    %1814 = vmatpush1.msra.mxu0 %v1795
    %1815 = vmatprep.subr.mxu0 0.0
    %1816 = vmatpush1.msra.mxu0 %v1796
    %1817 = vmatprep.subr.mxu0 0.0
    %1818 = vmatpush1.msra.mxu0 %v1797
    %1819 = vmatprep.subr.mxu0 0.0
    %1820 = vmatpush1.msra.mxu0 0.0
    %1821 = vmatprep.subr.mxu0 0.0
    %1822 = vmatpush1.msra.mxu0 0.0
    %1823 = vmatprep.subr.mxu0 0.0
    %1824 = vmatpush1.msra.mxu0 0.0
    %1825 = vmatprep.subr.mxu0 0.0
    %1826 = vmatpush1.msra.mxu0 0.0
    %1827 = vmatprep.subr.mxu0 0.0
    %1828 = vmatpush1.msra.mxu0 0.0
    %1829 = vmatprep.subr.mxu0 0.0
    %1830 = vmatpush1.msra.mxu0 0.0
    %1831 = vmatprep.subr.mxu0 0.0
    %1832 = vmatpush1.msra.mxu0 0.0
    %1833 = vmatprep.subr.mxu0 0.0
    %1834 = vmatpush1.msra.mxu0 0.0
    %1835 = vmatprep.subr.mxu0 0.0
    %1836 = vmatpush1.msra.mxu0 0.0
    %1837 = vmatprep.subr.mxu0 0.0
    %1838 = vmatpush1.msra.mxu0 0.0
    %1839 = vmatprep.subr.mxu0 0.0
    %1840 = vmatpush1.msra.mxu0 0.0
    %1841 = vmatprep.subr.mxu0 0.0
    %1842 = vmatpush1.msra.mxu0 0.0
    %1843 = vmatprep.subr.mxu0 0.0
    %1844 = vmatpush1.msra.mxu0 0.0
    %1845 = vmatprep.subr.mxu0 0.0
    %1846 = vmatpush1.msra.mxu0 0.0
    %1847 = vmatprep.subr.mxu0 0.0
    %1848 = vmatpush1.msra.mxu0 0.0
    %1849 = vmatprep.subr.mxu0 0.0
    %1850 = vmatpush1.msra.mxu0 0.0
    %1851 = vmatprep.subr.mxu0 0.0
    %1852 = vmatpush1.msra.mxu0 0.0
    %1853 = vmatprep.subr.mxu0 0.0
    %1854 = vmatpush1.msra.mxu0 0.0
    %1855 = vmatprep.subr.mxu0 0.0
    %1856 = vmatpush1.msra.mxu0 0.0
    %1857 = vmatprep.subr.mxu0 0.0
    %1858 = vmatpush1.msra.mxu0 0.0
    %1859 = vmatprep.subr.mxu0 0.0
    %1860 = vmatpush1.msra.mxu0 0.0
    %1861 = vmatprep.subr.mxu0 0.0
    %1862 = vmatpush1.msra.mxu0 0.0
    %1863 = vmatprep.subr.mxu0 0.0
    %1864 = vmatpush1.msra.mxu0 0.0
    %1865 = vmatprep.subr.mxu0 0.0
    %1866 = vmatpush1.msra.mxu0 0.0
    %1867 = vmatprep.subr.mxu0 0.0
    %1868 = vmatpush1.msra.mxu0 0.0
    %1869 = vmatprep.subr.mxu0 0.0
    %1870 = vmatpush1.msra.mxu0 0.0
    %1871 = vmatprep.subr.mxu0 0.0
    %1872 = vmatpush1.msra.mxu0 0.0
    %1873 = vmatprep.subr.mxu0 0.0
    %1874 = vmatpush1.msra.mxu0 0.0
    %1875 = vmatprep.mubr.f32.mxu0 0.0
    %1876 = vmatmul.mubr.f32.gmra.mrb[0].mxu0 %v1806
    %v1877 = vpop.f32.mrb[0].mxu0
    %v1878 = vadd.f32 %v1803, %v1877
    %v1879 = vpop.f32.mrb[0].mxu0
    %1880 = vmatprep.mubr.f32.mxu0 0.0
    %1881 = vmatmul.mubr.f32.gmra.mrb[0].mxu0 %v1809
    %v1882 = vpop.f32.mrb[0].mxu0
    %v1883 = vadd.f32 %v1803, %v1882
    %v1884 = vpop.f32.mrb[0].mxu0
    %1885 = vdwg.mxu0
    %1886 = vst [vmem:[#allocation14] sm:$0xff] %v1878
    %1887 = vst [vmem:[#allocation14 + $0x8] sm:$0xff] %v1883
    // Predicated region
    $region54: #{tpu_custom_call.1} parent=1 // pred_check
      _
    $region55: #{tpu_custom_call.1} parent=1 // pred_check_branch
      %1889 = sbr.rel (0) target = $region57
    $region56: #{tpu_custom_call.1} parent=1 // pred_region
      %s1891 = ssub.s32 256, 256
      %1892 = vsyncadd [#allocation5], %s1891
      %s1893 = sshll.u32 [#allocation14], 4
      %s1894 = int_to_ptr.vmem [resolvable:$true] %s1893
      %1899 = dma.vmem_to_hbm [thread:$0]  %s1894, 256, %s7, [#allocation5], 128, 128, 8
    $region57: #{tpu_custom_call.1} parent=1 // pred_fallthru
      _
    // Predicated region
    $region58: #{tpu_custom_call.1} parent=1 // pred_check
      _
    $region59: #{tpu_custom_call.1} parent=1 // pred_check_branch
      %1901 = sbr.rel (0) target = $region61
    $region60: #{tpu_custom_call.1} parent=1 // pred_region
      %1902 = dma.done [#allocation5], 256
    $region61: #{tpu_custom_call.1} parent=1 // pred_fallthru
      _
    %1903 = vsyncpa [#allocation4], 1
    %1904 = vsyncpa [#allocation7], 1
    %1905 = vsyncpa [#allocation10], 1
    %1906 = vsyncpa [#allocation13], 1
    %1907 = vsyncpa [#allocation5], 1

// kernel: tpu_custom_call.1
$region0: #{tpu_custom_call.1}
  #allocation0 [shape = 'u32[]', space=smem, size = 0x4, offset = 0x4, fixed_abs, tag = 'smem constant byte address 0x4 - core index']
  #allocation1 [shape = 'u32[144,128]{1,0:T(1,128)}', space=vmem, size = 0x12000, scoped, tag = 'internal scratch']
  #allocation2 [shape = 'f32[16,32]{1,0:T(8,128)}', space=vmem, size = 0x2000, scoped, tag = 'scratch operand']
  %s0 = inlined_call_operand.hbm [shape: f32[16,32], index: 0, kind: input, shape index: {}]
  %s1 = inlined_call_operand.hbm [shape: f32[20,24], index: 1, kind: input, shape index: {}]
  %s2 = inlined_call_operand.hbm [shape: f32[32,32], index: 2, kind: input, shape index: {}]
  %s3 = inlined_call_operand.hbm [shape: f32[24,32], index: 3, kind: input, shape index: {}]
  %s4 = inlined_call_operand.hbm [shape: f32[24,32], index: 4, kind: input, shape index: {}]
  %s5 = inlined_call_operand.hbm [shape: f32[32,128], index: 5, kind: input, shape index: {}]
  %s6 = inlined_call_operand.vmem [shape: f32[1,128], index: 6, kind: input, shape index: {}]
  %s7 = inlined_call_operand.hbm [shape: f32[16,128], index: 7, kind: output, shape index: {}]
  %s8 = sld [smem:[#allocation0]]
  $region62: #{tpu_custom_call.1} parent=0
    _
  %s10 = ssub.s32 1, %s8
  %s11 = scalar_select 0, %s10, %s8
  $region1: #{tpu_custom_call.1} parent=0
    #allocation3 [shape = 'u8[8192]{0}', space=vmem, size = 0x2000, scoped, tag = 'input window, operand 0, single buffered']
    #allocation4 [shape = 's32[1]{0}', space=sflag, size = 0x4, scoped, tag = 'scoped memory for tpu_custom_call.1']
    #allocation5 [shape = 's32[1]{0}', space=sflag, size = 0x4, scoped, tag = 'scoped memory for tpu_custom_call.1']
    #allocation6 [shape = 'u8[12288]{0}', space=vmem, size = 0x3000, scoped, tag = 'input window, operand 1, single buffered']
    #allocation7 [shape = 's32[1]{0}', space=sflag, size = 0x4, scoped, tag = 'scoped memory for tpu_custom_call.1']
    #allocation8 [shape = 'u8[16384]{0}', space=vmem, size = 0x4000, scoped, tag = 'input window, operand 2, single buffered']
    #allocation9 [shape = 'u8[12288]{0}', space=vmem, size = 0x3000, scoped, tag = 'input window, operand 3, single buffered']
    #allocation10 [shape = 's32[1]{0}', space=sflag, size = 0x4, scoped, tag = 'scoped memory for tpu_custom_call.1']
    #allocation11 [shape = 'u8[12288]{0}', space=vmem, size = 0x3000, scoped, tag = 'input window, operand 4, single buffered']
    #allocation12 [shape = 'u8[16384]{0}', space=vmem, size = 0x4000, scoped, tag = 'input window, operand 5, single buffered']
    #allocation13 [shape = 's32[1]{0}', space=sflag, size = 0x4, scoped, tag = 'scoped memory for tpu_custom_call.1']
    #allocation14 [shape = 'u8[8192]{0}', space=vmem, size = 0x2000, scoped, tag = 'output window, operand 0, single buffered']
    %12 = vsyncpa [#allocation4], 0
    %13 = vsyncpa [#allocation7], 0
    %14 = vsyncpa [#allocation10], 0
    %15 = vsyncpa [#allocation13], 0
    %16 = vsyncpa [#allocation5], 0
    // Predicated region
    $region2: #{tpu_custom_call.1} parent=1 // pred_check
      _
    $region3: #{tpu_custom_call.1} parent=1 // pred_check_branch
      %18 = sbr.rel (0) target = $region5
    $region4: #{tpu_custom_call.1} parent=1 // pred_region
      %s20 = ssub.s32 256, 256
      %21 = vsyncadd [#allocation4], %s20
      %s22 = sshll.u32 [#allocation3], 4
      %s23 = int_to_ptr.vmem [resolvable:$true] %s22
      %28 = dma.hbm_to_vmem [thread:$0]  %s0, 256, %s23, [#allocation4], 128, 128, 8
    $region5: #{tpu_custom_call.1} parent=1 // pred_fallthru
      _
    // Predicated region
    $region6: #{tpu_custom_call.1} parent=1 // pred_check
      _
    $region7: #{tpu_custom_call.1} parent=1 // pred_check_branch
      %30 = sbr.rel (0) target = $region9
    $region8: #{tpu_custom_call.1} parent=1 // pred_region
      %s32 = ssub.s32 384, 384
      %33 = vsyncadd [#allocation7], %s32
      %s34 = sshll.u32 [#allocation6], 4
      %s35 = int_to_ptr.vmem [resolvable:$true] %s34
      %40 = dma.hbm_to_vmem [thread:$0]  %s1, 384, %s35, [#allocation7], 128, 128, 8
    $region9: #{tpu_custom_call.1} parent=1 // pred_fallthru
      _
    // Predicated region
    $region10: #{tpu_custom_call.1} parent=1 // pred_check
      _
    $region11: #{tpu_custom_call.1} parent=1 // pred_check_branch
      %42 = sbr.rel (0) target = $region13
    $region12: #{tpu_custom_call.1} parent=1 // pred_region
      %s44 = ssub.s32 512, 512
      %45 = vsyncadd [#allocation7], %s44
      %s46 = sshll.u32 [#allocation8], 4
      %s47 = int_to_ptr.vmem [resolvable:$true] %s46
      %52 = dma.hbm_to_vmem [thread:$0]  %s2, 512, %s47, [#allocation7], 128, 128, 8
    $region13: #{tpu_custom_call.1} parent=1 // pred_fallthru
      _
    // Predicated region
    $region14: #{tpu_custom_call.1} parent=1 // pred_check
      _
    $region15: #{tpu_custom_call.1} parent=1 // pred_check_branch
      %54 = sbr.rel (0) target = $region17
    $region16: #{tpu_custom_call.1} parent=1 // pred_region
      %s56 = ssub.s32 384, 384
      %57 = vsyncadd [#allocation10], %s56
      %s58 = sshll.u32 [#allocation9], 4
      %s59 = int_to_ptr.vmem [resolvable:$true] %s58
      %64 = dma.hbm_to_vmem [thread:$0]  %s3, 384, %s59, [#allocation10], 128, 128, 8
    $region17: #{tpu_custom_call.1} parent=1 // pred_fallthru
      _
    // Predicated region
    $region18: #{tpu_custom_call.1} parent=1 // pred_check
      _
    $region19: #{tpu_custom_call.1} parent=1 // pred_check_branch
      %66 = sbr.rel (0) target = $region21
    $region20: #{tpu_custom_call.1} parent=1 // pred_region
      %s68 = ssub.s32 384, 384
      %69 = vsyncadd [#allocation10], %s68
      %s70 = sshll.u32 [#allocation11], 4
      %s71 = int_to_ptr.vmem [resolvable:$true] %s70
      %76 = dma.hbm_to_vmem [thread:$0]  %s4, 384, %s71, [#allocation10], 128, 128, 8
    $region21: #{tpu_custom_call.1} parent=1 // pred_fallthru
      _
    // Predicated region
    $region22: #{tpu_custom_call.1} parent=1 // pred_check
      _
    $region23: #{tpu_custom_call.1} parent=1 // pred_check_branch
      %78 = sbr.rel (0) target = $region25
    $region24: #{tpu_custom_call.1} parent=1 // pred_region
      %s80 = ssub.s32 512, 512
      %81 = vsyncadd [#allocation13], %s80
      %s82 = sshll.u32 [#allocation12], 4
      %s83 = int_to_ptr.vmem [resolvable:$true] %s82
      %88 = dma.hbm_to_vmem [thread:$0]  %s5, 512, %s83, [#allocation13], 128, 128, 8
    $region25: #{tpu_custom_call.1} parent=1 // pred_fallthru
      _
    // Predicated region
    $region26: #{tpu_custom_call.1} parent=1 // pred_check
      _
    $region27: #{tpu_custom_call.1} parent=1 // pred_check_branch
      %90 = sbr.rel (0) target = $region29
    $region28: #{tpu_custom_call.1} parent=1 // pred_region
      _
    $region29: #{tpu_custom_call.1} parent=1 // pred_fallthru
      _
    // Predicated region
    $region30: #{tpu_custom_call.1} parent=1 // pred_check
      _
    $region31: #{tpu_custom_call.1} parent=1 // pred_check_branch
      %92 = sbr.rel (0) target = $region33
    $region32: #{tpu_custom_call.1} parent=1 // pred_region
      %93 = dma.done [#allocation4], 256
    $region33: #{tpu_custom_call.1} parent=1 // pred_fallthru
      _
    // Predicated region
    $region34: #{tpu_custom_call.1} parent=1 // pred_check
      _
    $region35: #{tpu_custom_call.1} parent=1 // pred_check_branch
      %95 = sbr.rel (0) target = $region37
    $region36: #{tpu_custom_call.1} parent=1 // pred_region
      %96 = dma.done [#allocation7], 384
    $region37: #{tpu_custom_call.1} parent=1 // pred_fallthru
      _
    // Predicated region
    $region38: #{tpu_custom_call.1} parent=1 // pred_check
      _
    $region39: #{tpu_custom_call.1} parent=1 // pred_check_branch
      %98 = sbr.rel (0) target = $region41
    $region40: #{tpu_custom_call.1} parent=1 // pred_region
      %99 = dma.done [#allocation7], 512
    $region41: #{tpu_custom_call.1} parent=1 // pred_fallthru
      _
    // Predicated region
    $region42: #{tpu_custom_call.1} parent=1 // pred_check
      _
    $region43: #{tpu_custom_call.1} parent=1 // pred_check_branch
      %101 = sbr.rel (0) target = $region45
    $region44: #{tpu_custom_call.1} parent=1 // pred_region
      %102 = dma.done [#allocation10], 384
    $region45: #{tpu_custom_call.1} parent=1 // pred_fallthru
      _
    // Predicated region
    $region46: #{tpu_custom_call.1} parent=1 // pred_check
      _
    $region47: #{tpu_custom_call.1} parent=1 // pred_check_branch
      %104 = sbr.rel (0) target = $region49
    $region48: #{tpu_custom_call.1} parent=1 // pred_region
      %105 = dma.done [#allocation10], 384
    $region49: #{tpu_custom_call.1} parent=1 // pred_fallthru
      _
    // Predicated region
    $region50: #{tpu_custom_call.1} parent=1 // pred_check
      _
    $region51: #{tpu_custom_call.1} parent=1 // pred_check_branch
      %107 = sbr.rel (0) target = $region53
    $region52: #{tpu_custom_call.1} parent=1 // pred_region
      %108 = dma.done [#allocation13], 512
    $region53: #{tpu_custom_call.1} parent=1 // pred_fallthru
      _
    %v109 = vld [vmem:[#allocation3] sm:$0xff]
    %v110 = vld [vmem:[#allocation3 + $0x8] sm:$0xff]
    %v111 = vld [vmem:[#allocation8] sm:$0xff]
    %v112 = vld [vmem:[#allocation8 + $0x8] sm:$0xff]
    %v113 = vld [vmem:[#allocation8 + $0x10] sm:$0xff]
    %v114 = vld [vmem:[#allocation8 + $0x18] sm:$0xff]
    %vm115 = vcmask 261120
    %v117 = vsel %vm115, %v109, 0
    %v120 = vsel %vm115, %v110, 0
    %122 = vmatprep.subr.mxu0 0.0
    %123 = vmatpush1.msra.mxu0 %v111
    %124 = vmatprep.subr.mxu0 0.0
    %125 = vmatpush1.msra.mxu0 %v112
    %126 = vmatprep.subr.mxu0 0.0
    %127 = vmatpush1.msra.mxu0 %v113
    %128 = vmatprep.subr.mxu0 0.0
    %129 = vmatpush1.msra.mxu0 %v114
    %130 = vmatprep.subr.mxu0 0.0
    %131 = vmatpush1.msra.mxu0 0.0
    %132 = vmatprep.subr.mxu0 0.0
    %133 = vmatpush1.msra.mxu0 0.0
    %134 = vmatprep.subr.mxu0 0.0
    %135 = vmatpush1.msra.mxu0 0.0
    %136 = vmatprep.subr.mxu0 0.0
    %137 = vmatpush1.msra.mxu0 0.0
    %138 = vmatprep.subr.mxu0 0.0
    %139 = vmatpush1.msra.mxu0 0.0
    %140 = vmatprep.subr.mxu0 0.0
    %141 = vmatpush1.msra.mxu0 0.0
    %142 = vmatprep.subr.mxu0 0.0
    %143 = vmatpush1.msra.mxu0 0.0
    %144 = vmatprep.subr.mxu0 0.0
    %145 = vmatpush1.msra.mxu0 0.0
    %146 = vmatprep.subr.mxu0 0.0
    %147 = vmatpush1.msra.mxu0 0.0
    %148 = vmatprep.subr.mxu0 0.0
    %149 = vmatpush1.msra.mxu0 0.0
    %150 = vmatprep.subr.mxu0 0.0
    %151 = vmatpush1.msra.mxu0 0.0
    %152 = vmatprep.subr.mxu0 0.0
    %153 = vmatpush1.msra.mxu0 0.0
    %154 = vmatprep.subr.mxu0 0.0
    %155 = vmatpush1.msra.mxu0 0.0
    %156 = vmatprep.subr.mxu0 0.0
    %157 = vmatpush1.msra.mxu0 0.0
    %158 = vmatprep.subr.mxu0 0.0
    %159 = vmatpush1.msra.mxu0 0.0
    %160 = vmatprep.subr.mxu0 0.0
    %161 = vmatpush1.msra.mxu0 0.0
    %162 = vmatprep.subr.mxu0 0.0
    %163 = vmatpush1.msra.mxu0 0.0
    %164 = vmatprep.subr.mxu0 0.0
    %165 = vmatpush1.msra.mxu0 0.0
    %166 = vmatprep.subr.mxu0 0.0
    %167 = vmatpush1.msra.mxu0 0.0
    %168 = vmatprep.subr.mxu0 0.0
    %169 = vmatpush1.msra.mxu0 0.0
    %170 = vmatprep.subr.mxu0 0.0
    %171 = vmatpush1.msra.mxu0 0.0
    %172 = vmatprep.subr.mxu0 0.0
    %173 = vmatpush1.msra.mxu0 0.0
    %174 = vmatprep.subr.mxu0 0.0
    %175 = vmatpush1.msra.mxu0 0.0
    %176 = vmatprep.subr.mxu0 0.0
    %177 = vmatpush1.msra.mxu0 0.0
    %178 = vmatprep.subr.mxu0 0.0
    %179 = vmatpush1.msra.mxu0 0.0
    %180 = vmatprep.subr.mxu0 0.0
    %181 = vmatpush1.msra.mxu0 0.0
    %182 = vmatprep.subr.mxu0 0.0
    %183 = vmatpush1.msra.mxu0 0.0
    %184 = vmatprep.subr.mxu0 0.0
    %185 = vmatpush1.msra.mxu0 0.0
    %186 = vmatprep.mubr.f32.mxu0 0.0
    %187 = vmatmul.mubr.f32.gmra.mrb[0].mxu0 %v117
    %v188 = vpop.f32.mrb[0].mxu0
    %v189 = vadd.f32 0.0, %v188
    %v190 = vpop.f32.mrb[0].mxu0
    %191 = vmatprep.mubr.f32.mxu0 0.0
    %192 = vmatmul.mubr.f32.gmra.mrb[0].mxu0 %v120
    %v193 = vpop.f32.mrb[0].mxu0
    %v194 = vadd.f32 0.0, %v193
    %v195 = vpop.f32.mrb[0].mxu0
    %196 = vdwg.mxu0
    %v197 = vld [vmem:[#allocation6] sm:$0xff]
    %v198 = vld [vmem:[#allocation6 + $0x8] sm:$0xff]
    %v199 = vld [vmem:[#allocation6 + $0x10] sm:$0xf]
    %v200 = vld [vmem:[#allocation9] sm:$0xff]
    %v201 = vld [vmem:[#allocation9 + $0x8] sm:$0xff]
    %v202 = vld [vmem:[#allocation9 + $0x10] sm:$0xff]
    %vm203 = vcmask 195584
    %v205 = vsel %vm203, %v197, 0
    %v208 = vsel %vm203, %v198, 0
    %v211 = vsel %vm203, %v199, 0
    %213 = vmatprep.subr.mxu0 0.0
    %214 = vmatpush1.msra.mxu0 %v200
    %215 = vmatprep.subr.mxu0 0.0
    %216 = vmatpush1.msra.mxu0 %v201
    %217 = vmatprep.subr.mxu0 0.0
    %218 = vmatpush1.msra.mxu0 %v202
    %219 = vmatprep.subr.mxu0 0.0
    %220 = vmatpush1.msra.mxu0 0.0
    %221 = vmatprep.subr.mxu0 0.0
    %222 = vmatpush1.msra.mxu0 0.0
    %223 = vmatprep.subr.mxu0 0.0
    %224 = vmatpush1.msra.mxu0 0.0
    %225 = vmatprep.subr.mxu0 0.0
    %226 = vmatpush1.msra.mxu0 0.0
    %227 = vmatprep.subr.mxu0 0.0
    %228 = vmatpush1.msra.mxu0 0.0
    %229 = vmatprep.subr.mxu0 0.0
    %230 = vmatpush1.msra.mxu0 0.0
    %231 = vmatprep.subr.mxu0 0.0
    %232 = vmatpush1.msra.mxu0 0.0
    %233 = vmatprep.subr.mxu0 0.0
    %234 = vmatpush1.msra.mxu0 0.0
    %235 = vmatprep.subr.mxu0 0.0
    %236 = vmatpush1.msra.mxu0 0.0
    %237 = vmatprep.subr.mxu0 0.0
    %238 = vmatpush1.msra.mxu0 0.0
    %239 = vmatprep.subr.mxu0 0.0
    %240 = vmatpush1.msra.mxu0 0.0
    %241 = vmatprep.subr.mxu0 0.0
    %242 = vmatpush1.msra.mxu0 0.0
    %243 = vmatprep.subr.mxu0 0.0
    %244 = vmatpush1.msra.mxu0 0.0
    %245 = vmatprep.subr.mxu0 0.0
    %246 = vmatpush1.msra.mxu0 0.0
    %247 = vmatprep.subr.mxu0 0.0
    %248 = vmatpush1.msra.mxu0 0.0
    %249 = vmatprep.subr.mxu0 0.0
    %250 = vmatpush1.msra.mxu0 0.0
    %251 = vmatprep.subr.mxu0 0.0
    %252 = vmatpush1.msra.mxu0 0.0
    %253 = vmatprep.subr.mxu0 0.0
    %254 = vmatpush1.msra.mxu0 0.0
    %255 = vmatprep.subr.mxu0 0.0
    %256 = vmatpush1.msra.mxu0 0.0
    %257 = vmatprep.subr.mxu0 0.0
    %258 = vmatpush1.msra.mxu0 0.0
    %259 = vmatprep.subr.mxu0 0.0
    %260 = vmatpush1.msra.mxu0 0.0
    %261 = vmatprep.subr.mxu0 0.0
    %262 = vmatpush1.msra.mxu0 0.0
    %263 = vmatprep.subr.mxu0 0.0
    %264 = vmatpush1.msra.mxu0 0.0
    %265 = vmatprep.subr.mxu0 0.0
    %266 = vmatpush1.msra.mxu0 0.0
    %267 = vmatprep.subr.mxu0 0.0
    %268 = vmatpush1.msra.mxu0 0.0
    %269 = vmatprep.subr.mxu0 0.0
    %270 = vmatpush1.msra.mxu0 0.0
    %271 = vmatprep.subr.mxu0 0.0
    %272 = vmatpush1.msra.mxu0 0.0
    %273 = vmatprep.subr.mxu0 0.0
    %274 = vmatpush1.msra.mxu0 0.0
    %275 = vmatprep.subr.mxu0 0.0
    %276 = vmatpush1.msra.mxu0 0.0
    %277 = vmatprep.mubr.f32.mxu0 0.0
    %278 = vmatmul.mubr.f32.gmra.mrb[0].mxu0 %v205
    %v279 = vpop.f32.mrb[0].mxu0
    %v280 = vadd.f32 0.0, %v279
    %v281 = vpop.f32.mrb[0].mxu0
    %282 = vmatprep.mubr.f32.mxu0 0.0
    %283 = vmatmul.mubr.f32.gmra.mrb[0].mxu0 %v208
    %v284 = vpop.f32.mrb[0].mxu0
    %v285 = vadd.f32 0.0, %v284
    %v286 = vpop.f32.mrb[0].mxu0
    %287 = vmatprep.mubr.f32.mxu0 0.0
    %288 = vmatmul.mubr.f32.gmra.mrb[0].mxu0 %v211
    %v289 = vpop.f32.mrb[0].mxu0
    %v290 = vadd.f32 0.0, %v289
    %v291 = vpop.f32.mrb[0].mxu0
    %292 = vdwg.mxu0
    %v293 = vld [vmem:[#allocation11] sm:$0xff]
    %v294 = vld [vmem:[#allocation11 + $0x8] sm:$0xff]
    %v295 = vld [vmem:[#allocation11 + $0x10] sm:$0xff]
    %296 = vmatprep.subr.mxu0 0.0
    %297 = vmatpush1.msra.mxu0 %v293
    %298 = vmatprep.subr.mxu0 0.0
    %299 = vmatpush1.msra.mxu0 %v294
    %300 = vmatprep.subr.mxu0 0.0
    %301 = vmatpush1.msra.mxu0 %v295
    %302 = vmatprep.subr.mxu0 0.0
    %303 = vmatpush1.msra.mxu0 0.0
    %304 = vmatprep.subr.mxu0 0.0
    %305 = vmatpush1.msra.mxu0 0.0
    %306 = vmatprep.subr.mxu0 0.0
    %307 = vmatpush1.msra.mxu0 0.0
    %308 = vmatprep.subr.mxu0 0.0
    %309 = vmatpush1.msra.mxu0 0.0
    %310 = vmatprep.subr.mxu0 0.0
    %311 = vmatpush1.msra.mxu0 0.0
    %312 = vmatprep.subr.mxu0 0.0
    %313 = vmatpush1.msra.mxu0 0.0
    %314 = vmatprep.subr.mxu0 0.0
    %315 = vmatpush1.msra.mxu0 0.0
    %316 = vmatprep.subr.mxu0 0.0
    %317 = vmatpush1.msra.mxu0 0.0
    %318 = vmatprep.subr.mxu0 0.0
    %319 = vmatpush1.msra.mxu0 0.0
    %320 = vmatprep.subr.mxu0 0.0
    %321 = vmatpush1.msra.mxu0 0.0
    %322 = vmatprep.subr.mxu0 0.0
    %323 = vmatpush1.msra.mxu0 0.0
    %324 = vmatprep.subr.mxu0 0.0
    %325 = vmatpush1.msra.mxu0 0.0
    %326 = vmatprep.subr.mxu0 0.0
    %327 = vmatpush1.msra.mxu0 0.0
    %328 = vmatprep.subr.mxu0 0.0
    %329 = vmatpush1.msra.mxu0 0.0
    %330 = vmatprep.subr.mxu0 0.0
    %331 = vmatpush1.msra.mxu0 0.0
    %332 = vmatprep.subr.mxu0 0.0
    %333 = vmatpush1.msra.mxu0 0.0
    %334 = vmatprep.subr.mxu0 0.0
    %335 = vmatpush1.msra.mxu0 0.0
    %336 = vmatprep.subr.mxu0 0.0
    %337 = vmatpush1.msra.mxu0 0.0
    %338 = vmatprep.subr.mxu0 0.0
    %339 = vmatpush1.msra.mxu0 0.0
    %340 = vmatprep.subr.mxu0 0.0
    %341 = vmatpush1.msra.mxu0 0.0
    %342 = vmatprep.subr.mxu0 0.0
    %343 = vmatpush1.msra.mxu0 0.0
    %344 = vmatprep.subr.mxu0 0.0
    %345 = vmatpush1.msra.mxu0 0.0
    %346 = vmatprep.subr.mxu0 0.0
    %347 = vmatpush1.msra.mxu0 0.0
    %348 = vmatprep.subr.mxu0 0.0
    %349 = vmatpush1.msra.mxu0 0.0
    %350 = vmatprep.subr.mxu0 0.0
    %351 = vmatpush1.msra.mxu0 0.0
    %352 = vmatprep.subr.mxu0 0.0
    %353 = vmatpush1.msra.mxu0 0.0
    %354 = vmatprep.subr.mxu0 0.0
    %355 = vmatpush1.msra.mxu0 0.0
    %356 = vmatprep.subr.mxu0 0.0
    %357 = vmatpush1.msra.mxu0 0.0
    %358 = vmatprep.subr.mxu0 0.0
    %359 = vmatpush1.msra.mxu0 0.0
    %360 = vmatprep.mubr.f32.mxu0 0.0
    %361 = vmatmul.mubr.f32.gmra.mrb[0].mxu0 %v205
    %v362 = vpop.f32.mrb[0].mxu0
    %v363 = vadd.f32 0.0, %v362
    %v364 = vpop.f32.mrb[0].mxu0
    %365 = vmatprep.mubr.f32.mxu0 0.0
    %366 = vmatmul.mubr.f32.gmra.mrb[0].mxu0 %v208
    %v367 = vpop.f32.mrb[0].mxu0
    %v368 = vadd.f32 0.0, %v367
    %v369 = vpop.f32.mrb[0].mxu0
    %370 = vmatprep.mubr.f32.mxu0 0.0
    %371 = vmatmul.mubr.f32.gmra.mrb[0].mxu0 %v211
    %v372 = vpop.f32.mrb[0].mxu0
    %v373 = vadd.f32 0.0, %v372
    %v374 = vpop.f32.mrb[0].mxu0
    %375 = vdwg.mxu0
    %vm376 = vcmask 64512
    %v378 = vsel %vm376, %v189, 0
    %v381 = vsel %vm376, %v280, 0
    %v384 = vsel %vm376, %v285, 0
    %386 = vmatprep.subr.mxu0 0.0
    %387 = vmatpush1.xpose.msra.mxu0 %v381
    %388 = vmatprep.subr.mxu0 0.0
    %389 = vmatpush1.xpose.msra.mxu0 %v384
    %390 = vmatprep.subr.mxu0 0.0
    %391 = vmatpush1.xpose.msra.mxu0 0.0
    %392 = vmatprep.subr.mxu0 0.0
    %393 = vmatpush1.xpose.msra.mxu0 0.0
    %394 = vmatprep.subr.mxu0 0.0
    %395 = vmatpush1.xpose.msra.mxu0 0.0
    %396 = vmatprep.subr.mxu0 0.0
    %397 = vmatpush1.xpose.msra.mxu0 0.0
    %398 = vmatprep.subr.mxu0 0.0
    %399 = vmatpush1.xpose.msra.mxu0 0.0
    %400 = vmatprep.subr.mxu0 0.0
    %401 = vmatpush1.xpose.msra.mxu0 0.0
    %402 = vmatprep.subr.mxu0 0.0
    %403 = vmatpush1.xpose.msra.mxu0 0.0
    %404 = vmatprep.subr.mxu0 0.0
    %405 = vmatpush1.xpose.msra.mxu0 0.0
    %406 = vmatprep.subr.mxu0 0.0
    %407 = vmatpush1.xpose.msra.mxu0 0.0
    %408 = vmatprep.subr.mxu0 0.0
    %409 = vmatpush1.xpose.msra.mxu0 0.0
    %410 = vmatprep.subr.mxu0 0.0
    %411 = vmatpush1.xpose.msra.mxu0 0.0
    %412 = vmatprep.subr.mxu0 0.0
    %413 = vmatpush1.xpose.msra.mxu0 0.0
    %414 = vmatprep.subr.mxu0 0.0
    %415 = vmatpush1.xpose.msra.mxu0 0.0
    %416 = vmatprep.subr.mxu0 0.0
    %417 = vmatpush1.xpose.msra.mxu0 0.0
    %418 = vmatprep.subr.mxu0 0.0
    %419 = vmatpush1.xpose.msra.mxu0 0.0
    %420 = vmatprep.subr.mxu0 0.0
    %421 = vmatpush1.xpose.msra.mxu0 0.0
    %422 = vmatprep.subr.mxu0 0.0
    %423 = vmatpush1.xpose.msra.mxu0 0.0
    %424 = vmatprep.subr.mxu0 0.0
    %425 = vmatpush1.xpose.msra.mxu0 0.0
    %426 = vmatprep.subr.mxu0 0.0
    %427 = vmatpush1.xpose.msra.mxu0 0.0
    %428 = vmatprep.subr.mxu0 0.0
    %429 = vmatpush1.xpose.msra.mxu0 0.0
    %430 = vmatprep.subr.mxu0 0.0
    %431 = vmatpush1.xpose.msra.mxu0 0.0
    %432 = vmatprep.subr.mxu0 0.0
    %433 = vmatpush1.xpose.msra.mxu0 0.0
    %434 = vmatprep.subr.mxu0 0.0
    %435 = vmatpush1.xpose.msra.mxu0 0.0
    %436 = vmatprep.subr.mxu0 0.0
    %437 = vmatpush1.xpose.msra.mxu0 0.0
    %438 = vmatprep.subr.mxu0 0.0
    %439 = vmatpush1.xpose.msra.mxu0 0.0
    %440 = vmatprep.subr.mxu0 0.0
    %441 = vmatpush1.xpose.msra.mxu0 0.0
    %442 = vmatprep.subr.mxu0 0.0
    %443 = vmatpush1.xpose.msra.mxu0 0.0
    %444 = vmatprep.subr.mxu0 0.0
    %445 = vmatpush1.xpose.msra.mxu0 0.0
    %446 = vmatprep.subr.mxu0 0.0
    %447 = vmatpush1.xpose.msra.mxu0 0.0
    %448 = vmatprep.subr.mxu0 0.0
    %449 = vmatpush1.xpose.msra.mxu0 0.0
    %450 = vmatprep.mubr.f32.mxu0 0.0
    %451 = vmatmul.mubr.f32.gmra.mrb[0].mxu0 %v378
    %v452 = vpop.f32.mrb[0].mxu0
    %v453 = vadd.f32 0.0, %v452
    %v454 = vpop.f32.mrb[0].mxu0
    %455 = vdwg.mxu0
    %vm456 = vcmask 80896
    %v457 = vsel %vm456, %v453, -inf
    %458 = vmax.xlane.f32.xlu0 %v457
    %v459 = vpop.xlane.xlu0 %458
    %v460 = vsub.f32 %v453, %v459
    %v461 = vmul.f32 %v460, 1.442695
    %v462 = vpow.pop %v461
    %v463 = vsel %vm456, %v462, 0.0
    %464 = vadd.xlane.f32.xlu0 %v463
    %v465 = vpop.xlane.xlu0 %464
    %v466 = vrcp.pop %v465
    %v467 = vmul.f32 %v462, %v466
    %v469 = vsel %vm456, %v467, 0
    %vm471 = vcmask 1041408
    %v473 = vsel %vm471, %v368, 0
    %475 = vmatprep.subr.mxu0 0.0
    %476 = vmatpush1.msra.mxu0 %v363
    %477 = vmatprep.subr.mxu0 0.0
    %478 = vmatpush1.msra.mxu0 %v473
    %479 = vmatprep.subr.mxu0 0.0
    %480 = vmatpush1.msra.mxu0 0.0
    %481 = vmatprep.subr.mxu0 0.0
    %482 = vmatpush1.msra.mxu0 0.0
    %483 = vmatprep.subr.mxu0 0.0
    %484 = vmatpush1.msra.mxu0 0.0
    %485 = vmatprep.subr.mxu0 0.0
    %486 = vmatpush1.msra.mxu0 0.0
    %487 = vmatprep.subr.mxu0 0.0
    %488 = vmatpush1.msra.mxu0 0.0
    %489 = vmatprep.subr.mxu0 0.0
    %490 = vmatpush1.msra.mxu0 0.0
    %491 = vmatprep.subr.mxu0 0.0
    %492 = vmatpush1.msra.mxu0 0.0
    %493 = vmatprep.subr.mxu0 0.0
    %494 = vmatpush1.msra.mxu0 0.0
    %495 = vmatprep.subr.mxu0 0.0
    %496 = vmatpush1.msra.mxu0 0.0
    %497 = vmatprep.subr.mxu0 0.0
    %498 = vmatpush1.msra.mxu0 0.0
    %499 = vmatprep.subr.mxu0 0.0
    %500 = vmatpush1.msra.mxu0 0.0
    %501 = vmatprep.subr.mxu0 0.0
    %502 = vmatpush1.msra.mxu0 0.0
    %503 = vmatprep.subr.mxu0 0.0
    %504 = vmatpush1.msra.mxu0 0.0
    %505 = vmatprep.subr.mxu0 0.0
    %506 = vmatpush1.msra.mxu0 0.0
    %507 = vmatprep.subr.mxu0 0.0
    %508 = vmatpush1.msra.mxu0 0.0
    %509 = vmatprep.subr.mxu0 0.0
    %510 = vmatpush1.msra.mxu0 0.0
    %511 = vmatprep.subr.mxu0 0.0
    %512 = vmatpush1.msra.mxu0 0.0
    %513 = vmatprep.subr.mxu0 0.0
    %514 = vmatpush1.msra.mxu0 0.0
    %515 = vmatprep.subr.mxu0 0.0
    %516 = vmatpush1.msra.mxu0 0.0
    %517 = vmatprep.subr.mxu0 0.0
    %518 = vmatpush1.msra.mxu0 0.0
    %519 = vmatprep.subr.mxu0 0.0
    %520 = vmatpush1.msra.mxu0 0.0
    %521 = vmatprep.subr.mxu0 0.0
    %522 = vmatpush1.msra.mxu0 0.0
    %523 = vmatprep.subr.mxu0 0.0
    %524 = vmatpush1.msra.mxu0 0.0
    %525 = vmatprep.subr.mxu0 0.0
    %526 = vmatpush1.msra.mxu0 0.0
    %527 = vmatprep.subr.mxu0 0.0
    %528 = vmatpush1.msra.mxu0 0.0
    %529 = vmatprep.subr.mxu0 0.0
    %530 = vmatpush1.msra.mxu0 0.0
    %531 = vmatprep.subr.mxu0 0.0
    %532 = vmatpush1.msra.mxu0 0.0
    %533 = vmatprep.subr.mxu0 0.0
    %534 = vmatpush1.msra.mxu0 0.0
    %535 = vmatprep.subr.mxu0 0.0
    %536 = vmatpush1.msra.mxu0 0.0
    %537 = vmatprep.subr.mxu0 0.0
    %538 = vmatpush1.msra.mxu0 0.0
    %539 = vmatprep.mubr.f32.mxu0 0.0
    %540 = vmatmul.mubr.f32.gmra.mrb[0].mxu0 %v469
    %v541 = vpop.f32.mrb[0].mxu0
    %v542 = vadd.f32 0.0, %v541
    %v543 = vpop.f32.mrb[0].mxu0
    %544 = vdwg.mxu0
    %545 = vst.msk [vmem:[#allocation2] sm:$0xff] %vm376, %v542
    %546 = vrot.lane.b32.xlu0 %v189, 120
    %v547 = vpop.permute.xlu0 %546
    %548 = vrot.lane.b32.xlu0 %v280, 120
    %v549 = vpop.permute.xlu0 %548
    %550 = vrot.lane.b32.xlu0 %v285, 120
    %v551 = vpop.permute.xlu0 %550
    %v552 = vsel %vm376, %v547, 0
    %v554 = vsel %vm376, %v549, 0
    %v556 = vsel %vm376, %v551, 0
    %558 = vmatprep.subr.mxu0 0.0
    %559 = vmatpush1.xpose.msra.mxu0 %v554
    %560 = vmatprep.subr.mxu0 0.0
    %561 = vmatpush1.xpose.msra.mxu0 %v556
    %562 = vmatprep.subr.mxu0 0.0
    %563 = vmatpush1.xpose.msra.mxu0 0.0
    %564 = vmatprep.subr.mxu0 0.0
    %565 = vmatpush1.xpose.msra.mxu0 0.0
    %566 = vmatprep.subr.mxu0 0.0
    %567 = vmatpush1.xpose.msra.mxu0 0.0
    %568 = vmatprep.subr.mxu0 0.0
    %569 = vmatpush1.xpose.msra.mxu0 0.0
    %570 = vmatprep.subr.mxu0 0.0
    %571 = vmatpush1.xpose.msra.mxu0 0.0
    %572 = vmatprep.subr.mxu0 0.0
    %573 = vmatpush1.xpose.msra.mxu0 0.0
    %574 = vmatprep.subr.mxu0 0.0
    %575 = vmatpush1.xpose.msra.mxu0 0.0
    %576 = vmatprep.subr.mxu0 0.0
    %577 = vmatpush1.xpose.msra.mxu0 0.0
    %578 = vmatprep.subr.mxu0 0.0
    %579 = vmatpush1.xpose.msra.mxu0 0.0
    %580 = vmatprep.subr.mxu0 0.0
    %581 = vmatpush1.xpose.msra.mxu0 0.0
    %582 = vmatprep.subr.mxu0 0.0
    %583 = vmatpush1.xpose.msra.mxu0 0.0
    %584 = vmatprep.subr.mxu0 0.0
    %585 = vmatpush1.xpose.msra.mxu0 0.0
    %586 = vmatprep.subr.mxu0 0.0
    %587 = vmatpush1.xpose.msra.mxu0 0.0
    %588 = vmatprep.subr.mxu0 0.0
    %589 = vmatpush1.xpose.msra.mxu0 0.0
    %590 = vmatprep.subr.mxu0 0.0
    %591 = vmatpush1.xpose.msra.mxu0 0.0
    %592 = vmatprep.subr.mxu0 0.0
    %593 = vmatpush1.xpose.msra.mxu0 0.0
    %594 = vmatprep.subr.mxu0 0.0
    %595 = vmatpush1.xpose.msra.mxu0 0.0
    %596 = vmatprep.subr.mxu0 0.0
    %597 = vmatpush1.xpose.msra.mxu0 0.0
    %598 = vmatprep.subr.mxu0 0.0
    %599 = vmatpush1.xpose.msra.mxu0 0.0
    %600 = vmatprep.subr.mxu0 0.0
    %601 = vmatpush1.xpose.msra.mxu0 0.0
    %602 = vmatprep.subr.mxu0 0.0
    %603 = vmatpush1.xpose.msra.mxu0 0.0
    %604 = vmatprep.subr.mxu0 0.0
    %605 = vmatpush1.xpose.msra.mxu0 0.0
    %606 = vmatprep.subr.mxu0 0.0
    %607 = vmatpush1.xpose.msra.mxu0 0.0
    %608 = vmatprep.subr.mxu0 0.0
    %609 = vmatpush1.xpose.msra.mxu0 0.0
    %610 = vmatprep.subr.mxu0 0.0
    %611 = vmatpush1.xpose.msra.mxu0 0.0
    %612 = vmatprep.subr.mxu0 0.0
    %613 = vmatpush1.xpose.msra.mxu0 0.0
    %614 = vmatprep.subr.mxu0 0.0
    %615 = vmatpush1.xpose.msra.mxu0 0.0
    %616 = vmatprep.subr.mxu0 0.0
    %617 = vmatpush1.xpose.msra.mxu0 0.0
    %618 = vmatprep.subr.mxu0 0.0
    %619 = vmatpush1.xpose.msra.mxu0 0.0
    %620 = vmatprep.subr.mxu0 0.0
    %621 = vmatpush1.xpose.msra.mxu0 0.0
    %622 = vmatprep.mubr.f32.mxu0 0.0
    %623 = vmatmul.mubr.f32.gmra.mrb[0].mxu0 %v552
    %v624 = vpop.f32.mrb[0].mxu0
    %v625 = vadd.f32 0.0, %v624
    %v626 = vpop.f32.mrb[0].mxu0
    %627 = vdwg.mxu0
    %v628 = vsel %vm456, %v625, -inf
    %629 = vmax.xlane.f32.xlu0 %v628
    %v630 = vpop.xlane.xlu0 %629
    %v631 = vsub.f32 %v625, %v630
    %v632 = vmul.f32 %v631, 1.442695
    %v633 = vpow.pop %v632
    %v634 = vsel %vm456, %v633, 0.0
    %635 = vadd.xlane.f32.xlu0 %v634
    %v636 = vpop.xlane.xlu0 %635
    %v637 = vrcp.pop %v636
    %v638 = vmul.f32 %v633, %v637
    %640 = vrot.lane.b32.xlu0 %v363, 120
    %v641 = vpop.permute.xlu0 %640
    %642 = vrot.lane.b32.xlu0 %v368, 120
    %v643 = vpop.permute.xlu0 %642
    %v646 = vsel %vm456, %v638, 0
    %v648 = vsel %vm471, %v643, 0
    %650 = vmatprep.subr.mxu0 0.0
    %651 = vmatpush1.msra.mxu0 %v641
    %652 = vmatprep.subr.mxu0 0.0
    %653 = vmatpush1.msra.mxu0 %v648
    %654 = vmatprep.subr.mxu0 0.0
    %655 = vmatpush1.msra.mxu0 0.0
    %656 = vmatprep.subr.mxu0 0.0
    %657 = vmatpush1.msra.mxu0 0.0
    %658 = vmatprep.subr.mxu0 0.0
    %659 = vmatpush1.msra.mxu0 0.0
    %660 = vmatprep.subr.mxu0 0.0
    %661 = vmatpush1.msra.mxu0 0.0
    %662 = vmatprep.subr.mxu0 0.0
    %663 = vmatpush1.msra.mxu0 0.0
    %664 = vmatprep.subr.mxu0 0.0
    %665 = vmatpush1.msra.mxu0 0.0
    %666 = vmatprep.subr.mxu0 0.0
    %667 = vmatpush1.msra.mxu0 0.0
    %668 = vmatprep.subr.mxu0 0.0
    %669 = vmatpush1.msra.mxu0 0.0
    %670 = vmatprep.subr.mxu0 0.0
    %671 = vmatpush1.msra.mxu0 0.0
    %672 = vmatprep.subr.mxu0 0.0
    %673 = vmatpush1.msra.mxu0 0.0
    %674 = vmatprep.subr.mxu0 0.0
    %675 = vmatpush1.msra.mxu0 0.0
    %676 = vmatprep.subr.mxu0 0.0
    %677 = vmatpush1.msra.mxu0 0.0
    %678 = vmatprep.subr.mxu0 0.0
    %679 = vmatpush1.msra.mxu0 0.0
    %680 = vmatprep.subr.mxu0 0.0
    %681 = vmatpush1.msra.mxu0 0.0
    %682 = vmatprep.subr.mxu0 0.0
    %683 = vmatpush1.msra.mxu0 0.0
    %684 = vmatprep.subr.mxu0 0.0
    %685 = vmatpush1.msra.mxu0 0.0
    %686 = vmatprep.subr.mxu0 0.0
    %687 = vmatpush1.msra.mxu0 0.0
    %688 = vmatprep.subr.mxu0 0.0
    %689 = vmatpush1.msra.mxu0 0.0
    %690 = vmatprep.subr.mxu0 0.0
    %691 = vmatpush1.msra.mxu0 0.0
    %692 = vmatprep.subr.mxu0 0.0
    %693 = vmatpush1.msra.mxu0 0.0
    %694 = vmatprep.subr.mxu0 0.0
    %695 = vmatpush1.msra.mxu0 0.0
    %696 = vmatprep.subr.mxu0 0.0
    %697 = vmatpush1.msra.mxu0 0.0
    %698 = vmatprep.subr.mxu0 0.0
    %699 = vmatpush1.msra.mxu0 0.0
    %700 = vmatprep.subr.mxu0 0.0
    %701 = vmatpush1.msra.mxu0 0.0
    %702 = vmatprep.subr.mxu0 0.0
    %703 = vmatpush1.msra.mxu0 0.0
    %704 = vmatprep.subr.mxu0 0.0
    %705 = vmatpush1.msra.mxu0 0.0
    %706 = vmatprep.subr.mxu0 0.0
    %707 = vmatpush1.msra.mxu0 0.0
    %708 = vmatprep.subr.mxu0 0.0
    %709 = vmatpush1.msra.mxu0 0.0
    %710 = vmatprep.subr.mxu0 0.0
    %711 = vmatpush1.msra.mxu0 0.0
    %712 = vmatprep.subr.mxu0 0.0
    %713 = vmatpush1.msra.mxu0 0.0
    %714 = vmatprep.mubr.f32.mxu0 0.0
    %715 = vmatmul.mubr.f32.gmra.mrb[0].mxu0 %v646
    %v716 = vpop.f32.mrb[0].mxu0
    %v717 = vadd.f32 0.0, %v716
    %v718 = vpop.f32.mrb[0].mxu0
    %719 = vdwg.mxu0
    %721 = vrot.lane.b32.xlu0 %v717, 8
    %v722 = vpop.permute.xlu0 %721
    %vm724 = vcmask 130112
    %725 = vst.msk [vmem:[#allocation2] sm:$0xff] %vm724, %v722
    %726 = vrot.lane.b32.xlu0 %v189, 112
    %v727 = vpop.permute.xlu0 %726
    %728 = vrot.lane.b32.xlu0 %v280, 112
    %v729 = vpop.permute.xlu0 %728
    %730 = vrot.lane.b32.xlu0 %v285, 112
    %v731 = vpop.permute.xlu0 %730
    %v732 = vsel %vm376, %v727, 0
    %v734 = vsel %vm376, %v729, 0
    %v736 = vsel %vm376, %v731, 0
    %738 = vmatprep.subr.mxu0 0.0
    %739 = vmatpush1.xpose.msra.mxu0 %v734
    %740 = vmatprep.subr.mxu0 0.0
    %741 = vmatpush1.xpose.msra.mxu0 %v736
    %742 = vmatprep.subr.mxu0 0.0
    %743 = vmatpush1.xpose.msra.mxu0 0.0
    %744 = vmatprep.subr.mxu0 0.0
    %745 = vmatpush1.xpose.msra.mxu0 0.0
    %746 = vmatprep.subr.mxu0 0.0
    %747 = vmatpush1.xpose.msra.mxu0 0.0
    %748 = vmatprep.subr.mxu0 0.0
    %749 = vmatpush1.xpose.msra.mxu0 0.0
    %750 = vmatprep.subr.mxu0 0.0
    %751 = vmatpush1.xpose.msra.mxu0 0.0
    %752 = vmatprep.subr.mxu0 0.0
    %753 = vmatpush1.xpose.msra.mxu0 0.0
    %754 = vmatprep.subr.mxu0 0.0
    %755 = vmatpush1.xpose.msra.mxu0 0.0
    %756 = vmatprep.subr.mxu0 0.0
    %757 = vmatpush1.xpose.msra.mxu0 0.0
    %758 = vmatprep.subr.mxu0 0.0
    %759 = vmatpush1.xpose.msra.mxu0 0.0
    %760 = vmatprep.subr.mxu0 0.0
    %761 = vmatpush1.xpose.msra.mxu0 0.0
    %762 = vmatprep.subr.mxu0 0.0
    %763 = vmatpush1.xpose.msra.mxu0 0.0
    %764 = vmatprep.subr.mxu0 0.0
    %765 = vmatpush1.xpose.msra.mxu0 0.0
    %766 = vmatprep.subr.mxu0 0.0
    %767 = vmatpush1.xpose.msra.mxu0 0.0
    %768 = vmatprep.subr.mxu0 0.0
    %769 = vmatpush1.xpose.msra.mxu0 0.0
    %770 = vmatprep.subr.mxu0 0.0
    %771 = vmatpush1.xpose.msra.mxu0 0.0
    %772 = vmatprep.subr.mxu0 0.0
    %773 = vmatpush1.xpose.msra.mxu0 0.0
    %774 = vmatprep.subr.mxu0 0.0
    %775 = vmatpush1.xpose.msra.mxu0 0.0
    %776 = vmatprep.subr.mxu0 0.0
    %777 = vmatpush1.xpose.msra.mxu0 0.0
    %778 = vmatprep.subr.mxu0 0.0
    %779 = vmatpush1.xpose.msra.mxu0 0.0
    %780 = vmatprep.subr.mxu0 0.0
    %781 = vmatpush1.xpose.msra.mxu0 0.0
    %782 = vmatprep.subr.mxu0 0.0
    %783 = vmatpush1.xpose.msra.mxu0 0.0
    %784 = vmatprep.subr.mxu0 0.0
    %785 = vmatpush1.xpose.msra.mxu0 0.0
    %786 = vmatprep.subr.mxu0 0.0
    %787 = vmatpush1.xpose.msra.mxu0 0.0
    %788 = vmatprep.subr.mxu0 0.0
    %789 = vmatpush1.xpose.msra.mxu0 0.0
    %790 = vmatprep.subr.mxu0 0.0
    %791 = vmatpush1.xpose.msra.mxu0 0.0
    %792 = vmatprep.subr.mxu0 0.0
    %793 = vmatpush1.xpose.msra.mxu0 0.0
    %794 = vmatprep.subr.mxu0 0.0
    %795 = vmatpush1.xpose.msra.mxu0 0.0
    %796 = vmatprep.subr.mxu0 0.0
    %797 = vmatpush1.xpose.msra.mxu0 0.0
    %798 = vmatprep.subr.mxu0 0.0
    %799 = vmatpush1.xpose.msra.mxu0 0.0
    %800 = vmatprep.subr.mxu0 0.0
    %801 = vmatpush1.xpose.msra.mxu0 0.0
    %802 = vmatprep.mubr.f32.mxu0 0.0
    %803 = vmatmul.mubr.f32.gmra.mrb[0].mxu0 %v732
    %v804 = vpop.f32.mrb[0].mxu0
    %v805 = vadd.f32 0.0, %v804
    %v806 = vpop.f32.mrb[0].mxu0
    %807 = vdwg.mxu0
    %v808 = vsel %vm456, %v805, -inf
    %809 = vmax.xlane.f32.xlu0 %v808
    %v810 = vpop.xlane.xlu0 %809
    %v811 = vsub.f32 %v805, %v810
    %v812 = vmul.f32 %v811, 1.442695
    %v813 = vpow.pop %v812
    %v814 = vsel %vm456, %v813, 0.0
    %815 = vadd.xlane.f32.xlu0 %v814
    %v816 = vpop.xlane.xlu0 %815
    %v817 = vrcp.pop %v816
    %v818 = vmul.f32 %v813, %v817
    %819 = vrot.lane.b32.xlu0 %v363, 112
    %v820 = vpop.permute.xlu0 %819
    %821 = vrot.lane.b32.xlu0 %v368, 112
    %v822 = vpop.permute.xlu0 %821
    %v825 = vsel %vm456, %v818, 0
    %v827 = vsel %vm471, %v822, 0
    %829 = vmatprep.subr.mxu0 0.0
    %830 = vmatpush1.msra.mxu0 %v820
    %831 = vmatprep.subr.mxu0 0.0
    %832 = vmatpush1.msra.mxu0 %v827
    %833 = vmatprep.subr.mxu0 0.0
    %834 = vmatpush1.msra.mxu0 0.0
    %835 = vmatprep.subr.mxu0 0.0
    %836 = vmatpush1.msra.mxu0 0.0
    %837 = vmatprep.subr.mxu0 0.0
    %838 = vmatpush1.msra.mxu0 0.0
    %839 = vmatprep.subr.mxu0 0.0
    %840 = vmatpush1.msra.mxu0 0.0
    %841 = vmatprep.subr.mxu0 0.0
    %842 = vmatpush1.msra.mxu0 0.0
    %843 = vmatprep.subr.mxu0 0.0
    %844 = vmatpush1.msra.mxu0 0.0
    %845 = vmatprep.subr.mxu0 0.0
    %846 = vmatpush1.msra.mxu0 0.0
    %847 = vmatprep.subr.mxu0 0.0
    %848 = vmatpush1.msra.mxu0 0.0
    %849 = vmatprep.subr.mxu0 0.0
    %850 = vmatpush1.msra.mxu0 0.0
    %851 = vmatprep.subr.mxu0 0.0
    %852 = vmatpush1.msra.mxu0 0.0
    %853 = vmatprep.subr.mxu0 0.0
    %854 = vmatpush1.msra.mxu0 0.0
    %855 = vmatprep.subr.mxu0 0.0
    %856 = vmatpush1.msra.mxu0 0.0
    %857 = vmatprep.subr.mxu0 0.0
    %858 = vmatpush1.msra.mxu0 0.0
    %859 = vmatprep.subr.mxu0 0.0
    %860 = vmatpush1.msra.mxu0 0.0
    %861 = vmatprep.subr.mxu0 0.0
    %862 = vmatpush1.msra.mxu0 0.0
    %863 = vmatprep.subr.mxu0 0.0
    %864 = vmatpush1.msra.mxu0 0.0
    %865 = vmatprep.subr.mxu0 0.0
    %866 = vmatpush1.msra.mxu0 0.0
    %867 = vmatprep.subr.mxu0 0.0
    %868 = vmatpush1.msra.mxu0 0.0
    %869 = vmatprep.subr.mxu0 0.0
    %870 = vmatpush1.msra.mxu0 0.0
    %871 = vmatprep.subr.mxu0 0.0
    %872 = vmatpush1.msra.mxu0 0.0
    %873 = vmatprep.subr.mxu0 0.0
    %874 = vmatpush1.msra.mxu0 0.0
    %875 = vmatprep.subr.mxu0 0.0
    %876 = vmatpush1.msra.mxu0 0.0
    %877 = vmatprep.subr.mxu0 0.0
    %878 = vmatpush1.msra.mxu0 0.0
    %879 = vmatprep.subr.mxu0 0.0
    %880 = vmatpush1.msra.mxu0 0.0
    %881 = vmatprep.subr.mxu0 0.0
    %882 = vmatpush1.msra.mxu0 0.0
    %883 = vmatprep.subr.mxu0 0.0
    %884 = vmatpush1.msra.mxu0 0.0
    %885 = vmatprep.subr.mxu0 0.0
    %886 = vmatpush1.msra.mxu0 0.0
    %887 = vmatprep.subr.mxu0 0.0
    %888 = vmatpush1.msra.mxu0 0.0
    %889 = vmatprep.subr.mxu0 0.0
    %890 = vmatpush1.msra.mxu0 0.0
    %891 = vmatprep.subr.mxu0 0.0
    %892 = vmatpush1.msra.mxu0 0.0
    %893 = vmatprep.mubr.f32.mxu0 0.0
    %894 = vmatmul.mubr.f32.gmra.mrb[0].mxu0 %v825
    %v895 = vpop.f32.mrb[0].mxu0
    %v896 = vadd.f32 0.0, %v895
    %v897 = vpop.f32.mrb[0].mxu0
    %898 = vdwg.mxu0
    %900 = vrot.lane.b32.xlu0 %v896, 16
    %v901 = vpop.permute.xlu0 %900
    %vm903 = vcmask 195712
    %904 = vst.msk [vmem:[#allocation2] sm:$0xff] %vm903, %v901
    %905 = vrot.lane.b32.xlu0 %v189, 104
    %v906 = vpop.permute.xlu0 %905
    %907 = vrot.lane.b32.xlu0 %v280, 104
    %v908 = vpop.permute.xlu0 %907
    %909 = vrot.lane.b32.xlu0 %v285, 104
    %v910 = vpop.permute.xlu0 %909
    %v911 = vsel %vm376, %v906, 0
    %v913 = vsel %vm376, %v908, 0
    %v915 = vsel %vm376, %v910, 0
    %917 = vmatprep.subr.mxu0 0.0
    %918 = vmatpush1.xpose.msra.mxu0 %v913
    %919 = vmatprep.subr.mxu0 0.0
    %920 = vmatpush1.xpose.msra.mxu0 %v915
    %921 = vmatprep.subr.mxu0 0.0
    %922 = vmatpush1.xpose.msra.mxu0 0.0
    %923 = vmatprep.subr.mxu0 0.0
    %924 = vmatpush1.xpose.msra.mxu0 0.0
    %925 = vmatprep.subr.mxu0 0.0
    %926 = vmatpush1.xpose.msra.mxu0 0.0
    %927 = vmatprep.subr.mxu0 0.0
    %928 = vmatpush1.xpose.msra.mxu0 0.0
    %929 = vmatprep.subr.mxu0 0.0
    %930 = vmatpush1.xpose.msra.mxu0 0.0
    %931 = vmatprep.subr.mxu0 0.0
    %932 = vmatpush1.xpose.msra.mxu0 0.0
    %933 = vmatprep.subr.mxu0 0.0
    %934 = vmatpush1.xpose.msra.mxu0 0.0
    %935 = vmatprep.subr.mxu0 0.0
    %936 = vmatpush1.xpose.msra.mxu0 0.0
    %937 = vmatprep.subr.mxu0 0.0
    %938 = vmatpush1.xpose.msra.mxu0 0.0
    %939 = vmatprep.subr.mxu0 0.0
    %940 = vmatpush1.xpose.msra.mxu0 0.0
    %941 = vmatprep.subr.mxu0 0.0
    %942 = vmatpush1.xpose.msra.mxu0 0.0
    %943 = vmatprep.subr.mxu0 0.0
    %944 = vmatpush1.xpose.msra.mxu0 0.0
    %945 = vmatprep.subr.mxu0 0.0
    %946 = vmatpush1.xpose.msra.mxu0 0.0
    %947 = vmatprep.subr.mxu0 0.0
    %948 = vmatpush1.xpose.msra.mxu0 0.0
    %949 = vmatprep.subr.mxu0 0.0
    %950 = vmatpush1.xpose.msra.mxu0 0.0
    %951 = vmatprep.subr.mxu0 0.0
    %952 = vmatpush1.xpose.msra.mxu0 0.0
    %953 = vmatprep.subr.mxu0 0.0
    %954 = vmatpush1.xpose.msra.mxu0 0.0
    %955 = vmatprep.subr.mxu0 0.0
    %956 = vmatpush1.xpose.msra.mxu0 0.0
    %957 = vmatprep.subr.mxu0 0.0
    %958 = vmatpush1.xpose.msra.mxu0 0.0
    %959 = vmatprep.subr.mxu0 0.0
    %960 = vmatpush1.xpose.msra.mxu0 0.0
    %961 = vmatprep.subr.mxu0 0.0
    %962 = vmatpush1.xpose.msra.mxu0 0.0
    %963 = vmatprep.subr.mxu0 0.0
    %964 = vmatpush1.xpose.msra.mxu0 0.0
    %965 = vmatprep.subr.mxu0 0.0
    %966 = vmatpush1.xpose.msra.mxu0 0.0
    %967 = vmatprep.subr.mxu0 0.0
    %968 = vmatpush1.xpose.msra.mxu0 0.0
    %969 = vmatprep.subr.mxu0 0.0
    %970 = vmatpush1.xpose.msra.mxu0 0.0
    %971 = vmatprep.subr.mxu0 0.0
    %972 = vmatpush1.xpose.msra.mxu0 0.0
    %973 = vmatprep.subr.mxu0 0.0
    %974 = vmatpush1.xpose.msra.mxu0 0.0
    %975 = vmatprep.subr.mxu0 0.0
    %976 = vmatpush1.xpose.msra.mxu0 0.0
    %977 = vmatprep.subr.mxu0 0.0
    %978 = vmatpush1.xpose.msra.mxu0 0.0
    %979 = vmatprep.subr.mxu0 0.0
    %980 = vmatpush1.xpose.msra.mxu0 0.0
    %981 = vmatprep.mubr.f32.mxu0 0.0
    %982 = vmatmul.mubr.f32.gmra.mrb[0].mxu0 %v911
    %v983 = vpop.f32.mrb[0].mxu0
    %v984 = vadd.f32 0.0, %v983
    %v985 = vpop.f32.mrb[0].mxu0
    %986 = vdwg.mxu0
    %v987 = vsel %vm456, %v984, -inf
    %988 = vmax.xlane.f32.xlu0 %v987
    %v989 = vpop.xlane.xlu0 %988
    %v990 = vsub.f32 %v984, %v989
    %v991 = vmul.f32 %v990, 1.442695
    %v992 = vpow.pop %v991
    %v993 = vsel %vm456, %v992, 0.0
    %994 = vadd.xlane.f32.xlu0 %v993
    %v995 = vpop.xlane.xlu0 %994
    %v996 = vrcp.pop %v995
    %v997 = vmul.f32 %v992, %v996
    %998 = vrot.lane.b32.xlu0 %v363, 104
    %v999 = vpop.permute.xlu0 %998
    %1000 = vrot.lane.b32.xlu0 %v368, 104
    %v1001 = vpop.permute.xlu0 %1000
    %v1004 = vsel %vm456, %v997, 0
    %v1006 = vsel %vm471, %v1001, 0
    %1008 = vmatprep.subr.mxu0 0.0
    %1009 = vmatpush1.msra.mxu0 %v999
    %1010 = vmatprep.subr.mxu0 0.0
    %1011 = vmatpush1.msra.mxu0 %v1006
    %1012 = vmatprep.subr.mxu0 0.0
    %1013 = vmatpush1.msra.mxu0 0.0
    %1014 = vmatprep.subr.mxu0 0.0
    %1015 = vmatpush1.msra.mxu0 0.0
    %1016 = vmatprep.subr.mxu0 0.0
    %1017 = vmatpush1.msra.mxu0 0.0
    %1018 = vmatprep.subr.mxu0 0.0
    %1019 = vmatpush1.msra.mxu0 0.0
    %1020 = vmatprep.subr.mxu0 0.0
    %1021 = vmatpush1.msra.mxu0 0.0
    %1022 = vmatprep.subr.mxu0 0.0
    %1023 = vmatpush1.msra.mxu0 0.0
    %1024 = vmatprep.subr.mxu0 0.0
    %1025 = vmatpush1.msra.mxu0 0.0
    %1026 = vmatprep.subr.mxu0 0.0
    %1027 = vmatpush1.msra.mxu0 0.0
    %1028 = vmatprep.subr.mxu0 0.0
    %1029 = vmatpush1.msra.mxu0 0.0
    %1030 = vmatprep.subr.mxu0 0.0
    %1031 = vmatpush1.msra.mxu0 0.0
    %1032 = vmatprep.subr.mxu0 0.0
    %1033 = vmatpush1.msra.mxu0 0.0
    %1034 = vmatprep.subr.mxu0 0.0
    %1035 = vmatpush1.msra.mxu0 0.0
    %1036 = vmatprep.subr.mxu0 0.0
    %1037 = vmatpush1.msra.mxu0 0.0
    %1038 = vmatprep.subr.mxu0 0.0
    %1039 = vmatpush1.msra.mxu0 0.0
    %1040 = vmatprep.subr.mxu0 0.0
    %1041 = vmatpush1.msra.mxu0 0.0
    %1042 = vmatprep.subr.mxu0 0.0
    %1043 = vmatpush1.msra.mxu0 0.0
    %1044 = vmatprep.subr.mxu0 0.0
    %1045 = vmatpush1.msra.mxu0 0.0
    %1046 = vmatprep.subr.mxu0 0.0
    %1047 = vmatpush1.msra.mxu0 0.0
    %1048 = vmatprep.subr.mxu0 0.0
    %1049 = vmatpush1.msra.mxu0 0.0
    %1050 = vmatprep.subr.mxu0 0.0
    %1051 = vmatpush1.msra.mxu0 0.0
    %1052 = vmatprep.subr.mxu0 0.0
    %1053 = vmatpush1.msra.mxu0 0.0
    %1054 = vmatprep.subr.mxu0 0.0
    %1055 = vmatpush1.msra.mxu0 0.0
    %1056 = vmatprep.subr.mxu0 0.0
    %1057 = vmatpush1.msra.mxu0 0.0
    %1058 = vmatprep.subr.mxu0 0.0
    %1059 = vmatpush1.msra.mxu0 0.0
    %1060 = vmatprep.subr.mxu0 0.0
    %1061 = vmatpush1.msra.mxu0 0.0
    %1062 = vmatprep.subr.mxu0 0.0
    %1063 = vmatpush1.msra.mxu0 0.0
    %1064 = vmatprep.subr.mxu0 0.0
    %1065 = vmatpush1.msra.mxu0 0.0
    %1066 = vmatprep.subr.mxu0 0.0
    %1067 = vmatpush1.msra.mxu0 0.0
    %1068 = vmatprep.subr.mxu0 0.0
    %1069 = vmatpush1.msra.mxu0 0.0
    %1070 = vmatprep.subr.mxu0 0.0
    %1071 = vmatpush1.msra.mxu0 0.0
    %1072 = vmatprep.mubr.f32.mxu0 0.0
    %1073 = vmatmul.mubr.f32.gmra.mrb[0].mxu0 %v1004
    %v1074 = vpop.f32.mrb[0].mxu0
    %v1075 = vadd.f32 0.0, %v1074
    %v1076 = vpop.f32.mrb[0].mxu0
    %1077 = vdwg.mxu0
    %1079 = vrot.lane.b32.xlu0 %v1075, 24
    %v1080 = vpop.permute.xlu0 %1079
    %vm1082 = vcmask 261312
    %1083 = vst.msk [vmem:[#allocation2] sm:$0xff] %vm1082, %v1080
    %vm1085 = vcmask 1045504
    %v1086 = vrot.slane %v285, 2
    %v1087 = vrot.slane %v290, 2
    %v1088 = vsel %vm1085, %v1086, %v1087
    %v1090 = vsel %vm376, %v194, 0
    %v1092 = vsel %vm376, %v1088, 0
    %v1094 = vsel %vm376, %v1087, 0
    %1096 = vmatprep.subr.mxu0 0.0
    %1097 = vmatpush1.xpose.msra.mxu0 %v1092
    %1098 = vmatprep.subr.mxu0 0.0
    %1099 = vmatpush1.xpose.msra.mxu0 %v1094
    %1100 = vmatprep.subr.mxu0 0.0
    %1101 = vmatpush1.xpose.msra.mxu0 0.0
    %1102 = vmatprep.subr.mxu0 0.0
    %1103 = vmatpush1.xpose.msra.mxu0 0.0
    %1104 = vmatprep.subr.mxu0 0.0
    %1105 = vmatpush1.xpose.msra.mxu0 0.0
    %1106 = vmatprep.subr.mxu0 0.0
    %1107 = vmatpush1.xpose.msra.mxu0 0.0
    %1108 = vmatprep.subr.mxu0 0.0
    %1109 = vmatpush1.xpose.msra.mxu0 0.0
    %1110 = vmatprep.subr.mxu0 0.0
    %1111 = vmatpush1.xpose.msra.mxu0 0.0
    %1112 = vmatprep.subr.mxu0 0.0
    %1113 = vmatpush1.xpose.msra.mxu0 0.0
    %1114 = vmatprep.subr.mxu0 0.0
    %1115 = vmatpush1.xpose.msra.mxu0 0.0
    %1116 = vmatprep.subr.mxu0 0.0
    %1117 = vmatpush1.xpose.msra.mxu0 0.0
    %1118 = vmatprep.subr.mxu0 0.0
    %1119 = vmatpush1.xpose.msra.mxu0 0.0
    %1120 = vmatprep.subr.mxu0 0.0
    %1121 = vmatpush1.xpose.msra.mxu0 0.0
    %1122 = vmatprep.subr.mxu0 0.0
    %1123 = vmatpush1.xpose.msra.mxu0 0.0
    %1124 = vmatprep.subr.mxu0 0.0
    %1125 = vmatpush1.xpose.msra.mxu0 0.0
    %1126 = vmatprep.subr.mxu0 0.0
    %1127 = vmatpush1.xpose.msra.mxu0 0.0
    %1128 = vmatprep.subr.mxu0 0.0
    %1129 = vmatpush1.xpose.msra.mxu0 0.0
    %1130 = vmatprep.subr.mxu0 0.0
    %1131 = vmatpush1.xpose.msra.mxu0 0.0
    %1132 = vmatprep.subr.mxu0 0.0
    %1133 = vmatpush1.xpose.msra.mxu0 0.0
    %1134 = vmatprep.subr.mxu0 0.0
    %1135 = vmatpush1.xpose.msra.mxu0 0.0
    %1136 = vmatprep.subr.mxu0 0.0
    %1137 = vmatpush1.xpose.msra.mxu0 0.0
    %1138 = vmatprep.subr.mxu0 0.0
    %1139 = vmatpush1.xpose.msra.mxu0 0.0
    %1140 = vmatprep.subr.mxu0 0.0
    %1141 = vmatpush1.xpose.msra.mxu0 0.0
    %1142 = vmatprep.subr.mxu0 0.0
    %1143 = vmatpush1.xpose.msra.mxu0 0.0
    %1144 = vmatprep.subr.mxu0 0.0
    %1145 = vmatpush1.xpose.msra.mxu0 0.0
    %1146 = vmatprep.subr.mxu0 0.0
    %1147 = vmatpush1.xpose.msra.mxu0 0.0
    %1148 = vmatprep.subr.mxu0 0.0
    %1149 = vmatpush1.xpose.msra.mxu0 0.0
    %1150 = vmatprep.subr.mxu0 0.0
    %1151 = vmatpush1.xpose.msra.mxu0 0.0
    %1152 = vmatprep.subr.mxu0 0.0
    %1153 = vmatpush1.xpose.msra.mxu0 0.0
    %1154 = vmatprep.subr.mxu0 0.0
    %1155 = vmatpush1.xpose.msra.mxu0 0.0
    %1156 = vmatprep.subr.mxu0 0.0
    %1157 = vmatpush1.xpose.msra.mxu0 0.0
    %1158 = vmatprep.subr.mxu0 0.0
    %1159 = vmatpush1.xpose.msra.mxu0 0.0
    %1160 = vmatprep.mubr.f32.mxu0 0.0
    %1161 = vmatmul.mubr.f32.gmra.mrb[0].mxu0 %v1090
    %v1162 = vpop.f32.mrb[0].mxu0
    %v1163 = vadd.f32 0.0, %v1162
    %v1164 = vpop.f32.mrb[0].mxu0
    %1165 = vdwg.mxu0
    %v1166 = vsel %vm456, %v1163, -inf
    %1167 = vmax.xlane.f32.xlu0 %v1166
    %v1168 = vpop.xlane.xlu0 %1167
    %v1169 = vsub.f32 %v1163, %v1168
    %v1170 = vmul.f32 %v1169, 1.442695
    %v1171 = vpow.pop %v1170
    %v1172 = vsel %vm456, %v1171, 0.0
    %1173 = vadd.xlane.f32.xlu0 %v1172
    %v1174 = vpop.xlane.xlu0 %1173
    %v1175 = vrcp.pop %v1174
    %v1176 = vmul.f32 %v1171, %v1175
    %v1178 = vrot.slane %v368, 2
    %v1179 = vrot.slane %v373, 2
    %v1180 = vsel %vm1085, %v1178, %v1179
    %v1183 = vsel %vm456, %v1176, 0
    %v1185 = vsel %vm471, %v1179, 0
    %1187 = vmatprep.subr.mxu0 0.0
    %1188 = vmatpush1.msra.mxu0 %v1180
    %1189 = vmatprep.subr.mxu0 0.0
    %1190 = vmatpush1.msra.mxu0 %v1185
    %1191 = vmatprep.subr.mxu0 0.0
    %1192 = vmatpush1.msra.mxu0 0.0
    %1193 = vmatprep.subr.mxu0 0.0
    %1194 = vmatpush1.msra.mxu0 0.0
    %1195 = vmatprep.subr.mxu0 0.0
    %1196 = vmatpush1.msra.mxu0 0.0
    %1197 = vmatprep.subr.mxu0 0.0
    %1198 = vmatpush1.msra.mxu0 0.0
    %1199 = vmatprep.subr.mxu0 0.0
    %1200 = vmatpush1.msra.mxu0 0.0
    %1201 = vmatprep.subr.mxu0 0.0
    %1202 = vmatpush1.msra.mxu0 0.0
    %1203 = vmatprep.subr.mxu0 0.0
    %1204 = vmatpush1.msra.mxu0 0.0
    %1205 = vmatprep.subr.mxu0 0.0
    %1206 = vmatpush1.msra.mxu0 0.0
    %1207 = vmatprep.subr.mxu0 0.0
    %1208 = vmatpush1.msra.mxu0 0.0
    %1209 = vmatprep.subr.mxu0 0.0
    %1210 = vmatpush1.msra.mxu0 0.0
    %1211 = vmatprep.subr.mxu0 0.0
    %1212 = vmatpush1.msra.mxu0 0.0
    %1213 = vmatprep.subr.mxu0 0.0
    %1214 = vmatpush1.msra.mxu0 0.0
    %1215 = vmatprep.subr.mxu0 0.0
    %1216 = vmatpush1.msra.mxu0 0.0
    %1217 = vmatprep.subr.mxu0 0.0
    %1218 = vmatpush1.msra.mxu0 0.0
    %1219 = vmatprep.subr.mxu0 0.0
    %1220 = vmatpush1.msra.mxu0 0.0
    %1221 = vmatprep.subr.mxu0 0.0
    %1222 = vmatpush1.msra.mxu0 0.0
    %1223 = vmatprep.subr.mxu0 0.0
    %1224 = vmatpush1.msra.mxu0 0.0
    %1225 = vmatprep.subr.mxu0 0.0
    %1226 = vmatpush1.msra.mxu0 0.0
    %1227 = vmatprep.subr.mxu0 0.0
    %1228 = vmatpush1.msra.mxu0 0.0
    %1229 = vmatprep.subr.mxu0 0.0
    %1230 = vmatpush1.msra.mxu0 0.0
    %1231 = vmatprep.subr.mxu0 0.0
    %1232 = vmatpush1.msra.mxu0 0.0
    %1233 = vmatprep.subr.mxu0 0.0
    %1234 = vmatpush1.msra.mxu0 0.0
    %1235 = vmatprep.subr.mxu0 0.0
    %1236 = vmatpush1.msra.mxu0 0.0
    %1237 = vmatprep.subr.mxu0 0.0
    %1238 = vmatpush1.msra.mxu0 0.0
    %1239 = vmatprep.subr.mxu0 0.0
    %1240 = vmatpush1.msra.mxu0 0.0
    %1241 = vmatprep.subr.mxu0 0.0
    %1242 = vmatpush1.msra.mxu0 0.0
    %1243 = vmatprep.subr.mxu0 0.0
    %1244 = vmatpush1.msra.mxu0 0.0
    %1245 = vmatprep.subr.mxu0 0.0
    %1246 = vmatpush1.msra.mxu0 0.0
    %1247 = vmatprep.subr.mxu0 0.0
    %1248 = vmatpush1.msra.mxu0 0.0
    %1249 = vmatprep.subr.mxu0 0.0
    %1250 = vmatpush1.msra.mxu0 0.0
    %1251 = vmatprep.mubr.f32.mxu0 0.0
    %1252 = vmatmul.mubr.f32.gmra.mrb[0].mxu0 %v1183
    %v1253 = vpop.f32.mrb[0].mxu0
    %v1254 = vadd.f32 0.0, %v1253
    %v1255 = vpop.f32.mrb[0].mxu0
    %1256 = vdwg.mxu0
    %1257 = vst.msk [vmem:[#allocation2 + $0x8] sm:$0xff] %vm376, %v1254
    %1258 = vrot.lane.b32.xlu0 %v194, 120
    %v1259 = vpop.permute.xlu0 %1258
    %1260 = vrot.lane.b32.xlu0 %v1088, 120
    %v1261 = vpop.permute.xlu0 %1260
    %1262 = vrot.lane.b32.xlu0 %v1087, 120
    %v1263 = vpop.permute.xlu0 %1262
    %v1264 = vsel %vm376, %v1259, 0
    %v1266 = vsel %vm376, %v1261, 0
    %v1268 = vsel %vm376, %v1263, 0
    %1270 = vmatprep.subr.mxu0 0.0
    %1271 = vmatpush1.xpose.msra.mxu0 %v1266
    %1272 = vmatprep.subr.mxu0 0.0
    %1273 = vmatpush1.xpose.msra.mxu0 %v1268
    %1274 = vmatprep.subr.mxu0 0.0
    %1275 = vmatpush1.xpose.msra.mxu0 0.0
    %1276 = vmatprep.subr.mxu0 0.0
    %1277 = vmatpush1.xpose.msra.mxu0 0.0
    %1278 = vmatprep.subr.mxu0 0.0
    %1279 = vmatpush1.xpose.msra.mxu0 0.0
    %1280 = vmatprep.subr.mxu0 0.0
    %1281 = vmatpush1.xpose.msra.mxu0 0.0
    %1282 = vmatprep.subr.mxu0 0.0
    %1283 = vmatpush1.xpose.msra.mxu0 0.0
    %1284 = vmatprep.subr.mxu0 0.0
    %1285 = vmatpush1.xpose.msra.mxu0 0.0
    %1286 = vmatprep.subr.mxu0 0.0
    %1287 = vmatpush1.xpose.msra.mxu0 0.0
    %1288 = vmatprep.subr.mxu0 0.0
    %1289 = vmatpush1.xpose.msra.mxu0 0.0
    %1290 = vmatprep.subr.mxu0 0.0
    %1291 = vmatpush1.xpose.msra.mxu0 0.0
    %1292 = vmatprep.subr.mxu0 0.0
    %1293 = vmatpush1.xpose.msra.mxu0 0.0
    %1294 = vmatprep.subr.mxu0 0.0
    %1295 = vmatpush1.xpose.msra.mxu0 0.0
    %1296 = vmatprep.subr.mxu0 0.0
    %1297 = vmatpush1.xpose.msra.mxu0 0.0
    %1298 = vmatprep.subr.mxu0 0.0
    %1299 = vmatpush1.xpose.msra.mxu0 0.0
    %1300 = vmatprep.subr.mxu0 0.0
    %1301 = vmatpush1.xpose.msra.mxu0 0.0
    %1302 = vmatprep.subr.mxu0 0.0
    %1303 = vmatpush1.xpose.msra.mxu0 0.0
    %1304 = vmatprep.subr.mxu0 0.0
    %1305 = vmatpush1.xpose.msra.mxu0 0.0
    %1306 = vmatprep.subr.mxu0 0.0
    %1307 = vmatpush1.xpose.msra.mxu0 0.0
    %1308 = vmatprep.subr.mxu0 0.0
    %1309 = vmatpush1.xpose.msra.mxu0 0.0
    %1310 = vmatprep.subr.mxu0 0.0
    %1311 = vmatpush1.xpose.msra.mxu0 0.0
    %1312 = vmatprep.subr.mxu0 0.0
    %1313 = vmatpush1.xpose.msra.mxu0 0.0
    %1314 = vmatprep.subr.mxu0 0.0
    %1315 = vmatpush1.xpose.msra.mxu0 0.0
    %1316 = vmatprep.subr.mxu0 0.0
    %1317 = vmatpush1.xpose.msra.mxu0 0.0
    %1318 = vmatprep.subr.mxu0 0.0
    %1319 = vmatpush1.xpose.msra.mxu0 0.0
    %1320 = vmatprep.subr.mxu0 0.0
    %1321 = vmatpush1.xpose.msra.mxu0 0.0
    %1322 = vmatprep.subr.mxu0 0.0
    %1323 = vmatpush1.xpose.msra.mxu0 0.0
    %1324 = vmatprep.subr.mxu0 0.0
    %1325 = vmatpush1.xpose.msra.mxu0 0.0
    %1326 = vmatprep.subr.mxu0 0.0
    %1327 = vmatpush1.xpose.msra.mxu0 0.0
    %1328 = vmatprep.subr.mxu0 0.0
    %1329 = vmatpush1.xpose.msra.mxu0 0.0
    %1330 = vmatprep.subr.mxu0 0.0
    %1331 = vmatpush1.xpose.msra.mxu0 0.0
    %1332 = vmatprep.subr.mxu0 0.0
    %1333 = vmatpush1.xpose.msra.mxu0 0.0
    %1334 = vmatprep.mubr.f32.mxu0 0.0
    %1335 = vmatmul.mubr.f32.gmra.mrb[0].mxu0 %v1264
    %v1336 = vpop.f32.mrb[0].mxu0
    %v1337 = vadd.f32 0.0, %v1336
    %v1338 = vpop.f32.mrb[0].mxu0
    %1339 = vdwg.mxu0
    %v1340 = vsel %vm456, %v1337, -inf
    %1341 = vmax.xlane.f32.xlu0 %v1340
    %v1342 = vpop.xlane.xlu0 %1341
    %v1343 = vsub.f32 %v1337, %v1342
    %v1344 = vmul.f32 %v1343, 1.442695
    %v1345 = vpow.pop %v1344
    %v1346 = vsel %vm456, %v1345, 0.0
    %1347 = vadd.xlane.f32.xlu0 %v1346
    %v1348 = vpop.xlane.xlu0 %1347
    %v1349 = vrcp.pop %v1348
    %v1350 = vmul.f32 %v1345, %v1349
    %1351 = vrot.lane.b32.xlu0 %v1180, 120
    %v1352 = vpop.permute.xlu0 %1351
    %1353 = vrot.lane.b32.xlu0 %v1179, 120
    %v1354 = vpop.permute.xlu0 %1353
    %v1357 = vsel %vm456, %v1350, 0
    %v1359 = vsel %vm471, %v1354, 0
    %1361 = vmatprep.subr.mxu0 0.0
    %1362 = vmatpush1.msra.mxu0 %v1352
    %1363 = vmatprep.subr.mxu0 0.0
    %1364 = vmatpush1.msra.mxu0 %v1359
    %1365 = vmatprep.subr.mxu0 0.0
    %1366 = vmatpush1.msra.mxu0 0.0
    %1367 = vmatprep.subr.mxu0 0.0
    %1368 = vmatpush1.msra.mxu0 0.0
    %1369 = vmatprep.subr.mxu0 0.0
    %1370 = vmatpush1.msra.mxu0 0.0
    %1371 = vmatprep.subr.mxu0 0.0
    %1372 = vmatpush1.msra.mxu0 0.0
    %1373 = vmatprep.subr.mxu0 0.0
    %1374 = vmatpush1.msra.mxu0 0.0
    %1375 = vmatprep.subr.mxu0 0.0
    %1376 = vmatpush1.msra.mxu0 0.0
    %1377 = vmatprep.subr.mxu0 0.0
    %1378 = vmatpush1.msra.mxu0 0.0
    %1379 = vmatprep.subr.mxu0 0.0
    %1380 = vmatpush1.msra.mxu0 0.0
    %1381 = vmatprep.subr.mxu0 0.0
    %1382 = vmatpush1.msra.mxu0 0.0
    %1383 = vmatprep.subr.mxu0 0.0
    %1384 = vmatpush1.msra.mxu0 0.0
    %1385 = vmatprep.subr.mxu0 0.0
    %1386 = vmatpush1.msra.mxu0 0.0
    %1387 = vmatprep.subr.mxu0 0.0
    %1388 = vmatpush1.msra.mxu0 0.0
    %1389 = vmatprep.subr.mxu0 0.0
    %1390 = vmatpush1.msra.mxu0 0.0
    %1391 = vmatprep.subr.mxu0 0.0
    %1392 = vmatpush1.msra.mxu0 0.0
    %1393 = vmatprep.subr.mxu0 0.0
    %1394 = vmatpush1.msra.mxu0 0.0
    %1395 = vmatprep.subr.mxu0 0.0
    %1396 = vmatpush1.msra.mxu0 0.0
    %1397 = vmatprep.subr.mxu0 0.0
    %1398 = vmatpush1.msra.mxu0 0.0
    %1399 = vmatprep.subr.mxu0 0.0
    %1400 = vmatpush1.msra.mxu0 0.0
    %1401 = vmatprep.subr.mxu0 0.0
    %1402 = vmatpush1.msra.mxu0 0.0
    %1403 = vmatprep.subr.mxu0 0.0
    %1404 = vmatpush1.msra.mxu0 0.0
    %1405 = vmatprep.subr.mxu0 0.0
    %1406 = vmatpush1.msra.mxu0 0.0
    %1407 = vmatprep.subr.mxu0 0.0
    %1408 = vmatpush1.msra.mxu0 0.0
    %1409 = vmatprep.subr.mxu0 0.0
    %1410 = vmatpush1.msra.mxu0 0.0
    %1411 = vmatprep.subr.mxu0 0.0
    %1412 = vmatpush1.msra.mxu0 0.0
    %1413 = vmatprep.subr.mxu0 0.0
    %1414 = vmatpush1.msra.mxu0 0.0
    %1415 = vmatprep.subr.mxu0 0.0
    %1416 = vmatpush1.msra.mxu0 0.0
    %1417 = vmatprep.subr.mxu0 0.0
    %1418 = vmatpush1.msra.mxu0 0.0
    %1419 = vmatprep.subr.mxu0 0.0
    %1420 = vmatpush1.msra.mxu0 0.0
    %1421 = vmatprep.subr.mxu0 0.0
    %1422 = vmatpush1.msra.mxu0 0.0
    %1423 = vmatprep.subr.mxu0 0.0
    %1424 = vmatpush1.msra.mxu0 0.0
    %1425 = vmatprep.mubr.f32.mxu0 0.0
    %1426 = vmatmul.mubr.f32.gmra.mrb[0].mxu0 %v1357
    %v1427 = vpop.f32.mrb[0].mxu0
    %v1428 = vadd.f32 0.0, %v1427
    %v1429 = vpop.f32.mrb[0].mxu0
    %1430 = vdwg.mxu0
    %1432 = vrot.lane.b32.xlu0 %v1428, 8
    %v1433 = vpop.permute.xlu0 %1432
    %1435 = vst.msk [vmem:[#allocation2 + $0x8] sm:$0xff] %vm724, %v1433
    %1436 = vrot.lane.b32.xlu0 %v194, 112
    %v1437 = vpop.permute.xlu0 %1436
    %1438 = vrot.lane.b32.xlu0 %v1088, 112
    %v1439 = vpop.permute.xlu0 %1438
    %1440 = vrot.lane.b32.xlu0 %v1087, 112
    %v1441 = vpop.permute.xlu0 %1440
    %v1442 = vsel %vm376, %v1437, 0
    %v1444 = vsel %vm376, %v1439, 0
    %v1446 = vsel %vm376, %v1441, 0
    %1448 = vmatprep.subr.mxu0 0.0
    %1449 = vmatpush1.xpose.msra.mxu0 %v1444
    %1450 = vmatprep.subr.mxu0 0.0
    %1451 = vmatpush1.xpose.msra.mxu0 %v1446
    %1452 = vmatprep.subr.mxu0 0.0
    %1453 = vmatpush1.xpose.msra.mxu0 0.0
    %1454 = vmatprep.subr.mxu0 0.0
    %1455 = vmatpush1.xpose.msra.mxu0 0.0
    %1456 = vmatprep.subr.mxu0 0.0
    %1457 = vmatpush1.xpose.msra.mxu0 0.0
    %1458 = vmatprep.subr.mxu0 0.0
    %1459 = vmatpush1.xpose.msra.mxu0 0.0
    %1460 = vmatprep.subr.mxu0 0.0
    %1461 = vmatpush1.xpose.msra.mxu0 0.0
    %1462 = vmatprep.subr.mxu0 0.0
    %1463 = vmatpush1.xpose.msra.mxu0 0.0
    %1464 = vmatprep.subr.mxu0 0.0
    %1465 = vmatpush1.xpose.msra.mxu0 0.0
    %1466 = vmatprep.subr.mxu0 0.0
    %1467 = vmatpush1.xpose.msra.mxu0 0.0
    %1468 = vmatprep.subr.mxu0 0.0
    %1469 = vmatpush1.xpose.msra.mxu0 0.0
    %1470 = vmatprep.subr.mxu0 0.0
    %1471 = vmatpush1.xpose.msra.mxu0 0.0
    %1472 = vmatprep.subr.mxu0 0.0
    %1473 = vmatpush1.xpose.msra.mxu0 0.0
    %1474 = vmatprep.subr.mxu0 0.0
    %1475 = vmatpush1.xpose.msra.mxu0 0.0
    %1476 = vmatprep.subr.mxu0 0.0
    %1477 = vmatpush1.xpose.msra.mxu0 0.0
    %1478 = vmatprep.subr.mxu0 0.0
    %1479 = vmatpush1.xpose.msra.mxu0 0.0
    %1480 = vmatprep.subr.mxu0 0.0
    %1481 = vmatpush1.xpose.msra.mxu0 0.0
    %1482 = vmatprep.subr.mxu0 0.0
    %1483 = vmatpush1.xpose.msra.mxu0 0.0
    %1484 = vmatprep.subr.mxu0 0.0
    %1485 = vmatpush1.xpose.msra.mxu0 0.0
    %1486 = vmatprep.subr.mxu0 0.0
    %1487 = vmatpush1.xpose.msra.mxu0 0.0
    %1488 = vmatprep.subr.mxu0 0.0
    %1489 = vmatpush1.xpose.msra.mxu0 0.0
    %1490 = vmatprep.subr.mxu0 0.0
    %1491 = vmatpush1.xpose.msra.mxu0 0.0
    %1492 = vmatprep.subr.mxu0 0.0
    %1493 = vmatpush1.xpose.msra.mxu0 0.0
    %1494 = vmatprep.subr.mxu0 0.0
    %1495 = vmatpush1.xpose.msra.mxu0 0.0
    %1496 = vmatprep.subr.mxu0 0.0
    %1497 = vmatpush1.xpose.msra.mxu0 0.0
    %1498 = vmatprep.subr.mxu0 0.0
    %1499 = vmatpush1.xpose.msra.mxu0 0.0
    %1500 = vmatprep.subr.mxu0 0.0
    %1501 = vmatpush1.xpose.msra.mxu0 0.0
    %1502 = vmatprep.subr.mxu0 0.0
    %1503 = vmatpush1.xpose.msra.mxu0 0.0
    %1504 = vmatprep.subr.mxu0 0.0
    %1505 = vmatpush1.xpose.msra.mxu0 0.0
    %1506 = vmatprep.subr.mxu0 0.0
    %1507 = vmatpush1.xpose.msra.mxu0 0.0
    %1508 = vmatprep.subr.mxu0 0.0
    %1509 = vmatpush1.xpose.msra.mxu0 0.0
    %1510 = vmatprep.subr.mxu0 0.0
    %1511 = vmatpush1.xpose.msra.mxu0 0.0
    %1512 = vmatprep.mubr.f32.mxu0 0.0
    %1513 = vmatmul.mubr.f32.gmra.mrb[0].mxu0 %v1442
    %v1514 = vpop.f32.mrb[0].mxu0
    %v1515 = vadd.f32 0.0, %v1514
    %v1516 = vpop.f32.mrb[0].mxu0
    %1517 = vdwg.mxu0
    %v1518 = vsel %vm456, %v1515, -inf
    %1519 = vmax.xlane.f32.xlu0 %v1518
    %v1520 = vpop.xlane.xlu0 %1519
    %v1521 = vsub.f32 %v1515, %v1520
    %v1522 = vmul.f32 %v1521, 1.442695
    %v1523 = vpow.pop %v1522
    %v1524 = vsel %vm456, %v1523, 0.0
    %1525 = vadd.xlane.f32.xlu0 %v1524
    %v1526 = vpop.xlane.xlu0 %1525
    %v1527 = vrcp.pop %v1526
    %v1528 = vmul.f32 %v1523, %v1527
    %1529 = vrot.lane.b32.xlu0 %v1180, 112
    %v1530 = vpop.permute.xlu0 %1529
    %1531 = vrot.lane.b32.xlu0 %v1179, 112
    %v1532 = vpop.permute.xlu0 %1531
    %v1535 = vsel %vm456, %v1528, 0
    %v1537 = vsel %vm471, %v1532, 0
    %1539 = vmatprep.subr.mxu0 0.0
    %1540 = vmatpush1.msra.mxu0 %v1530
    %1541 = vmatprep.subr.mxu0 0.0
    %1542 = vmatpush1.msra.mxu0 %v1537
    %1543 = vmatprep.subr.mxu0 0.0
    %1544 = vmatpush1.msra.mxu0 0.0
    %1545 = vmatprep.subr.mxu0 0.0
    %1546 = vmatpush1.msra.mxu0 0.0
    %1547 = vmatprep.subr.mxu0 0.0
    %1548 = vmatpush1.msra.mxu0 0.0
    %1549 = vmatprep.subr.mxu0 0.0
    %1550 = vmatpush1.msra.mxu0 0.0
    %1551 = vmatprep.subr.mxu0 0.0
    %1552 = vmatpush1.msra.mxu0 0.0
    %1553 = vmatprep.subr.mxu0 0.0
    %1554 = vmatpush1.msra.mxu0 0.0
    %1555 = vmatprep.subr.mxu0 0.0
    %1556 = vmatpush1.msra.mxu0 0.0
    %1557 = vmatprep.subr.mxu0 0.0
    %1558 = vmatpush1.msra.mxu0 0.0
    %1559 = vmatprep.subr.mxu0 0.0
    %1560 = vmatpush1.msra.mxu0 0.0
    %1561 = vmatprep.subr.mxu0 0.0
    %1562 = vmatpush1.msra.mxu0 0.0
    %1563 = vmatprep.subr.mxu0 0.0
    %1564 = vmatpush1.msra.mxu0 0.0
    %1565 = vmatprep.subr.mxu0 0.0
    %1566 = vmatpush1.msra.mxu0 0.0
    %1567 = vmatprep.subr.mxu0 0.0
    %1568 = vmatpush1.msra.mxu0 0.0
    %1569 = vmatprep.subr.mxu0 0.0
    %1570 = vmatpush1.msra.mxu0 0.0
    %1571 = vmatprep.subr.mxu0 0.0
    %1572 = vmatpush1.msra.mxu0 0.0
    %1573 = vmatprep.subr.mxu0 0.0
    %1574 = vmatpush1.msra.mxu0 0.0
    %1575 = vmatprep.subr.mxu0 0.0
    %1576 = vmatpush1.msra.mxu0 0.0
    %1577 = vmatprep.subr.mxu0 0.0
    %1578 = vmatpush1.msra.mxu0 0.0
    %1579 = vmatprep.subr.mxu0 0.0
    %1580 = vmatpush1.msra.mxu0 0.0
    %1581 = vmatprep.subr.mxu0 0.0
    %1582 = vmatpush1.msra.mxu0 0.0
    %1583 = vmatprep.subr.mxu0 0.0
    %1584 = vmatpush1.msra.mxu0 0.0
    %1585 = vmatprep.subr.mxu0 0.0
    %1586 = vmatpush1.msra.mxu0 0.0
    %1587 = vmatprep.subr.mxu0 0.0
    %1588 = vmatpush1.msra.mxu0 0.0
    %1589 = vmatprep.subr.mxu0 0.0
    %1590 = vmatpush1.msra.mxu0 0.0
    %1591 = vmatprep.subr.mxu0 0.0
    %1592 = vmatpush1.msra.mxu0 0.0
    %1593 = vmatprep.subr.mxu0 0.0
    %1594 = vmatpush1.msra.mxu0 0.0
    %1595 = vmatprep.subr.mxu0 0.0
    %1596 = vmatpush1.msra.mxu0 0.0
    %1597 = vmatprep.subr.mxu0 0.0
    %1598 = vmatpush1.msra.mxu0 0.0
    %1599 = vmatprep.subr.mxu0 0.0
    %1600 = vmatpush1.msra.mxu0 0.0
    %1601 = vmatprep.subr.mxu0 0.0
    %1602 = vmatpush1.msra.mxu0 0.0
    %1603 = vmatprep.mubr.f32.mxu0 0.0
    %1604 = vmatmul.mubr.f32.gmra.mrb[0].mxu0 %v1535
    %v1605 = vpop.f32.mrb[0].mxu0
    %v1606 = vadd.f32 0.0, %v1605
    %v1607 = vpop.f32.mrb[0].mxu0
    %1608 = vdwg.mxu0
    %1610 = vrot.lane.b32.xlu0 %v1606, 16
    %v1611 = vpop.permute.xlu0 %1610
    %1613 = vst.msk [vmem:[#allocation2 + $0x8] sm:$0xff] %vm903, %v1611
    %1614 = vrot.lane.b32.xlu0 %v194, 104
    %v1615 = vpop.permute.xlu0 %1614
    %1616 = vrot.lane.b32.xlu0 %v1088, 104
    %v1617 = vpop.permute.xlu0 %1616
    %1618 = vrot.lane.b32.xlu0 %v1087, 104
    %v1619 = vpop.permute.xlu0 %1618
    %v1620 = vsel %vm376, %v1615, 0
    %v1622 = vsel %vm376, %v1617, 0
    %v1624 = vsel %vm376, %v1619, 0
    %1626 = vmatprep.subr.mxu0 0.0
    %1627 = vmatpush1.xpose.msra.mxu0 %v1622
    %1628 = vmatprep.subr.mxu0 0.0
    %1629 = vmatpush1.xpose.msra.mxu0 %v1624
    %1630 = vmatprep.subr.mxu0 0.0
    %1631 = vmatpush1.xpose.msra.mxu0 0.0
    %1632 = vmatprep.subr.mxu0 0.0
    %1633 = vmatpush1.xpose.msra.mxu0 0.0
    %1634 = vmatprep.subr.mxu0 0.0
    %1635 = vmatpush1.xpose.msra.mxu0 0.0
    %1636 = vmatprep.subr.mxu0 0.0
    %1637 = vmatpush1.xpose.msra.mxu0 0.0
    %1638 = vmatprep.subr.mxu0 0.0
    %1639 = vmatpush1.xpose.msra.mxu0 0.0
    %1640 = vmatprep.subr.mxu0 0.0
    %1641 = vmatpush1.xpose.msra.mxu0 0.0
    %1642 = vmatprep.subr.mxu0 0.0
    %1643 = vmatpush1.xpose.msra.mxu0 0.0
    %1644 = vmatprep.subr.mxu0 0.0
    %1645 = vmatpush1.xpose.msra.mxu0 0.0
    %1646 = vmatprep.subr.mxu0 0.0
    %1647 = vmatpush1.xpose.msra.mxu0 0.0
    %1648 = vmatprep.subr.mxu0 0.0
    %1649 = vmatpush1.xpose.msra.mxu0 0.0
    %1650 = vmatprep.subr.mxu0 0.0
    %1651 = vmatpush1.xpose.msra.mxu0 0.0
    %1652 = vmatprep.subr.mxu0 0.0
    %1653 = vmatpush1.xpose.msra.mxu0 0.0
    %1654 = vmatprep.subr.mxu0 0.0
    %1655 = vmatpush1.xpose.msra.mxu0 0.0
    %1656 = vmatprep.subr.mxu0 0.0
    %1657 = vmatpush1.xpose.msra.mxu0 0.0
    %1658 = vmatprep.subr.mxu0 0.0
    %1659 = vmatpush1.xpose.msra.mxu0 0.0
    %1660 = vmatprep.subr.mxu0 0.0
    %1661 = vmatpush1.xpose.msra.mxu0 0.0
    %1662 = vmatprep.subr.mxu0 0.0
    %1663 = vmatpush1.xpose.msra.mxu0 0.0
    %1664 = vmatprep.subr.mxu0 0.0
    %1665 = vmatpush1.xpose.msra.mxu0 0.0
    %1666 = vmatprep.subr.mxu0 0.0
    %1667 = vmatpush1.xpose.msra.mxu0 0.0
    %1668 = vmatprep.subr.mxu0 0.0
    %1669 = vmatpush1.xpose.msra.mxu0 0.0
    %1670 = vmatprep.subr.mxu0 0.0
    %1671 = vmatpush1.xpose.msra.mxu0 0.0
    %1672 = vmatprep.subr.mxu0 0.0
    %1673 = vmatpush1.xpose.msra.mxu0 0.0
    %1674 = vmatprep.subr.mxu0 0.0
    %1675 = vmatpush1.xpose.msra.mxu0 0.0
    %1676 = vmatprep.subr.mxu0 0.0
    %1677 = vmatpush1.xpose.msra.mxu0 0.0
    %1678 = vmatprep.subr.mxu0 0.0
    %1679 = vmatpush1.xpose.msra.mxu0 0.0
    %1680 = vmatprep.subr.mxu0 0.0
    %1681 = vmatpush1.xpose.msra.mxu0 0.0
    %1682 = vmatprep.subr.mxu0 0.0
    %1683 = vmatpush1.xpose.msra.mxu0 0.0
    %1684 = vmatprep.subr.mxu0 0.0
    %1685 = vmatpush1.xpose.msra.mxu0 0.0
    %1686 = vmatprep.subr.mxu0 0.0
    %1687 = vmatpush1.xpose.msra.mxu0 0.0
    %1688 = vmatprep.subr.mxu0 0.0
    %1689 = vmatpush1.xpose.msra.mxu0 0.0
    %1690 = vmatprep.mubr.f32.mxu0 0.0
    %1691 = vmatmul.mubr.f32.gmra.mrb[0].mxu0 %v1620
    %v1692 = vpop.f32.mrb[0].mxu0
    %v1693 = vadd.f32 0.0, %v1692
    %v1694 = vpop.f32.mrb[0].mxu0
    %1695 = vdwg.mxu0
    %v1696 = vsel %vm456, %v1693, -inf
    %1697 = vmax.xlane.f32.xlu0 %v1696
    %v1698 = vpop.xlane.xlu0 %1697
    %v1699 = vsub.f32 %v1693, %v1698
    %v1700 = vmul.f32 %v1699, 1.442695
    %v1701 = vpow.pop %v1700
    %v1702 = vsel %vm456, %v1701, 0.0
    %1703 = vadd.xlane.f32.xlu0 %v1702
    %v1704 = vpop.xlane.xlu0 %1703
    %v1705 = vrcp.pop %v1704
    %v1706 = vmul.f32 %v1701, %v1705
    %1707 = vrot.lane.b32.xlu0 %v1180, 104
    %v1708 = vpop.permute.xlu0 %1707
    %1709 = vrot.lane.b32.xlu0 %v1179, 104
    %v1710 = vpop.permute.xlu0 %1709
    %v1713 = vsel %vm456, %v1706, 0
    %v1715 = vsel %vm471, %v1710, 0
    %1717 = vmatprep.subr.mxu0 0.0
    %1718 = vmatpush1.msra.mxu0 %v1708
    %1719 = vmatprep.subr.mxu0 0.0
    %1720 = vmatpush1.msra.mxu0 %v1715
    %1721 = vmatprep.subr.mxu0 0.0
    %1722 = vmatpush1.msra.mxu0 0.0
    %1723 = vmatprep.subr.mxu0 0.0
    %1724 = vmatpush1.msra.mxu0 0.0
    %1725 = vmatprep.subr.mxu0 0.0
    %1726 = vmatpush1.msra.mxu0 0.0
    %1727 = vmatprep.subr.mxu0 0.0
    %1728 = vmatpush1.msra.mxu0 0.0
    %1729 = vmatprep.subr.mxu0 0.0
    %1730 = vmatpush1.msra.mxu0 0.0
    %1731 = vmatprep.subr.mxu0 0.0
    %1732 = vmatpush1.msra.mxu0 0.0
    %1733 = vmatprep.subr.mxu0 0.0
    %1734 = vmatpush1.msra.mxu0 0.0
    %1735 = vmatprep.subr.mxu0 0.0
    %1736 = vmatpush1.msra.mxu0 0.0
    %1737 = vmatprep.subr.mxu0 0.0
    %1738 = vmatpush1.msra.mxu0 0.0
    %1739 = vmatprep.subr.mxu0 0.0
    %1740 = vmatpush1.msra.mxu0 0.0
    %1741 = vmatprep.subr.mxu0 0.0
    %1742 = vmatpush1.msra.mxu0 0.0
    %1743 = vmatprep.subr.mxu0 0.0
    %1744 = vmatpush1.msra.mxu0 0.0
    %1745 = vmatprep.subr.mxu0 0.0
    %1746 = vmatpush1.msra.mxu0 0.0
    %1747 = vmatprep.subr.mxu0 0.0
    %1748 = vmatpush1.msra.mxu0 0.0
    %1749 = vmatprep.subr.mxu0 0.0
    %1750 = vmatpush1.msra.mxu0 0.0
    %1751 = vmatprep.subr.mxu0 0.0
    %1752 = vmatpush1.msra.mxu0 0.0
    %1753 = vmatprep.subr.mxu0 0.0
    %1754 = vmatpush1.msra.mxu0 0.0
    %1755 = vmatprep.subr.mxu0 0.0
    %1756 = vmatpush1.msra.mxu0 0.0
    %1757 = vmatprep.subr.mxu0 0.0
    %1758 = vmatpush1.msra.mxu0 0.0
    %1759 = vmatprep.subr.mxu0 0.0
    %1760 = vmatpush1.msra.mxu0 0.0
    %1761 = vmatprep.subr.mxu0 0.0
    %1762 = vmatpush1.msra.mxu0 0.0
    %1763 = vmatprep.subr.mxu0 0.0
    %1764 = vmatpush1.msra.mxu0 0.0
    %1765 = vmatprep.subr.mxu0 0.0
    %1766 = vmatpush1.msra.mxu0 0.0
    %1767 = vmatprep.subr.mxu0 0.0
    %1768 = vmatpush1.msra.mxu0 0.0
    %1769 = vmatprep.subr.mxu0 0.0
    %1770 = vmatpush1.msra.mxu0 0.0
    %1771 = vmatprep.subr.mxu0 0.0
    %1772 = vmatpush1.msra.mxu0 0.0
    %1773 = vmatprep.subr.mxu0 0.0
    %1774 = vmatpush1.msra.mxu0 0.0
    %1775 = vmatprep.subr.mxu0 0.0
    %1776 = vmatpush1.msra.mxu0 0.0
    %1777 = vmatprep.subr.mxu0 0.0
    %1778 = vmatpush1.msra.mxu0 0.0
    %1779 = vmatprep.subr.mxu0 0.0
    %1780 = vmatpush1.msra.mxu0 0.0
    %1781 = vmatprep.mubr.f32.mxu0 0.0
    %1782 = vmatmul.mubr.f32.gmra.mrb[0].mxu0 %v1713
    %v1783 = vpop.f32.mrb[0].mxu0
    %v1784 = vadd.f32 0.0, %v1783
    %v1785 = vpop.f32.mrb[0].mxu0
    %1786 = vdwg.mxu0
    %1788 = vrot.lane.b32.xlu0 %v1784, 24
    %v1789 = vpop.permute.xlu0 %1788
    %1791 = vst.msk [vmem:[#allocation2 + $0x8] sm:$0xff] %vm1082, %v1789
    %v1792 = vld [vmem:[#allocation2] sm:$0xff]
    %v1793 = vld [vmem:[#allocation2 + $0x8] sm:$0xff]
    %v1794 = vld [vmem:[#allocation12] sm:$0xff]
    %v1795 = vld [vmem:[#allocation12 + $0x8] sm:$0xff]
    %v1796 = vld [vmem:[#allocation12 + $0x10] sm:$0xff]
    %v1797 = vld [vmem:[#allocation12 + $0x18] sm:$0xff]
    %v1798 = vld [vmem:[%s6] sm:$0x1]
    %v1800 = vlaneseq
    %v1801 = vshrl.u32 %v1800, 7
    %v1802 = vsub.s32 0, %v1801
    %v1803 = vrot.slane %v1798, %v1802
    %v1806 = vsel %vm115, %v1792, 0
    %v1809 = vsel %vm115, %v1793, 0
    %1811 = vmatprep.subr.mxu0 0.0
    %1812 = vmatpush1.msra.mxu0 %v1794
    %1813 = vmatprep.subr.mxu0 0.0
    %1814 = vmatpush1.msra.mxu0 %v1795
    %1815 = vmatprep.subr.mxu0 0.0
    %1816 = vmatpush1.msra.mxu0 %v1796
    %1817 = vmatprep.subr.mxu0 0.0
    %1818 = vmatpush1.msra.mxu0 %v1797
    %1819 = vmatprep.subr.mxu0 0.0
    %1820 = vmatpush1.msra.mxu0 0.0
    %1821 = vmatprep.subr.mxu0 0.0
    %1822 = vmatpush1.msra.mxu0 0.0
    %1823 = vmatprep.subr.mxu0 0.0
    %1824 = vmatpush1.msra.mxu0 0.0
    %1825 = vmatprep.subr.mxu0 0.0
    %1826 = vmatpush1.msra.mxu0 0.0
    %1827 = vmatprep.subr.mxu0 0.0
    %1828 = vmatpush1.msra.mxu0 0.0
    %1829 = vmatprep.subr.mxu0 0.0
    %1830 = vmatpush1.msra.mxu0 0.0
    %1831 = vmatprep.subr.mxu0 0.0
    %1832 = vmatpush1.msra.mxu0 0.0
    %1833 = vmatprep.subr.mxu0 0.0
    %1834 = vmatpush1.msra.mxu0 0.0
    %1835 = vmatprep.subr.mxu0 0.0
    %1836 = vmatpush1.msra.mxu0 0.0
    %1837 = vmatprep.subr.mxu0 0.0
    %1838 = vmatpush1.msra.mxu0 0.0
    %1839 = vmatprep.subr.mxu0 0.0
    %1840 = vmatpush1.msra.mxu0 0.0
    %1841 = vmatprep.subr.mxu0 0.0
    %1842 = vmatpush1.msra.mxu0 0.0
    %1843 = vmatprep.subr.mxu0 0.0
    %1844 = vmatpush1.msra.mxu0 0.0
    %1845 = vmatprep.subr.mxu0 0.0
    %1846 = vmatpush1.msra.mxu0 0.0
    %1847 = vmatprep.subr.mxu0 0.0
    %1848 = vmatpush1.msra.mxu0 0.0
    %1849 = vmatprep.subr.mxu0 0.0
    %1850 = vmatpush1.msra.mxu0 0.0
    %1851 = vmatprep.subr.mxu0 0.0
    %1852 = vmatpush1.msra.mxu0 0.0
    %1853 = vmatprep.subr.mxu0 0.0
    %1854 = vmatpush1.msra.mxu0 0.0
    %1855 = vmatprep.subr.mxu0 0.0
    %1856 = vmatpush1.msra.mxu0 0.0
    %1857 = vmatprep.subr.mxu0 0.0
    %1858 = vmatpush1.msra.mxu0 0.0
    %1859 = vmatprep.subr.mxu0 0.0
    %1860 = vmatpush1.msra.mxu0 0.0
    %1861 = vmatprep.subr.mxu0 0.0
    %1862 = vmatpush1.msra.mxu0 0.0
    %1863 = vmatprep.subr.mxu0 0.0
    %1864 = vmatpush1.msra.mxu0 0.0
    %1865 = vmatprep.subr.mxu0 0.0
    %1866 = vmatpush1.msra.mxu0 0.0
    %1867 = vmatprep.subr.mxu0 0.0
    %1868 = vmatpush1.msra.mxu0 0.0
    %1869 = vmatprep.subr.mxu0 0.0
    %1870 = vmatpush1.msra.mxu0 0.0
    %1871 = vmatprep.subr.mxu0 0.0
    %1872 = vmatpush1.msra.mxu0 0.0
    %1873 = vmatprep.subr.mxu0 0.0
    %1874 = vmatpush1.msra.mxu0 0.0
    %1875 = vmatprep.mubr.f32.mxu0 0.0
    %1876 = vmatmul.mubr.f32.gmra.mrb[0].mxu0 %v1806
    %v1877 = vpop.f32.mrb[0].mxu0
    %v1878 = vadd.f32 %v1803, %v1877
    %v1879 = vpop.f32.mrb[0].mxu0
    %1880 = vmatprep.mubr.f32.mxu0 0.0
    %1881 = vmatmul.mubr.f32.gmra.mrb[0].mxu0 %v1809
    %v1882 = vpop.f32.mrb[0].mxu0
    %v1883 = vadd.f32 %v1803, %v1882
    %v1884 = vpop.f32.mrb[0].mxu0
    %1885 = vdwg.mxu0
    %1886 = vst [vmem:[#allocation14] sm:$0xff] %v1878
    %1887 = vst [vmem:[#allocation14 + $0x8] sm:$0xff] %v1883
    // Predicated region
    $region54: #{tpu_custom_call.1} parent=1 // pred_check
      _
    $region55: #{tpu_custom_call.1} parent=1 // pred_check_branch
      %1889 = sbr.rel (0) target = $region57
    $region56: #{tpu_custom_call.1} parent=1 // pred_region
      %s1891 = ssub.s32 256, 256
      %1892 = vsyncadd [#allocation5], %s1891
      %s1893 = sshll.u32 [#allocation14], 4
      %s1894 = int_to_ptr.vmem [resolvable:$true] %s1893
      %1899 = dma.vmem_to_hbm [thread:$0]  %s1894, 256, %s7, [#allocation5], 128, 128, 8
    $region57: #{tpu_custom_call.1} parent=1 // pred_fallthru
      _
    // Predicated region
    $region58: #{tpu_custom_call.1} parent=1 // pred_check
      _
    $region59: #{tpu_custom_call.1} parent=1 // pred_check_branch
      %1901 = sbr.rel (0) target = $region61
    $region60: #{tpu_custom_call.1} parent=1 // pred_region
      %1902 = dma.done [#allocation5], 256
    $region61: #{tpu_custom_call.1} parent=1 // pred_fallthru
      _
    %1903 = vsyncpa [#allocation4], 1
    %1904 = vsyncpa [#allocation7], 1
    %1905 = vsyncpa [#allocation10], 1
    %1906 = vsyncpa [#allocation13], 1
    %1907 = vsyncpa [#allocation5], 1

</llo_original>
